<compile_context>
chip_gen: v7x
topology: tpu7x:2x2x1
jax: 0.10.0
libtpu: 0.0.40
codegen_flags: <defaults>
</compile_context>

<pallas_src>
import jax
import jax.numpy as jnp
import numpy as np
from jax import lax
from jax.experimental import pallas as pl
from jax.experimental.pallas import tpu as pltpu

HIDDEN_SIZE = 256
NUM_ACTIONS = 3      # ALE/Skiing-v5: env.action_space.n == 3

# Small compat shim (newer jax: CompilerParams, older: TPUCompilerParams).
_CompilerParams = getattr(pltpu, "CompilerParams", None) or getattr(
    pltpu, "TPUCompilerParams")


# ---------------------------------------------------------------------------
# Kernel 1: fused conv tower (one image per grid step, activations in VMEM)
# ---------------------------------------------------------------------------
def _conv_tower_kernel(x_ref, w1_ref, b1_ref, w2_ref, b2_ref, w3_ref, b3_ref,
                       feat_ref, h1_ref, h2_ref):
    """Per-image conv1 -> conv2 -> conv3 with everything resident in VMEM.

    x_ref   : (1, 21, 2, 11, 16) bf16, space-to-depth + W-parity layout:
              x_ref[0, H, p, q, r*4 + c] == frame[4*H + r, 4*(2*q + p) + c]
    w1_ref  : (64, 32)   bf16  conv1 weights, K order (bi, bj, r, c)
    w2_ref  : (512, 64)  bf16  conv2 weights, K order (kh, kw, ic)
    w3_ref  : (576, 64)  bf16  conv3 weights, K order (kh, kw, ic)
    b*_ref  : (1, OC)    f32
    feat_ref: (1, 7, 7, 64) bf16 output, [0, oh, ow, oc]
    h1_ref  : (20, 2, 10, 32) bf16 scratch, [oh, ow % 2, ow // 2, oc]
    h2_ref  : (9, 9, 64)      bf16 scratch, [oh, ow, oc]
    """
    f32 = jnp.float32

    # ---- conv1: 8x8 stride 4 (84x84x1 -> 20x20x32), one output row per iter.
    # Each output pixel covers a 2x2 group of 4x4 input blocks -> K = 4 slabs
    # of 16; even / odd output columns are computed separately so conv2's
    # stride-2 reads become unit-stride slices of the parity-split scratch.
    def conv1_row(oh, carry):
        acc_e = jnp.zeros((10, 32), f32)          # even output columns
        acc_o = jnp.zeros((10, 32), f32)          # odd output columns
        for s, (bi, bj) in enumerate(((0, 0), (0, 1), (1, 0), (1, 1))):
            w = w1_ref[16 * s:16 * (s + 1), :]                    # (16, 32)
            x_e = x_ref[0, oh + bi, bj, 0:10, :]                  # cols 2b + bj
            if bj == 0:
                x_o = x_ref[0, oh + bi, 1, 0:10, :]               # cols 2b + 1
            else:
                x_o = x_ref[0, oh + bi, 0, 1:11, :]               # cols 2b + 2
            acc_e = acc_e + jnp.dot(x_e, w, preferred_element_type=f32)
            acc_o = acc_o + jnp.dot(x_o, w, preferred_element_type=f32)
        b1 = b1_ref[...]
        h1_ref[oh, 0, :, :] = jnp.maximum(acc_e + b1, 0.0).astype(h1_ref.dtype)
        h1_ref[oh, 1, :, :] = jnp.maximum(acc_o + b1, 0.0).astype(h1_ref.dtype)
        return carry

    lax.fori_loop(0, 20, conv1_row, 0)

    # ---- conv2: 4x4 stride 2 (20x20x32 -> 9x9x64) ---------------------------
    def conv2_row(oh, carry):
        acc = jnp.zeros((9, 64), f32)
        for kh in range(4):
            for kw in range(4):
                s = kh * 4 + kw
                w = w2_ref[32 * s:32 * (s + 1), :]                         # (32, 64)
                xs = h1_ref[2 * oh + kh, kw % 2, kw // 2:kw // 2 + 9, :]   # (9, 32)
                acc = acc + jnp.dot(xs, w, preferred_element_type=f32)
        h2_ref[oh, :, :] = jnp.maximum(acc + b2_ref[...], 0.0).astype(h2_ref.dtype)
        return carry

    lax.fori_loop(0, 9, conv2_row, 0)

    # ---- conv3: 3x3 stride 1 (9x9x64 -> 7x7x64), writes straight to output --
    def conv3_row(oh, carry):
        acc = jnp.zeros((7, 64), f32)
        for kh in range(3):
            for kw in range(3):
                s = kh * 3 + kw
                w = w3_ref[64 * s:64 * (s + 1), :]                # (64, 64)
                xs = h2_ref[oh + kh, kw:kw + 7, :]                # (7, 64)
                acc = acc + jnp.dot(xs, w, preferred_element_type=f32)
        out = jnp.maximum(acc + b3_ref[...], 0.0)
        feat_ref[0, oh, :, :] = out.astype(feat_ref.dtype)
        return carry

    lax.fori_loop(0, 7, conv3_row, 0)


def _conv_tower(xdp, p):
    B = xdp.shape[0]
    return pl.pallas_call(
        _conv_tower_kernel,
        out_shape=jax.ShapeDtypeStruct((B, 7, 7, 64), jnp.bfloat16),
        grid=(B,),
        in_specs=[
            pl.BlockSpec((1, 21, 2, 11, 16), lambda b: (b, 0, 0, 0, 0)),
            pl.BlockSpec((64, 32), lambda b: (0, 0)),
            pl.BlockSpec((1, 32), lambda b: (0, 0)),
            pl.BlockSpec((512, 64), lambda b: (0, 0)),
            pl.BlockSpec((1, 64), lambda b: (0, 0)),
            pl.BlockSpec((576, 64), lambda b: (0, 0)),
            pl.BlockSpec((1, 64), lambda b: (0, 0)),
        ],
        out_specs=pl.BlockSpec((1, 7, 7, 64), lambda b: (b, 0, 0, 0)),
        scratch_shapes=[
            pltpu.VMEM((20, 2, 10, 32), jnp.bfloat16),   # conv1 out (W-parity split)
            pltpu.VMEM((9, 9, 64), jnp.bfloat16),        # conv2 out
        ],
        compiler_params=_CompilerParams(dimension_semantics=("parallel",)),
    )(xdp, p["c1_w"], p["c1_b"], p["c2_w"], p["c2_b"], p["c3_w"], p["c3_b"])


# ---------------------------------------------------------------------------
# Kernel 2: fused FC head  q = (relu(x @ W1 + b1)) @ W2 + b2
# ---------------------------------------------------------------------------
def _fc_kernel(x_ref, w1_ref, b1_ref, w2_ref, b2_ref, o_ref):
    h = jnp.dot(x_ref[...], w1_ref[...], preferred_element_type=jnp.float32)
    h = jnp.maximum(h + b1_ref[...], 0.0)
    q = jnp.dot(h.astype(w2_ref.dtype), w2_ref[...],
                preferred_element_type=jnp.float32)
    o_ref[...] = q + b2_ref[...]


def _fc_head(feat, p):
    B, K = feat.shape
    H = p["fc1_w"].shape[1]
    N = p["fc2_w"].shape[1]
    tm = B if B <= 256 else 256          # M-tile; a single step at B = 2
    return pl.pallas_call(
        _fc_kernel,
        out_shape=jax.ShapeDtypeStruct((B, N), jnp.float32),
        grid=(pl.cdiv(B, tm),),
        in_specs=[
            pl.BlockSpec((tm, K), lambda i: (i, 0)),
            pl.BlockSpec((K, H), lambda i: (0, 0)),
            pl.BlockSpec((1, H), lambda i: (0, 0)),
            pl.BlockSpec((H, N), lambda i: (0, 0)),
            pl.BlockSpec((1, N), lambda i: (0, 0)),
        ],
        out_specs=pl.BlockSpec((tm, N), lambda i: (i, 0)),
        compiler_params=_CompilerParams(dimension_semantics=("parallel",)),
    )(feat, p["fc1_w"], p["fc1_b"], p["fc2_w"], p["fc2_b"])


# ---------------------------------------------------------------------------
# Host-side layout prep (byte-preserving, no im2col inflation)
# ---------------------------------------------------------------------------
def _space_to_depth_parity(x):
    """(B, 1, 84, 84) f32 -> (B, 21, 2, 11, 16) bf16 with
       out[b, H, p, q, r*4 + c] = x[b, 0, 4*H + r, 4*(2*q + p) + c]
       (the p == 1, q == 10 column is zero padding and is never read)."""
    B = x.shape[0]
    xd = x.reshape(B, 21, 4, 21, 4).transpose(0, 1, 3, 2, 4).reshape(B, 21, 21, 16)
    xd = jnp.pad(xd, ((0, 0), (0, 0), (0, 1), (0, 0)))            # W: 21 -> 22
    xdp = xd.reshape(B, 21, 11, 2, 16).transpose(0, 1, 3, 2, 4)   # (B,21,2,11,16)
    return xdp.astype(jnp.bfloat16)


# ---------------------------------------------------------------------------
# Parameters: PyTorch-style init, then one-time kernel-layout preparation
# ---------------------------------------------------------------------------
def init_raw_params(key):
    """PyTorch-layout, PyTorch-default-style uniform init, float32."""
    ks = jax.random.split(key, 10)

    def u(k, shape, fan_in):
        bound = 1.0 / float(np.sqrt(fan_in))
        return jax.random.uniform(k, shape, jnp.float32, -bound, bound)

    return {
        "c1_w": u(ks[0], (32, 1, 8, 8), 1 * 8 * 8),
        "c1_b": u(ks[1], (32,), 1 * 8 * 8),
        "c2_w": u(ks[2], (64, 32, 4, 4), 32 * 4 * 4),
        "c2_b": u(ks[3], (64,), 32 * 4 * 4),
        "c3_w": u(ks[4], (64, 64, 3, 3), 64 * 3 * 3),
        "c3_b": u(ks[5], (64,), 64 * 3 * 3),
        "fc1_w": u(ks[6], (HIDDEN_SIZE, 3136), 3136),      # (out, in) like torch
        "fc1_b": u(ks[7], (HIDDEN_SIZE,), 3136),
        "fc2_w": u(ks[8], (NUM_ACTIONS, HIDDEN_SIZE), HIDDEN_SIZE),
        "fc2_b": u(ks[9], (NUM_ACTIONS,), HIDDEN_SIZE),
    }


def prepare_params(raw):
    """Pre-permute / pre-transpose weights once (kernel layouts) + cast to bf16."""
    bf16, f32 = jnp.bfloat16, jnp.float32
    # conv1: (32,1,8,8) -> (64,32), K order (bi, bj, r, c), kh = 4*bi+r, kw = 4*bj+c
    w1 = raw["c1_w"].reshape(32, 2, 4, 2, 4).transpose(1, 3, 2, 4, 0).reshape(64, 32)
    # conv2 / conv3: OIHW -> (KH*KW*IC, OC), K order (kh, kw, ic)
    w2 = raw["c2_w"].transpose(2, 3, 1, 0).reshape(4 * 4 * 32, 64)
    w3 = raw["c3_w"].transpose(2, 3, 1, 0).reshape(3 * 3 * 64, 64)
    # fc1: torch CHW-flatten order (oc*49 + oh*7 + ow) -> kernel (oh, ow, oc) order
    wf1 = (raw["fc1_w"].reshape(HIDDEN_SIZE, 64, 7, 7)
           .transpose(2, 3, 1, 0).reshape(7 * 7 * 64, HIDDEN_SIZE))
    wf2 = raw["fc2_w"].T
    return {
        "c1_w": w1.astype(bf16), "c1_b": raw["c1_b"].reshape(1, -1).astype(f32),
        "c2_w": w2.astype(bf16), "c2_b": raw["c2_b"].reshape(1, -1).astype(f32),
        "c3_w": w3.astype(bf16), "c3_b": raw["c3_b"].reshape(1, -1).astype(f32),
        "fc1_w": wf1.astype(bf16), "fc1_b": raw["fc1_b"].reshape(1, -1).astype(f32),
        "fc2_w": wf2.astype(bf16), "fc2_b": raw["fc2_b"].reshape(1, -1).astype(f32),
    }


# ---------------------------------------------------------------------------
# Full forward pass (matches DDQN.forward semantics)
# ---------------------------------------------------------------------------
def ddqn_forward(params, x):
    """x: (B, 1, 84, 84) f32 NCHW (same as PyTorch) -> (B, NUM_ACTIONS) f32."""
    B = x.shape[0]
    xdp = _space_to_depth_parity(x)       # 1:1-byte re-layout, no im2col inflation
    feat = _conv_tower(xdp, params)       # (B, 7, 7, 64) bf16, fused conv stack
    feat = feat.reshape(B, 7 * 7 * 64)    # contiguous; matches fc1_w row order
    return _fc_head(feat, params)         # (B, NUM_ACTIONS) f32


# ---------------------------------------------------------------------------
# Pure-JAX reference (correctness check)
# ---------------------------------------------------------------------------
def ddqn_forward_ref(raw, x):
    dn = ("NCHW", "OIHW", "NCHW")

    def conv(h, w, b, s):
        y = lax.conv_general_dilated(h, w, (s, s), "VALID", dimension_numbers=dn)
        return jnp.maximum(y + b.reshape(1, -1, 1, 1), 0.0)

    h = conv(x, raw["c1_w"], raw["c1_b"], 4)
    h = conv(h, raw["c2_w"], raw["c2_b"], 2)
    h = conv(h, raw["c3_w"], raw["c3_b"], 1)
    flat = h.reshape(x.shape[0], -1)
    h = jnp.maximum(flat @ raw["fc1_w"].T + raw["fc1_b"], 0.0)
    return h @ raw["fc2_w"].T + raw["fc2_b"]


if __name__ == "__main__":
    key = jax.random.PRNGKey(0)
    pkey, xkey = jax.random.split(key)

    raw = init_raw_params(pkey)
    params = prepare_params(raw)
    # Batch of 2 grayscale 84x84 frames (Linear(3136, .) fixes the input size).
    x = jax.random.uniform(xkey, (2, 1, 84, 84), jnp.float32)

    q = jax.block_until_ready(jax.jit(ddqn_forward)(params, x))

    # Reference in f32 math using the same bf16-quantized weights / input the
    # kernels consume, so the comparison isolates kernel correctness.
    def bf(a):
        return a.astype(jnp.bfloat16).astype(jnp.float32)

    raw_q = {k: (bf(v) if k.endswith("_w") else v) for k, v in raw.items()}
    q_ref = jax.block_until_ready(jax.jit(ddqn_forward_ref)(raw_q, bf(x)))

    assert q.shape == (2, NUM_ACTIONS), q.shape
    assert bool(jnp.all(jnp.isfinite(q)))
    np.testing.assert_allclose(np.asarray(q), np.asarray(q_ref),
                               rtol=2e-2, atol=2e-2)
    print("KERNEL_OK")
</pallas_src>

<mosaic_0001>
module attributes {stable_mosaic.version = 11 : i64} {
  func.func @_conv_tower_kernel(%arg0: i32, %arg1: memref<1x21x2x11x16xbf16, #tpu.memory_space<vmem>>, %arg2: memref<64x32xbf16, #tpu.memory_space<vmem>>, %arg3: memref<1x32xf32, #tpu.memory_space<vmem>>, %arg4: memref<512x64xbf16, #tpu.memory_space<vmem>>, %arg5: memref<1x64xf32, #tpu.memory_space<vmem>>, %arg6: memref<576x64xbf16, #tpu.memory_space<vmem>>, %arg7: memref<1x64xf32, #tpu.memory_space<vmem>>, %arg8: memref<1x7x7x64xbf16, #tpu.memory_space<vmem>>, %arg9: memref<20x2x10x32xbf16, #tpu.memory_space<vmem>>, %arg10: memref<9x9x64xbf16, #tpu.memory_space<vmem>>) attributes {dimension_semantics = [#tpu.dimension_semantics<parallel>], iteration_bounds = array<i64: 2>, scalar_prefetch = 0 : i64, scratch_operands = 2 : i64, tpu.core_type = #tpu.core_type<tc>, window_params = [{transform_indices = @transform_0, window_bounds = array<i64: 1, 21, 2, 11, 16>}, {pipeline_mode = #tpu.pipeline_mode<synchronous>, transform_indices = @transform_1, window_bounds = array<i64: 64, 32>}, {pipeline_mode = #tpu.pipeline_mode<synchronous>, transform_indices = @transform_2, window_bounds = array<i64: 1, 32>}, {pipeline_mode = #tpu.pipeline_mode<synchronous>, transform_indices = @transform_3, window_bounds = array<i64: 512, 64>}, {pipeline_mode = #tpu.pipeline_mode<synchronous>, transform_indices = @transform_4, window_bounds = array<i64: 1, 64>}, {pipeline_mode = #tpu.pipeline_mode<synchronous>, transform_indices = @transform_5, window_bounds = array<i64: 576, 64>}, {pipeline_mode = #tpu.pipeline_mode<synchronous>, transform_indices = @transform_6, window_bounds = array<i64: 1, 64>}, {transform_indices = @transform_7, window_bounds = array<i64: 1, 7, 7, 64>}]} {
    %c0_i32 = arith.constant 0 : i32
    %c20_i32 = arith.constant 20 : i32
    %0 = arith.addi %c0_i32, %c20_i32 : i32
    %c1_i32 = arith.constant 1 : i32
    scf.for %arg11 = %c0_i32 to %0 step %c1_i32  : i32 {
      %cst = arith.constant 0.000000e+00 : f32
      %3 = vector.broadcast %cst : f32 to vector<10x32xf32>
      %cst_7 = arith.constant 0.000000e+00 : f32
      %4 = vector.broadcast %cst_7 : f32 to vector<10x32xf32>
      %c0 = arith.constant 0 : index
      %c0_8 = arith.constant 0 : index
      %5 = vector.load %arg2[%c0, %c0_8] : memref<64x32xbf16, #tpu.memory_space<vmem>>, vector<16x32xbf16>
      %c0_i32_9 = arith.constant 0 : i32
      %6 = arith.addi %arg11, %c0_i32_9 : i32
      %c0_10 = arith.constant 0 : index
      %7 = arith.index_cast %6 : i32 to index
      %c0_11 = arith.constant 0 : index
      %c0_12 = arith.constant 0 : index
      %c0_13 = arith.constant 0 : index
      %8 = vector.load %arg1[%c0_10, %7, %c0_11, %c0_12, %c0_13] : memref<1x21x2x11x16xbf16, #tpu.memory_space<vmem>>, vector<1x1x1x10x16xbf16>
      %9 = vector.shape_cast %8 : vector<1x1x1x10x16xbf16> to vector<10x16xbf16>
      %c0_i32_14 = arith.constant 0 : i32
      %10 = arith.addi %arg11, %c0_i32_14 : i32
      %c0_15 = arith.constant 0 : index
      %11 = arith.index_cast %10 : i32 to index
      %c1 = arith.constant 1 : index
      %c0_16 = arith.constant 0 : index
      %c0_17 = arith.constant 0 : index
      %12 = vector.load %arg1[%c0_15, %11, %c1, %c0_16, %c0_17] : memref<1x21x2x11x16xbf16, #tpu.memory_space<vmem>>, vector<1x1x1x10x16xbf16>
      %13 = vector.shape_cast %12 : vector<1x1x1x10x16xbf16> to vector<10x16xbf16>
      %cst_18 = arith.constant dense<0.000000e+00> : vector<10x32xf32>
      %14 = tpu.matmul %9, %5, %cst_18 {dimension_numbers = #tpu.dot_dimension_numbers<[1], [0], [0], [1], [0, 0, 1, 1], [], []>} : vector<10x16xbf16>, vector<16x32xbf16>, vector<10x32xf32> -> vector<10x32xf32>
      %15 = arith.addf %3, %14 : vector<10x32xf32>
      %cst_19 = arith.constant dense<0.000000e+00> : vector<10x32xf32>
      %16 = tpu.matmul %13, %5, %cst_19 {dimension_numbers = #tpu.dot_dimension_numbers<[1], [0], [0], [1], [0, 0, 1, 1], [], []>} : vector<10x16xbf16>, vector<16x32xbf16>, vector<10x32xf32> -> vector<10x32xf32>
      %17 = arith.addf %4, %16 : vector<10x32xf32>
      %c16 = arith.constant 16 : index
      %c0_20 = arith.constant 0 : index
      %18 = vector.load %arg2[%c16, %c0_20] : memref<64x32xbf16, #tpu.memory_space<vmem>>, vector<16x32xbf16>
      %c0_i32_21 = arith.constant 0 : i32
      %19 = arith.addi %arg11, %c0_i32_21 : i32
      %c0_22 = arith.constant 0 : index
      %20 = arith.index_cast %19 : i32 to index
      %c1_23 = arith.constant 1 : index
      %c0_24 = arith.constant 0 : index
      %c0_25 = arith.constant 0 : index
      %21 = vector.load %arg1[%c0_22, %20, %c1_23, %c0_24, %c0_25] : memref<1x21x2x11x16xbf16, #tpu.memory_space<vmem>>, vector<1x1x1x10x16xbf16>
      %22 = vector.shape_cast %21 : vector<1x1x1x10x16xbf16> to vector<10x16xbf16>
      %c0_i32_26 = arith.constant 0 : i32
      %23 = arith.addi %arg11, %c0_i32_26 : i32
      %c0_27 = arith.constant 0 : index
      %24 = arith.index_cast %23 : i32 to index
      %c0_28 = arith.constant 0 : index
      %c1_29 = arith.constant 1 : index
      %c0_30 = arith.constant 0 : index
      %25 = vector.load %arg1[%c0_27, %24, %c0_28, %c1_29, %c0_30] : memref<1x21x2x11x16xbf16, #tpu.memory_space<vmem>>, vector<1x1x1x10x16xbf16>
      %26 = vector.shape_cast %25 : vector<1x1x1x10x16xbf16> to vector<10x16xbf16>
      %cst_31 = arith.constant dense<0.000000e+00> : vector<10x32xf32>
      %27 = tpu.matmul %22, %18, %cst_31 {dimension_numbers = #tpu.dot_dimension_numbers<[1], [0], [0], [1], [0, 0, 1, 1], [], []>} : vector<10x16xbf16>, vector<16x32xbf16>, vector<10x32xf32> -> vector<10x32xf32>
      %28 = arith.addf %15, %27 : vector<10x32xf32>
      %cst_32 = arith.constant dense<0.000000e+00> : vector<10x32xf32>
      %29 = tpu.matmul %26, %18, %cst_32 {dimension_numbers = #tpu.dot_dimension_numbers<[1], [0], [0], [1], [0, 0, 1, 1], [], []>} : vector<10x16xbf16>, vector<16x32xbf16>, vector<10x32xf32> -> vector<10x32xf32>
      %30 = arith.addf %17, %29 : vector<10x32xf32>
      %c32 = arith.constant 32 : index
      %c0_33 = arith.constant 0 : index
      %31 = vector.load %arg2[%c32, %c0_33] : memref<64x32xbf16, #tpu.memory_space<vmem>>, vector<16x32xbf16>
      %c1_i32_34 = arith.constant 1 : i32
      %32 = arith.addi %arg11, %c1_i32_34 : i32
      %c0_35 = arith.constant 0 : index
      %33 = arith.index_cast %32 : i32 to index
      %c0_36 = arith.constant 0 : index
      %c0_37 = arith.constant 0 : index
      %c0_38 = arith.constant 0 : index
      %34 = vector.load %arg1[%c0_35, %33, %c0_36, %c0_37, %c0_38] : memref<1x21x2x11x16xbf16, #tpu.memory_space<vmem>>, vector<1x1x1x10x16xbf16>
      %35 = vector.shape_cast %34 : vector<1x1x1x10x16xbf16> to vector<10x16xbf16>
      %c1_i32_39 = arith.constant 1 : i32
      %36 = arith.addi %arg11, %c1_i32_39 : i32
      %c0_40 = arith.constant 0 : index
      %37 = arith.index_cast %36 : i32 to index
      %c1_41 = arith.constant 1 : index
      %c0_42 = arith.constant 0 : index
      %c0_43 = arith.constant 0 : index
      %38 = vector.load %arg1[%c0_40, %37, %c1_41, %c0_42, %c0_43] : memref<1x21x2x11x16xbf16, #tpu.memory_space<vmem>>, vector<1x1x1x10x16xbf16>
      %39 = vector.shape_cast %38 : vector<1x1x1x10x16xbf16> to vector<10x16xbf16>
      %cst_44 = arith.constant dense<0.000000e+00> : vector<10x32xf32>
      %40 = tpu.matmul %35, %31, %cst_44 {dimension_numbers = #tpu.dot_dimension_numbers<[1], [0], [0], [1], [0, 0, 1, 1], [], []>} : vector<10x16xbf16>, vector<16x32xbf16>, vector<10x32xf32> -> vector<10x32xf32>
      %41 = arith.addf %28, %40 : vector<10x32xf32>
      %cst_45 = arith.constant dense<0.000000e+00> : vector<10x32xf32>
      %42 = tpu.matmul %39, %31, %cst_45 {dimension_numbers = #tpu.dot_dimension_numbers<[1], [0], [0], [1], [0, 0, 1, 1], [], []>} : vector<10x16xbf16>, vector<16x32xbf16>, vector<10x32xf32> -> vector<10x32xf32>
      %43 = arith.addf %30, %42 : vector<10x32xf32>
      %c48 = arith.constant 48 : index
      %c0_46 = arith.constant 0 : index
      %44 = vector.load %arg2[%c48, %c0_46] : memref<64x32xbf16, #tpu.memory_space<vmem>>, vector<16x32xbf16>
      %c1_i32_47 = arith.constant 1 : i32
      %45 = arith.addi %arg11, %c1_i32_47 : i32
      %c0_48 = arith.constant 0 : index
      %46 = arith.index_cast %45 : i32 to index
      %c1_49 = arith.constant 1 : index
      %c0_50 = arith.constant 0 : index
      %c0_51 = arith.constant 0 : index
      %47 = vector.load %arg1[%c0_48, %46, %c1_49, %c0_50, %c0_51] : memref<1x21x2x11x16xbf16, #tpu.memory_space<vmem>>, vector<1x1x1x10x16xbf16>
      %48 = vector.shape_cast %47 : vector<1x1x1x10x16xbf16> to vector<10x16xbf16>
      %c1_i32_52 = arith.constant 1 : i32
      %49 = arith.addi %arg11, %c1_i32_52 : i32
      %c0_53 = arith.constant 0 : index
      %50 = arith.index_cast %49 : i32 to index
      %c0_54 = arith.constant 0 : index
      %c1_55 = arith.constant 1 : index
      %c0_56 = arith.constant 0 : index
      %51 = vector.load %arg1[%c0_53, %50, %c0_54, %c1_55, %c0_56] : memref<1x21x2x11x16xbf16, #tpu.memory_space<vmem>>, vector<1x1x1x10x16xbf16>
      %52 = vector.shape_cast %51 : vector<1x1x1x10x16xbf16> to vector<10x16xbf16>
      %cst_57 = arith.constant dense<0.000000e+00> : vector<10x32xf32>
      %53 = tpu.matmul %48, %44, %cst_57 {dimension_numbers = #tpu.dot_dimension_numbers<[1], [0], [0], [1], [0, 0, 1, 1], [], []>} : vector<10x16xbf16>, vector<16x32xbf16>, vector<10x32xf32> -> vector<10x32xf32>
      %54 = arith.addf %41, %53 : vector<10x32xf32>
      %cst_58 = arith.constant dense<0.000000e+00> : vector<10x32xf32>
      %55 = tpu.matmul %52, %44, %cst_58 {dimension_numbers = #tpu.dot_dimension_numbers<[1], [0], [0], [1], [0, 0, 1, 1], [], []>} : vector<10x16xbf16>, vector<16x32xbf16>, vector<10x32xf32> -> vector<10x32xf32>
      %56 = arith.addf %43, %55 : vector<10x32xf32>
      %c0_59 = arith.constant 0 : index
      %c0_60 = arith.constant 0 : index
      %57 = vector.load %arg3[%c0_59, %c0_60] : memref<1x32xf32, #tpu.memory_space<vmem>>, vector<1x32xf32>
      %58 = vector.broadcast %57 : vector<1x32xf32> to vector<10x32xf32>
      %59 = arith.addf %54, %58 : vector<10x32xf32>
      %cst_61 = arith.constant 0.000000e+00 : f32
      %60 = vector.broadcast %cst_61 : f32 to vector<10x32xf32>
      %61 = arith.maximumf %59, %60 : vector<10x32xf32>
      %62 = arith.truncf %61 : vector<10x32xf32> to vector<10x32xbf16>
      %63 = arith.index_cast %arg11 : i32 to index
      %c0_62 = arith.constant 0 : index
      %c0_63 = arith.constant 0 : index
      %c0_64 = arith.constant 0 : index
      %64 = vector.load %arg9[%63, %c0_62, %c0_63, %c0_64] : memref<20x2x10x32xbf16, #tpu.memory_space<vmem>>, vector<1x1x10x32xbf16>
      %65 = vector.shape_cast %64 : vector<1x1x10x32xbf16> to vector<10x32xbf16>
      %66 = vector.shape_cast %62 : vector<10x32xbf16> to vector<1x1x10x32xbf16>
      tpu.vector_store %arg9[%63, %c0_62, %c0_63, %c0_64], %66 {strides = array<i32>} : memref<20x2x10x32xbf16, #tpu.memory_space<vmem>>, vector<1x1x10x32xbf16>,
      %67 = vector.broadcast %57 : vector<1x32xf32> to vector<10x32xf32>
      %68 = arith.addf %56, %67 : vector<10x32xf32>
      %cst_65 = arith.constant 0.000000e+00 : f32
      %69 = vector.broadcast %cst_65 : f32 to vector<10x32xf32>
      %70 = arith.maximumf %68, %69 : vector<10x32xf32>
      %71 = arith.truncf %70 : vector<10x32xf32> to vector<10x32xbf16>
      %72 = arith.index_cast %arg11 : i32 to index
      %c1_66 = arith.constant 1 : index
      %c0_67 = arith.constant 0 : index
      %c0_68 = arith.constant 0 : index
      %73 = vector.load %arg9[%72, %c1_66, %c0_67, %c0_68] : memref<20x2x10x32xbf16, #tpu.memory_space<vmem>>, vector<1x1x10x32xbf16>
      %74 = vector.shape_cast %73 : vector<1x1x10x32xbf16> to vector<10x32xbf16>
      %75 = vector.shape_cast %71 : vector<10x32xbf16> to vector<1x1x10x32xbf16>
      tpu.vector_store %arg9[%72, %c1_66, %c0_67, %c0_68], %75 {strides = array<i32>} : memref<20x2x10x32xbf16, #tpu.memory_space<vmem>>, vector<1x1x10x32xbf16>,
    }
    %c20_i32_0 = arith.constant 20 : i32
    %c0_i32_1 = arith.constant 0 : i32
    %c9_i32 = arith.constant 9 : i32
    %1 = arith.addi %c0_i32_1, %c9_i32 : i32
    %c1_i32_2 = arith.constant 1 : i32
    scf.for %arg11 = %c0_i32_1 to %1 step %c1_i32_2  : i32 {
      %cst = arith.constant 0.000000e+00 : f32
      %3 = vector.broadcast %cst : f32 to vector<9x64xf32>
      %c0 = arith.constant 0 : index
      %c0_7 = arith.constant 0 : index
      %4 = vector.load %arg4[%c0, %c0_7] : memref<512x64xbf16, #tpu.memory_space<vmem>>, vector<32x64xbf16>
      %c2_i32 = arith.constant 2 : i32
      %5 = arith.muli %c2_i32, %arg11 : i32
      %c0_i32_8 = arith.constant 0 : i32
      %6 = arith.addi %5, %c0_i32_8 : i32
      %7 = arith.index_cast %6 : i32 to index
      %c0_9 = arith.constant 0 : index
      %c0_10 = arith.constant 0 : index
      %c0_11 = arith.constant 0 : index
      %8 = vector.load %arg9[%7, %c0_9, %c0_10, %c0_11] : memref<20x2x10x32xbf16, #tpu.memory_space<vmem>>, vector<1x1x9x32xbf16>
      %9 = vector.shape_cast %8 : vector<1x1x9x32xbf16> to vector<9x32xbf16>
      %cst_12 = arith.constant dense<0.000000e+00> : vector<9x64xf32>
      %10 = tpu.matmul %9, %4, %cst_12 {dimension_numbers = #tpu.dot_dimension_numbers<[1], [0], [0], [1], [0, 0, 1, 1], [], []>} : vector<9x32xbf16>, vector<32x64xbf16>, vector<9x64xf32> -> vector<9x64xf32>
      %11 = arith.addf %3, %10 : vector<9x64xf32>
      %c32 = arith.constant 32 : index
      %c0_13 = arith.constant 0 : index
      %12 = vector.load %arg4[%c32, %c0_13] : memref<512x64xbf16, #tpu.memory_space<vmem>>, vector<32x64xbf16>
      %c2_i32_14 = arith.constant 2 : i32
      %13 = arith.muli %c2_i32_14, %arg11 : i32
      %c0_i32_15 = arith.constant 0 : i32
      %14 = arith.addi %13, %c0_i32_15 : i32
      %15 = arith.index_cast %14 : i32 to index
      %c1 = arith.constant 1 : index
      %c0_16 = arith.constant 0 : index
      %c0_17 = arith.constant 0 : index
      %16 = vector.load %arg9[%15, %c1, %c0_16, %c0_17] : memref<20x2x10x32xbf16, #tpu.memory_space<vmem>>, vector<1x1x9x32xbf16>
      %17 = vector.shape_cast %16 : vector<1x1x9x32xbf16> to vector<9x32xbf16>
      %cst_18 = arith.constant dense<0.000000e+00> : vector<9x64xf32>
      %18 = tpu.matmul %17, %12, %cst_18 {dimension_numbers = #tpu.dot_dimension_numbers<[1], [0], [0], [1], [0, 0, 1, 1], [], []>} : vector<9x32xbf16>, vector<32x64xbf16>, vector<9x64xf32> -> vector<9x64xf32>
      %19 = arith.addf %11, %18 : vector<9x64xf32>
      %c64 = arith.constant 64 : index
      %c0_19 = arith.constant 0 : index
      %20 = vector.load %arg4[%c64, %c0_19] : memref<512x64xbf16, #tpu.memory_space<vmem>>, vector<32x64xbf16>
      %c2_i32_20 = arith.constant 2 : i32
      %21 = arith.muli %c2_i32_20, %arg11 : i32
      %c0_i32_21 = arith.constant 0 : i32
      %22 = arith.addi %21, %c0_i32_21 : i32
      %23 = arith.index_cast %22 : i32 to index
      %c0_22 = arith.constant 0 : index
      %c1_23 = arith.constant 1 : index
      %c0_24 = arith.constant 0 : index
      %24 = vector.load %arg9[%23, %c0_22, %c1_23, %c0_24] : memref<20x2x10x32xbf16, #tpu.memory_space<vmem>>, vector<1x1x9x32xbf16>
      %25 = vector.shape_cast %24 : vector<1x1x9x32xbf16> to vector<9x32xbf16>
      %cst_25 = arith.constant dense<0.000000e+00> : vector<9x64xf32>
      %26 = tpu.matmul %25, %20, %cst_25 {dimension_numbers = #tpu.dot_dimension_numbers<[1], [0], [0], [1], [0, 0, 1, 1], [], []>} : vector<9x32xbf16>, vector<32x64xbf16>, vector<9x64xf32> -> vector<9x64xf32>
      %27 = arith.addf %19, %26 : vector<9x64xf32>
      %c96 = arith.constant 96 : index
      %c0_26 = arith.constant 0 : index
      %28 = vector.load %arg4[%c96, %c0_26] : memref<512x64xbf16, #tpu.memory_space<vmem>>, vector<32x64xbf16>
      %c2_i32_27 = arith.constant 2 : i32
      %29 = arith.muli %c2_i32_27, %arg11 : i32
      %c0_i32_28 = arith.constant 0 : i32
      %30 = arith.addi %29, %c0_i32_28 : i32
      %31 = arith.index_cast %30 : i32 to index
      %c1_29 = arith.constant 1 : index
      %c1_30 = arith.constant 1 : index
      %c0_31 = arith.constant 0 : index
      %32 = vector.load %arg9[%31, %c1_29, %c1_30, %c0_31] : memref<20x2x10x32xbf16, #tpu.memory_space<vmem>>, vector<1x1x9x32xbf16>
      %33 = vector.shape_cast %32 : vector<1x1x9x32xbf16> to vector<9x32xbf16>
      %cst_32 = arith.constant dense<0.000000e+00> : vector<9x64xf32>
      %34 = tpu.matmul %33, %28, %cst_32 {dimension_numbers = #tpu.dot_dimension_numbers<[1], [0], [0], [1], [0, 0, 1, 1], [], []>} : vector<9x32xbf16>, vector<32x64xbf16>, vector<9x64xf32> -> vector<9x64xf32>
      %35 = arith.addf %27, %34 : vector<9x64xf32>
      %c128 = arith.constant 128 : index
      %c0_33 = arith.constant 0 : index
      %36 = vector.load %arg4[%c128, %c0_33] : memref<512x64xbf16, #tpu.memory_space<vmem>>, vector<32x64xbf16>
      %c2_i32_34 = arith.constant 2 : i32
      %37 = arith.muli %c2_i32_34, %arg11 : i32
      %c1_i32_35 = arith.constant 1 : i32
      %38 = arith.addi %37, %c1_i32_35 : i32
      %39 = arith.index_cast %38 : i32 to index
      %c0_36 = arith.constant 0 : index
      %c0_37 = arith.constant 0 : index
      %c0_38 = arith.constant 0 : index
      %40 = vector.load %arg9[%39, %c0_36, %c0_37, %c0_38] : memref<20x2x10x32xbf16, #tpu.memory_space<vmem>>, vector<1x1x9x32xbf16>
      %41 = vector.shape_cast %40 : vector<1x1x9x32xbf16> to vector<9x32xbf16>
      %cst_39 = arith.constant dense<0.000000e+00> : vector<9x64xf32>
      %42 = tpu.matmul %41, %36, %cst_39 {dimension_numbers = #tpu.dot_dimension_numbers<[1], [0], [0], [1], [0, 0, 1, 1], [], []>} : vector<9x32xbf16>, vector<32x64xbf16>, vector<9x64xf32> -> vector<9x64xf32>
      %43 = arith.addf %35, %42 : vector<9x64xf32>
      %c160 = arith.constant 160 : index
      %c0_40 = arith.constant 0 : index
      %44 = vector.load %arg4[%c160, %c0_40] : memref<512x64xbf16, #tpu.memory_space<vmem>>, vector<32x64xbf16>
      %c2_i32_41 = arith.constant 2 : i32
      %45 = arith.muli %c2_i32_41, %arg11 : i32
      %c1_i32_42 = arith.constant 1 : i32
      %46 = arith.addi %45, %c1_i32_42 : i32
      %47 = arith.index_cast %46 : i32 to index
      %c1_43 = arith.constant 1 : index
      %c0_44 = arith.constant 0 : index
      %c0_45 = arith.constant 0 : index
      %48 = vector.load %arg9[%47, %c1_43, %c0_44, %c0_45] : memref<20x2x10x32xbf16, #tpu.memory_space<vmem>>, vector<1x1x9x32xbf16>
      %49 = vector.shape_cast %48 : vector<1x1x9x32xbf16> to vector<9x32xbf16>
      %cst_46 = arith.constant dense<0.000000e+00> : vector<9x64xf32>
      %50 = tpu.matmul %49, %44, %cst_46 {dimension_numbers = #tpu.dot_dimension_numbers<[1], [0], [0], [1], [0, 0, 1, 1], [], []>} : vector<9x32xbf16>, vector<32x64xbf16>, vector<9x64xf32> -> vector<9x64xf32>
      %51 = arith.addf %43, %50 : vector<9x64xf32>
      %c192 = arith.constant 192 : index
      %c0_47 = arith.constant 0 : index
      %52 = vector.load %arg4[%c192, %c0_47] : memref<512x64xbf16, #tpu.memory_space<vmem>>, vector<32x64xbf16>
      %c2_i32_48 = arith.constant 2 : i32
      %53 = arith.muli %c2_i32_48, %arg11 : i32
      %c1_i32_49 = arith.constant 1 : i32
      %54 = arith.addi %53, %c1_i32_49 : i32
      %55 = arith.index_cast %54 : i32 to index
      %c0_50 = arith.constant 0 : index
      %c1_51 = arith.constant 1 : index
      %c0_52 = arith.constant 0 : index
      %56 = vector.load %arg9[%55, %c0_50, %c1_51, %c0_52] : memref<20x2x10x32xbf16, #tpu.memory_space<vmem>>, vector<1x1x9x32xbf16>
      %57 = vector.shape_cast %56 : vector<1x1x9x32xbf16> to vector<9x32xbf16>
      %cst_53 = arith.constant dense<0.000000e+00> : vector<9x64xf32>
      %58 = tpu.matmul %57, %52, %cst_53 {dimension_numbers = #tpu.dot_dimension_numbers<[1], [0], [0], [1], [0, 0, 1, 1], [], []>} : vector<9x32xbf16>, vector<32x64xbf16>, vector<9x64xf32> -> vector<9x64xf32>
      %59 = arith.addf %51, %58 : vector<9x64xf32>
      %c224 = arith.constant 224 : index
      %c0_54 = arith.constant 0 : index
      %60 = vector.load %arg4[%c224, %c0_54] : memref<512x64xbf16, #tpu.memory_space<vmem>>, vector<32x64xbf16>
      %c2_i32_55 = arith.constant 2 : i32
      %61 = arith.muli %c2_i32_55, %arg11 : i32
      %c1_i32_56 = arith.constant 1 : i32
      %62 = arith.addi %61, %c1_i32_56 : i32
      %63 = arith.index_cast %62 : i32 to index
      %c1_57 = arith.constant 1 : index
      %c1_58 = arith.constant 1 : index
      %c0_59 = arith.constant 0 : index
      %64 = vector.load %arg9[%63, %c1_57, %c1_58, %c0_59] : memref<20x2x10x32xbf16, #tpu.memory_space<vmem>>, vector<1x1x9x32xbf16>
      %65 = vector.shape_cast %64 : vector<1x1x9x32xbf16> to vector<9x32xbf16>
      %cst_60 = arith.constant dense<0.000000e+00> : vector<9x64xf32>
      %66 = tpu.matmul %65, %60, %cst_60 {dimension_numbers = #tpu.dot_dimension_numbers<[1], [0], [0], [1], [0, 0, 1, 1], [], []>} : vector<9x32xbf16>, vector<32x64xbf16>, vector<9x64xf32> -> vector<9x64xf32>
      %67 = arith.addf %59, %66 : vector<9x64xf32>
      %c256 = arith.constant 256 : index
      %c0_61 = arith.constant 0 : index
      %68 = vector.load %arg4[%c256, %c0_61] : memref<512x64xbf16, #tpu.memory_space<vmem>>, vector<32x64xbf16>
      %c2_i32_62 = arith.constant 2 : i32
      %69 = arith.muli %c2_i32_62, %arg11 : i32
      %c2_i32_63 = arith.constant 2 : i32
      %70 = arith.addi %69, %c2_i32_63 : i32
      %71 = arith.index_cast %70 : i32 to index
      %c0_64 = arith.constant 0 : index
      %c0_65 = arith.constant 0 : index
      %c0_66 = arith.constant 0 : index
      %72 = vector.load %arg9[%71, %c0_64, %c0_65, %c0_66] : memref<20x2x10x32xbf16, #tpu.memory_space<vmem>>, vector<1x1x9x32xbf16>
      %73 = vector.shape_cast %72 : vector<1x1x9x32xbf16> to vector<9x32xbf16>
      %cst_67 = arith.constant dense<0.000000e+00> : vector<9x64xf32>
      %74 = tpu.matmul %73, %68, %cst_67 {dimension_numbers = #tpu.dot_dimension_numbers<[1], [0], [0], [1], [0, 0, 1, 1], [], []>} : vector<9x32xbf16>, vector<32x64xbf16>, vector<9x64xf32> -> vector<9x64xf32>
      %75 = arith.addf %67, %74 : vector<9x64xf32>
      %c288 = arith.constant 288 : index
      %c0_68 = arith.constant 0 : index
      %76 = vector.load %arg4[%c288, %c0_68] : memref<512x64xbf16, #tpu.memory_space<vmem>>, vector<32x64xbf16>
      %c2_i32_69 = arith.constant 2 : i32
      %77 = arith.muli %c2_i32_69, %arg11 : i32
      %c2_i32_70 = arith.constant 2 : i32
      %78 = arith.addi %77, %c2_i32_70 : i32
      %79 = arith.index_cast %78 : i32 to index
      %c1_71 = arith.constant 1 : index
      %c0_72 = arith.constant 0 : index
      %c0_73 = arith.constant 0 : index
      %80 = vector.load %arg9[%79, %c1_71, %c0_72, %c0_73] : memref<20x2x10x32xbf16, #tpu.memory_space<vmem>>, vector<1x1x9x32xbf16>
      %81 = vector.shape_cast %80 : vector<1x1x9x32xbf16> to vector<9x32xbf16>
      %cst_74 = arith.constant dense<0.000000e+00> : vector<9x64xf32>
      %82 = tpu.matmul %81, %76, %cst_74 {dimension_numbers = #tpu.dot_dimension_numbers<[1], [0], [0], [1], [0, 0, 1, 1], [], []>} : vector<9x32xbf16>, vector<32x64xbf16>, vector<9x64xf32> -> vector<9x64xf32>
      %83 = arith.addf %75, %82 : vector<9x64xf32>
      %c320 = arith.constant 320 : index
      %c0_75 = arith.constant 0 : index
      %84 = vector.load %arg4[%c320, %c0_75] : memref<512x64xbf16, #tpu.memory_space<vmem>>, vector<32x64xbf16>
      %c2_i32_76 = arith.constant 2 : i32
      %85 = arith.muli %c2_i32_76, %arg11 : i32
      %c2_i32_77 = arith.constant 2 : i32
      %86 = arith.addi %85, %c2_i32_77 : i32
      %87 = arith.index_cast %86 : i32 to index
      %c0_78 = arith.constant 0 : index
      %c1_79 = arith.constant 1 : index
      %c0_80 = arith.constant 0 : index
      %88 = vector.load %arg9[%87, %c0_78, %c1_79, %c0_80] : memref<20x2x10x32xbf16, #tpu.memory_space<vmem>>, vector<1x1x9x32xbf16>
      %89 = vector.shape_cast %88 : vector<1x1x9x32xbf16> to vector<9x32xbf16>
      %cst_81 = arith.constant dense<0.000000e+00> : vector<9x64xf32>
      %90 = tpu.matmul %89, %84, %cst_81 {dimension_numbers = #tpu.dot_dimension_numbers<[1], [0], [0], [1], [0, 0, 1, 1], [], []>} : vector<9x32xbf16>, vector<32x64xbf16>, vector<9x64xf32> -> vector<9x64xf32>
      %91 = arith.addf %83, %90 : vector<9x64xf32>
      %c352 = arith.constant 352 : index
      %c0_82 = arith.constant 0 : index
      %92 = vector.load %arg4[%c352, %c0_82] : memref<512x64xbf16, #tpu.memory_space<vmem>>, vector<32x64xbf16>
      %c2_i32_83 = arith.constant 2 : i32
      %93 = arith.muli %c2_i32_83, %arg11 : i32
      %c2_i32_84 = arith.constant 2 : i32
      %94 = arith.addi %93, %c2_i32_84 : i32
      %95 = arith.index_cast %94 : i32 to index
      %c1_85 = arith.constant 1 : index
      %c1_86 = arith.constant 1 : index
      %c0_87 = arith.constant 0 : index
      %96 = vector.load %arg9[%95, %c1_85, %c1_86, %c0_87] : memref<20x2x10x32xbf16, #tpu.memory_space<vmem>>, vector<1x1x9x32xbf16>
      %97 = vector.shape_cast %96 : vector<1x1x9x32xbf16> to vector<9x32xbf16>
      %cst_88 = arith.constant dense<0.000000e+00> : vector<9x64xf32>
      %98 = tpu.matmul %97, %92, %cst_88 {dimension_numbers = #tpu.dot_dimension_numbers<[1], [0], [0], [1], [0, 0, 1, 1], [], []>} : vector<9x32xbf16>, vector<32x64xbf16>, vector<9x64xf32> -> vector<9x64xf32>
      %99 = arith.addf %91, %98 : vector<9x64xf32>
      %c384 = arith.constant 384 : index
      %c0_89 = arith.constant 0 : index
      %100 = vector.load %arg4[%c384, %c0_89] : memref<512x64xbf16, #tpu.memory_space<vmem>>, vector<32x64xbf16>
      %c2_i32_90 = arith.constant 2 : i32
      %101 = arith.muli %c2_i32_90, %arg11 : i32
      %c3_i32 = arith.constant 3 : i32
      %102 = arith.addi %101, %c3_i32 : i32
      %103 = arith.index_cast %102 : i32 to index
      %c0_91 = arith.constant 0 : index
      %c0_92 = arith.constant 0 : index
      %c0_93 = arith.constant 0 : index
      %104 = vector.load %arg9[%103, %c0_91, %c0_92, %c0_93] : memref<20x2x10x32xbf16, #tpu.memory_space<vmem>>, vector<1x1x9x32xbf16>
      %105 = vector.shape_cast %104 : vector<1x1x9x32xbf16> to vector<9x32xbf16>
      %cst_94 = arith.constant dense<0.000000e+00> : vector<9x64xf32>
      %106 = tpu.matmul %105, %100, %cst_94 {dimension_numbers = #tpu.dot_dimension_numbers<[1], [0], [0], [1], [0, 0, 1, 1], [], []>} : vector<9x32xbf16>, vector<32x64xbf16>, vector<9x64xf32> -> vector<9x64xf32>
      %107 = arith.addf %99, %106 : vector<9x64xf32>
      %c416 = arith.constant 416 : index
      %c0_95 = arith.constant 0 : index
      %108 = vector.load %arg4[%c416, %c0_95] : memref<512x64xbf16, #tpu.memory_space<vmem>>, vector<32x64xbf16>
      %c2_i32_96 = arith.constant 2 : i32
      %109 = arith.muli %c2_i32_96, %arg11 : i32
      %c3_i32_97 = arith.constant 3 : i32
      %110 = arith.addi %109, %c3_i32_97 : i32
      %111 = arith.index_cast %110 : i32 to index
      %c1_98 = arith.constant 1 : index
      %c0_99 = arith.constant 0 : index
      %c0_100 = arith.constant 0 : index
      %112 = vector.load %arg9[%111, %c1_98, %c0_99, %c0_100] : memref<20x2x10x32xbf16, #tpu.memory_space<vmem>>, vector<1x1x9x32xbf16>
      %113 = vector.shape_cast %112 : vector<1x1x9x32xbf16> to vector<9x32xbf16>
      %cst_101 = arith.constant dense<0.000000e+00> : vector<9x64xf32>
      %114 = tpu.matmul %113, %108, %cst_101 {dimension_numbers = #tpu.dot_dimension_numbers<[1], [0], [0], [1], [0, 0, 1, 1], [], []>} : vector<9x32xbf16>, vector<32x64xbf16>, vector<9x64xf32> -> vector<9x64xf32>
      %115 = arith.addf %107, %114 : vector<9x64xf32>
      %c448 = arith.constant 448 : index
      %c0_102 = arith.constant 0 : index
      %116 = vector.load %arg4[%c448, %c0_102] : memref<512x64xbf16, #tpu.memory_space<vmem>>, vector<32x64xbf16>
      %c2_i32_103 = arith.constant 2 : i32
      %117 = arith.muli %c2_i32_103, %arg11 : i32
      %c3_i32_104 = arith.constant 3 : i32
      %118 = arith.addi %117, %c3_i32_104 : i32
      %119 = arith.index_cast %118 : i32 to index
      %c0_105 = arith.constant 0 : index
      %c1_106 = arith.constant 1 : index
      %c0_107 = arith.constant 0 : index
      %120 = vector.load %arg9[%119, %c0_105, %c1_106, %c0_107] : memref<20x2x10x32xbf16, #tpu.memory_space<vmem>>, vector<1x1x9x32xbf16>
      %121 = vector.shape_cast %120 : vector<1x1x9x32xbf16> to vector<9x32xbf16>
      %cst_108 = arith.constant dense<0.000000e+00> : vector<9x64xf32>
      %122 = tpu.matmul %121, %116, %cst_108 {dimension_numbers = #tpu.dot_dimension_numbers<[1], [0], [0], [1], [0, 0, 1, 1], [], []>} : vector<9x32xbf16>, vector<32x64xbf16>, vector<9x64xf32> -> vector<9x64xf32>
      %123 = arith.addf %115, %122 : vector<9x64xf32>
      %c480 = arith.constant 480 : index
      %c0_109 = arith.constant 0 : index
      %124 = vector.load %arg4[%c480, %c0_109] : memref<512x64xbf16, #tpu.memory_space<vmem>>, vector<32x64xbf16>
      %c2_i32_110 = arith.constant 2 : i32
      %125 = arith.muli %c2_i32_110, %arg11 : i32
      %c3_i32_111 = arith.constant 3 : i32
      %126 = arith.addi %125, %c3_i32_111 : i32
      %127 = arith.index_cast %126 : i32 to index
      %c1_112 = arith.constant 1 : index
      %c1_113 = arith.constant 1 : index
      %c0_114 = arith.constant 0 : index
      %128 = vector.load %arg9[%127, %c1_112, %c1_113, %c0_114] : memref<20x2x10x32xbf16, #tpu.memory_space<vmem>>, vector<1x1x9x32xbf16>
      %129 = vector.shape_cast %128 : vector<1x1x9x32xbf16> to vector<9x32xbf16>
      %cst_115 = arith.constant dense<0.000000e+00> : vector<9x64xf32>
      %130 = tpu.matmul %129, %124, %cst_115 {dimension_numbers = #tpu.dot_dimension_numbers<[1], [0], [0], [1], [0, 0, 1, 1], [], []>} : vector<9x32xbf16>, vector<32x64xbf16>, vector<9x64xf32> -> vector<9x64xf32>
      %131 = arith.addf %123, %130 : vector<9x64xf32>
      %c0_116 = arith.constant 0 : index
      %c0_117 = arith.constant 0 : index
      %132 = vector.load %arg5[%c0_116, %c0_117] : memref<1x64xf32, #tpu.memory_space<vmem>>, vector<1x64xf32>
      %133 = vector.broadcast %132 : vector<1x64xf32> to vector<9x64xf32>
      %134 = arith.addf %131, %133 : vector<9x64xf32>
      %cst_118 = arith.constant 0.000000e+00 : f32
      %135 = vector.broadcast %cst_118 : f32 to vector<9x64xf32>
      %136 = arith.maximumf %134, %135 : vector<9x64xf32>
      %137 = arith.truncf %136 : vector<9x64xf32> to vector<9x64xbf16>
      %138 = arith.index_cast %arg11 : i32 to index
      %c0_119 = arith.constant 0 : index
      %c0_120 = arith.constant 0 : index
      %139 = vector.load %arg10[%138, %c0_119, %c0_120] : memref<9x9x64xbf16, #tpu.memory_space<vmem>>, vector<1x9x64xbf16>
      %140 = vector.shape_cast %139 : vector<1x9x64xbf16> to vector<9x64xbf16>
      %141 = vector.shape_cast %137 : vector<9x64xbf16> to vector<1x9x64xbf16>
      tpu.vector_store %arg10[%138, %c0_119, %c0_120], %141 {strides = array<i32>} : memref<9x9x64xbf16, #tpu.memory_space<vmem>>, vector<1x9x64xbf16>,
    }
    %c9_i32_3 = arith.constant 9 : i32
    %c0_i32_4 = arith.constant 0 : i32
    %c7_i32 = arith.constant 7 : i32
    %2 = arith.addi %c0_i32_4, %c7_i32 : i32
    %c1_i32_5 = arith.constant 1 : i32
    scf.for %arg11 = %c0_i32_4 to %2 step %c1_i32_5  : i32 {
      %cst = arith.constant 0.000000e+00 : f32
      %3 = vector.broadcast %cst : f32 to vector<7x64xf32>
      %c0 = arith.constant 0 : index
      %c0_7 = arith.constant 0 : index
      %4 = vector.load %arg6[%c0, %c0_7] : memref<576x64xbf16, #tpu.memory_space<vmem>>, vector<64x64xbf16>
      %c0_i32_8 = arith.constant 0 : i32
      %5 = arith.addi %arg11, %c0_i32_8 : i32
      %6 = arith.index_cast %5 : i32 to index
      %c0_9 = arith.constant 0 : index
      %c0_10 = arith.constant 0 : index
      %7 = vector.load %arg10[%6, %c0_9, %c0_10] : memref<9x9x64xbf16, #tpu.memory_space<vmem>>, vector<1x7x64xbf16>
      %8 = vector.shape_cast %7 : vector<1x7x64xbf16> to vector<7x64xbf16>
      %cst_11 = arith.constant dense<0.000000e+00> : vector<7x64xf32>
      %9 = tpu.matmul %8, %4, %cst_11 {dimension_numbers = #tpu.dot_dimension_numbers<[1], [0], [0], [1], [0, 0, 1, 1], [], []>} : vector<7x64xbf16>, vector<64x64xbf16>, vector<7x64xf32> -> vector<7x64xf32>
      %10 = arith.addf %3, %9 : vector<7x64xf32>
      %c64 = arith.constant 64 : index
      %c0_12 = arith.constant 0 : index
      %11 = vector.load %arg6[%c64, %c0_12] : memref<576x64xbf16, #tpu.memory_space<vmem>>, vector<64x64xbf16>
      %c0_i32_13 = arith.constant 0 : i32
      %12 = arith.addi %arg11, %c0_i32_13 : i32
      %13 = arith.index_cast %12 : i32 to index
      %c1 = arith.constant 1 : index
      %c0_14 = arith.constant 0 : index
      %14 = vector.load %arg10[%13, %c1, %c0_14] : memref<9x9x64xbf16, #tpu.memory_space<vmem>>, vector<1x7x64xbf16>
      %15 = vector.shape_cast %14 : vector<1x7x64xbf16> to vector<7x64xbf16>
      %cst_15 = arith.constant dense<0.000000e+00> : vector<7x64xf32>
      %16 = tpu.matmul %15, %11, %cst_15 {dimension_numbers = #tpu.dot_dimension_numbers<[1], [0], [0], [1], [0, 0, 1, 1], [], []>} : vector<7x64xbf16>, vector<64x64xbf16>, vector<7x64xf32> -> vector<7x64xf32>
      %17 = arith.addf %10, %16 : vector<7x64xf32>
      %c128 = arith.constant 128 : index
      %c0_16 = arith.constant 0 : index
      %18 = vector.load %arg6[%c128, %c0_16] : memref<576x64xbf16, #tpu.memory_space<vmem>>, vector<64x64xbf16>
      %c0_i32_17 = arith.constant 0 : i32
      %19 = arith.addi %arg11, %c0_i32_17 : i32
      %20 = arith.index_cast %19 : i32 to index
      %c2 = arith.constant 2 : index
      %c0_18 = arith.constant 0 : index
      %21 = vector.load %arg10[%20, %c2, %c0_18] : memref<9x9x64xbf16, #tpu.memory_space<vmem>>, vector<1x7x64xbf16>
      %22 = vector.shape_cast %21 : vector<1x7x64xbf16> to vector<7x64xbf16>
      %cst_19 = arith.constant dense<0.000000e+00> : vector<7x64xf32>
      %23 = tpu.matmul %22, %18, %cst_19 {dimension_numbers = #tpu.dot_dimension_numbers<[1], [0], [0], [1], [0, 0, 1, 1], [], []>} : vector<7x64xbf16>, vector<64x64xbf16>, vector<7x64xf32> -> vector<7x64xf32>
      %24 = arith.addf %17, %23 : vector<7x64xf32>
      %c192 = arith.constant 192 : index
      %c0_20 = arith.constant 0 : index
      %25 = vector.load %arg6[%c192, %c0_20] : memref<576x64xbf16, #tpu.memory_space<vmem>>, vector<64x64xbf16>
      %c1_i32_21 = arith.constant 1 : i32
      %26 = arith.addi %arg11, %c1_i32_21 : i32
      %27 = arith.index_cast %26 : i32 to index
      %c0_22 = arith.constant 0 : index
      %c0_23 = arith.constant 0 : index
      %28 = vector.load %arg10[%27, %c0_22, %c0_23] : memref<9x9x64xbf16, #tpu.memory_space<vmem>>, vector<1x7x64xbf16>
      %29 = vector.shape_cast %28 : vector<1x7x64xbf16> to vector<7x64xbf16>
      %cst_24 = arith.constant dense<0.000000e+00> : vector<7x64xf32>
      %30 = tpu.matmul %29, %25, %cst_24 {dimension_numbers = #tpu.dot_dimension_numbers<[1], [0], [0], [1], [0, 0, 1, 1], [], []>} : vector<7x64xbf16>, vector<64x64xbf16>, vector<7x64xf32> -> vector<7x64xf32>
      %31 = arith.addf %24, %30 : vector<7x64xf32>
      %c256 = arith.constant 256 : index
      %c0_25 = arith.constant 0 : index
      %32 = vector.load %arg6[%c256, %c0_25] : memref<576x64xbf16, #tpu.memory_space<vmem>>, vector<64x64xbf16>
      %c1_i32_26 = arith.constant 1 : i32
      %33 = arith.addi %arg11, %c1_i32_26 : i32
      %34 = arith.index_cast %33 : i32 to index
      %c1_27 = arith.constant 1 : index
      %c0_28 = arith.constant 0 : index
      %35 = vector.load %arg10[%34, %c1_27, %c0_28] : memref<9x9x64xbf16, #tpu.memory_space<vmem>>, vector<1x7x64xbf16>
      %36 = vector.shape_cast %35 : vector<1x7x64xbf16> to vector<7x64xbf16>
      %cst_29 = arith.constant dense<0.000000e+00> : vector<7x64xf32>
      %37 = tpu.matmul %36, %32, %cst_29 {dimension_numbers = #tpu.dot_dimension_numbers<[1], [0], [0], [1], [0, 0, 1, 1], [], []>} : vector<7x64xbf16>, vector<64x64xbf16>, vector<7x64xf32> -> vector<7x64xf32>
      %38 = arith.addf %31, %37 : vector<7x64xf32>
      %c320 = arith.constant 320 : index
      %c0_30 = arith.constant 0 : index
      %39 = vector.load %arg6[%c320, %c0_30] : memref<576x64xbf16, #tpu.memory_space<vmem>>, vector<64x64xbf16>
      %c1_i32_31 = arith.constant 1 : i32
      %40 = arith.addi %arg11, %c1_i32_31 : i32
      %41 = arith.index_cast %40 : i32 to index
      %c2_32 = arith.constant 2 : index
      %c0_33 = arith.constant 0 : index
      %42 = vector.load %arg10[%41, %c2_32, %c0_33] : memref<9x9x64xbf16, #tpu.memory_space<vmem>>, vector<1x7x64xbf16>
      %43 = vector.shape_cast %42 : vector<1x7x64xbf16> to vector<7x64xbf16>
      %cst_34 = arith.constant dense<0.000000e+00> : vector<7x64xf32>
      %44 = tpu.matmul %43, %39, %cst_34 {dimension_numbers = #tpu.dot_dimension_numbers<[1], [0], [0], [1], [0, 0, 1, 1], [], []>} : vector<7x64xbf16>, vector<64x64xbf16>, vector<7x64xf32> -> vector<7x64xf32>
      %45 = arith.addf %38, %44 : vector<7x64xf32>
      %c384 = arith.constant 384 : index
      %c0_35 = arith.constant 0 : index
      %46 = vector.load %arg6[%c384, %c0_35] : memref<576x64xbf16, #tpu.memory_space<vmem>>, vector<64x64xbf16>
      %c2_i32 = arith.constant 2 : i32
      %47 = arith.addi %arg11, %c2_i32 : i32
      %48 = arith.index_cast %47 : i32 to index
      %c0_36 = arith.constant 0 : index
      %c0_37 = arith.constant 0 : index
      %49 = vector.load %arg10[%48, %c0_36, %c0_37] : memref<9x9x64xbf16, #tpu.memory_space<vmem>>, vector<1x7x64xbf16>
      %50 = vector.shape_cast %49 : vector<1x7x64xbf16> to vector<7x64xbf16>
      %cst_38 = arith.constant dense<0.000000e+00> : vector<7x64xf32>
      %51 = tpu.matmul %50, %46, %cst_38 {dimension_numbers = #tpu.dot_dimension_numbers<[1], [0], [0], [1], [0, 0, 1, 1], [], []>} : vector<7x64xbf16>, vector<64x64xbf16>, vector<7x64xf32> -> vector<7x64xf32>
      %52 = arith.addf %45, %51 : vector<7x64xf32>
      %c448 = arith.constant 448 : index
      %c0_39 = arith.constant 0 : index
      %53 = vector.load %arg6[%c448, %c0_39] : memref<576x64xbf16, #tpu.memory_space<vmem>>, vector<64x64xbf16>
      %c2_i32_40 = arith.constant 2 : i32
      %54 = arith.addi %arg11, %c2_i32_40 : i32
      %55 = arith.index_cast %54 : i32 to index
      %c1_41 = arith.constant 1 : index
      %c0_42 = arith.constant 0 : index
      %56 = vector.load %arg10[%55, %c1_41, %c0_42] : memref<9x9x64xbf16, #tpu.memory_space<vmem>>, vector<1x7x64xbf16>
      %57 = vector.shape_cast %56 : vector<1x7x64xbf16> to vector<7x64xbf16>
      %cst_43 = arith.constant dense<0.000000e+00> : vector<7x64xf32>
      %58 = tpu.matmul %57, %53, %cst_43 {dimension_numbers = #tpu.dot_dimension_numbers<[1], [0], [0], [1], [0, 0, 1, 1], [], []>} : vector<7x64xbf16>, vector<64x64xbf16>, vector<7x64xf32> -> vector<7x64xf32>
      %59 = arith.addf %52, %58 : vector<7x64xf32>
      %c512 = arith.constant 512 : index
      %c0_44 = arith.constant 0 : index
      %60 = vector.load %arg6[%c512, %c0_44] : memref<576x64xbf16, #tpu.memory_space<vmem>>, vector<64x64xbf16>
      %c2_i32_45 = arith.constant 2 : i32
      %61 = arith.addi %arg11, %c2_i32_45 : i32
      %62 = arith.index_cast %61 : i32 to index
      %c2_46 = arith.constant 2 : index
      %c0_47 = arith.constant 0 : index
      %63 = vector.load %arg10[%62, %c2_46, %c0_47] : memref<9x9x64xbf16, #tpu.memory_space<vmem>>, vector<1x7x64xbf16>
      %64 = vector.shape_cast %63 : vector<1x7x64xbf16> to vector<7x64xbf16>
      %cst_48 = arith.constant dense<0.000000e+00> : vector<7x64xf32>
      %65 = tpu.matmul %64, %60, %cst_48 {dimension_numbers = #tpu.dot_dimension_numbers<[1], [0], [0], [1], [0, 0, 1, 1], [], []>} : vector<7x64xbf16>, vector<64x64xbf16>, vector<7x64xf32> -> vector<7x64xf32>
      %66 = arith.addf %59, %65 : vector<7x64xf32>
      %c0_49 = arith.constant 0 : index
      %c0_50 = arith.constant 0 : index
      %67 = vector.load %arg7[%c0_49, %c0_50] : memref<1x64xf32, #tpu.memory_space<vmem>>, vector<1x64xf32>
      %68 = vector.broadcast %67 : vector<1x64xf32> to vector<7x64xf32>
      %69 = arith.addf %66, %68 : vector<7x64xf32>
      %cst_51 = arith.constant 0.000000e+00 : f32
      %70 = vector.broadcast %cst_51 : f32 to vector<7x64xf32>
      %71 = arith.maximumf %69, %70 : vector<7x64xf32>
      %72 = arith.truncf %71 : vector<7x64xf32> to vector<7x64xbf16>
      %c0_52 = arith.constant 0 : index
      %73 = arith.index_cast %arg11 : i32 to index
      %c0_53 = arith.constant 0 : index
      %c0_54 = arith.constant 0 : index
      %74 = vector.load %arg8[%c0_52, %73, %c0_53, %c0_54] : memref<1x7x7x64xbf16, #tpu.memory_space<vmem>>, vector<1x1x7x64xbf16>
      %75 = vector.shape_cast %74 : vector<1x1x7x64xbf16> to vector<7x64xbf16>
      %76 = vector.shape_cast %72 : vector<7x64xbf16> to vector<1x1x7x64xbf16>
      tpu.vector_store %arg8[%c0_52, %73, %c0_53, %c0_54], %76 {strides = array<i32>} : memref<1x7x7x64xbf16, #tpu.memory_space<vmem>>, vector<1x1x7x64xbf16>,
    }
    %c7_i32_6 = arith.constant 7 : i32
    return
  }
  func.func @transform_0(%arg0: i32) -> (i32, i32, i32, i32, i32) {
    %c0_i32 = arith.constant 0 : i32
    %c0_i32_0 = arith.constant 0 : i32
    %c0_i32_1 = arith.constant 0 : i32
    %c0_i32_2 = arith.constant 0 : i32
    %c0_i32_3 = arith.constant 0 : i32
    return %arg0, %c0_i32, %c0_i32_0, %c0_i32_1, %c0_i32_2 : i32, i32, i32, i32, i32
  }
  func.func @transform_1(%arg0: i32) -> (i32, i32) {
    %c0_i32 = arith.constant 0 : i32
    %c0_i32_0 = arith.constant 0 : i32
    %c0_i32_1 = arith.constant 0 : i32
    return %c0_i32, %c0_i32_0 : i32, i32
  }
  func.func @transform_2(%arg0: i32) -> (i32, i32) {
    %c0_i32 = arith.constant 0 : i32
    %c0_i32_0 = arith.constant 0 : i32
    %c0_i32_1 = arith.constant 0 : i32
    return %c0_i32, %c0_i32_0 : i32, i32
  }
  func.func @transform_3(%arg0: i32) -> (i32, i32) {
    %c0_i32 = arith.constant 0 : i32
    %c0_i32_0 = arith.constant 0 : i32
    %c0_i32_1 = arith.constant 0 : i32
    return %c0_i32, %c0_i32_0 : i32, i32
  }
  func.func @transform_4(%arg0: i32) -> (i32, i32) {
    %c0_i32 = arith.constant 0 : i32
    %c0_i32_0 = arith.constant 0 : i32
    %c0_i32_1 = arith.constant 0 : i32
    return %c0_i32, %c0_i32_0 : i32, i32
  }
  func.func @transform_5(%arg0: i32) -> (i32, i32) {
    %c0_i32 = arith.constant 0 : i32
    %c0_i32_0 = arith.constant 0 : i32
    %c0_i32_1 = arith.constant 0 : i32
    return %c0_i32, %c0_i32_0 : i32, i32
  }
  func.func @transform_6(%arg0: i32) -> (i32, i32) {
    %c0_i32 = arith.constant 0 : i32
    %c0_i32_0 = arith.constant 0 : i32
    %c0_i32_1 = arith.constant 0 : i32
    return %c0_i32, %c0_i32_0 : i32, i32
  }
  func.func @transform_7(%arg0: i32) -> (i32, i32, i32, i32) {
    %c0_i32 = arith.constant 0 : i32
    %c0_i32_0 = arith.constant 0 : i32
    %c0_i32_1 = arith.constant 0 : i32
    %c0_i32_2 = arith.constant 0 : i32
    return %arg0, %c0_i32, %c0_i32_0, %c0_i32_1 : i32, i32, i32, i32
  }
}

module attributes {stable_mosaic.version = 11 : i64} {
  func.func @_fc_kernel(%arg0: i32, %arg1: memref<2x3136xbf16, #tpu.memory_space<vmem>>, %arg2: memref<3136x256xbf16, #tpu.memory_space<vmem>>, %arg3: memref<1x256xf32, #tpu.memory_space<vmem>>, %arg4: memref<256x3xbf16, #tpu.memory_space<vmem>>, %arg5: memref<1x3xf32, #tpu.memory_space<vmem>>, %arg6: memref<2x3xf32, #tpu.memory_space<vmem>>) attributes {dimension_semantics = [#tpu.dimension_semantics<parallel>], iteration_bounds = array<i64: 1>, scalar_prefetch = 0 : i64, scratch_operands = 0 : i64, tpu.core_type = #tpu.core_type<tc>, window_params = [{transform_indices = @transform_0, window_bounds = array<i64: 2, 3136>}, {pipeline_mode = #tpu.pipeline_mode<synchronous>, transform_indices = @transform_1, window_bounds = array<i64: 3136, 256>}, {pipeline_mode = #tpu.pipeline_mode<synchronous>, transform_indices = @transform_2, window_bounds = array<i64: 1, 256>}, {pipeline_mode = #tpu.pipeline_mode<synchronous>, transform_indices = @transform_3, window_bounds = array<i64: 256, 3>}, {pipeline_mode = #tpu.pipeline_mode<synchronous>, transform_indices = @transform_4, window_bounds = array<i64: 1, 3>}, {transform_indices = @transform_5, window_bounds = array<i64: 2, 3>}]} {
    %c0 = arith.constant 0 : index
    %c0_0 = arith.constant 0 : index
    %0 = vector.load %arg1[%c0, %c0_0] : memref<2x3136xbf16, #tpu.memory_space<vmem>>, vector<2x3136xbf16>
    %c0_1 = arith.constant 0 : index
    %c0_2 = arith.constant 0 : index
    %1 = vector.load %arg2[%c0_1, %c0_2] : memref<3136x256xbf16, #tpu.memory_space<vmem>>, vector<3136x256xbf16>
    %cst = arith.constant dense<0.000000e+00> : vector<2x256xf32>
    %2 = tpu.matmul %0, %1, %cst {dimension_numbers = #tpu.dot_dimension_numbers<[1], [0], [0], [1], [0, 0, 1, 1], [], []>} : vector<2x3136xbf16>, vector<3136x256xbf16>, vector<2x256xf32> -> vector<2x256xf32>
    %c0_3 = arith.constant 0 : index
    %c0_4 = arith.constant 0 : index
    %3 = vector.load %arg3[%c0_3, %c0_4] : memref<1x256xf32, #tpu.memory_space<vmem>>, vector<1x256xf32>
    %4 = vector.broadcast %3 : vector<1x256xf32> to vector<2x256xf32>
    %5 = arith.addf %2, %4 : vector<2x256xf32>
    %cst_5 = arith.constant 0.000000e+00 : f32
    %6 = vector.broadcast %cst_5 : f32 to vector<2x256xf32>
    %7 = arith.maximumf %5, %6 : vector<2x256xf32>
    %8 = arith.truncf %7 : vector<2x256xf32> to vector<2x256xbf16>
    %c0_6 = arith.constant 0 : index
    %c0_7 = arith.constant 0 : index
    %9 = vector.load %arg4[%c0_6, %c0_7] : memref<256x3xbf16, #tpu.memory_space<vmem>>, vector<256x3xbf16>
    %cst_8 = arith.constant dense<0.000000e+00> : vector<2x3xf32>
    %10 = tpu.matmul %8, %9, %cst_8 {dimension_numbers = #tpu.dot_dimension_numbers<[1], [0], [0], [1], [0, 0, 1, 1], [], []>} : vector<2x256xbf16>, vector<256x3xbf16>, vector<2x3xf32> -> vector<2x3xf32>
    %c0_9 = arith.constant 0 : index
    %c0_10 = arith.constant 0 : index
    %11 = vector.load %arg5[%c0_9, %c0_10] : memref<1x3xf32, #tpu.memory_space<vmem>>, vector<1x3xf32>
    %12 = vector.broadcast %11 : vector<1x3xf32> to vector<2x3xf32>
    %13 = arith.addf %10, %12 : vector<2x3xf32>
    %c0_11 = arith.constant 0 : index
    %c0_12 = arith.constant 0 : index
    %14 = vector.load %arg6[%c0_11, %c0_12] : memref<2x3xf32, #tpu.memory_space<vmem>>, vector<2x3xf32>
    tpu.vector_store %arg6[%c0_11, %c0_12], %13 {strides = array<i32>} : memref<2x3xf32, #tpu.memory_space<vmem>>, vector<2x3xf32>,
    return
  }
  func.func @transform_0(%arg0: i32) -> (i32, i32) {
    %c0_i32 = arith.constant 0 : i32
    %c0_i32_0 = arith.constant 0 : i32
    return %arg0, %c0_i32 : i32, i32
  }
  func.func @transform_1(%arg0: i32) -> (i32, i32) {
    %c0_i32 = arith.constant 0 : i32
    %c0_i32_0 = arith.constant 0 : i32
    %c0_i32_1 = arith.constant 0 : i32
    return %c0_i32, %c0_i32_0 : i32, i32
  }
  func.func @transform_2(%arg0: i32) -> (i32, i32) {
    %c0_i32 = arith.constant 0 : i32
    %c0_i32_0 = arith.constant 0 : i32
    %c0_i32_1 = arith.constant 0 : i32
    return %c0_i32, %c0_i32_0 : i32, i32
  }
  func.func @transform_3(%arg0: i32) -> (i32, i32) {
    %c0_i32 = arith.constant 0 : i32
    %c0_i32_0 = arith.constant 0 : i32
    %c0_i32_1 = arith.constant 0 : i32
    return %c0_i32, %c0_i32_0 : i32, i32
  }
  func.func @transform_4(%arg0: i32) -> (i32, i32) {
    %c0_i32 = arith.constant 0 : i32
    %c0_i32_0 = arith.constant 0 : i32
    %c0_i32_1 = arith.constant 0 : i32
    return %c0_i32, %c0_i32_0 : i32, i32
  }
  func.func @transform_5(%arg0: i32) -> (i32, i32) {
    %c0_i32 = arith.constant 0 : i32
    %c0_i32_0 = arith.constant 0 : i32
    return %arg0, %c0_i32 : i32, i32
  }
}

</mosaic_0001>

<llo_original>
// kernel: ddqn_forward.2
$region0: #{ddqn_forward.2}
  #allocation0 [shape = 'u32[]', space=smem, size = 0x4, offset = 0x4, fixed_abs, tag = 'smem constant byte address 0x4 - core index']
  #allocation1 [shape = 'u32[144,128]{1,0:T(1,128)}', space=vmem, size = 0x12000, scoped, tag = 'internal scratch']
  #allocation2 [shape = 'bf16[20,2,10,32]{3,2,1,0:T(8,128)(2,1)}', space=vmem, size = 0x28000, scoped, tag = 'scratch operand']
  #allocation3 [shape = 'bf16[9,9,64]{2,1,0:T(8,128)(2,1)}', space=vmem, size = 0x9000, scoped, tag = 'scratch operand']
  %s0 = inlined_call_operand.vmem [shape: bf16[2,21,2,11,16], index: 0, kind: input, shape index: {}]
  %s1 = inlined_call_operand.vmem [shape: bf16[64,32], index: 1, kind: input, shape index: {}]
  %s2 = inlined_call_operand.vmem [shape: f32[1,32], index: 2, kind: input, shape index: {}]
  %s3 = inlined_call_operand.vmem [shape: bf16[512,64], index: 3, kind: input, shape index: {}]
  %s4 = inlined_call_operand.vmem [shape: f32[1,64], index: 4, kind: input, shape index: {}]
  %s5 = inlined_call_operand.vmem [shape: bf16[576,64], index: 5, kind: input, shape index: {}]
  %s6 = inlined_call_operand.vmem [shape: f32[1,64], index: 6, kind: input, shape index: {}]
  %s7 = inlined_call_operand.vmem [shape: bf16[2,7,7,64], index: 7, kind: output, shape index: {}]
  %s8 = sld [smem:[#allocation0]]
  $region82: #{ddqn_forward.2} parent=0
    _
  %s10 = ssub.s32 1, %s8
  %s11 = scalar_select 0, %s10, %s8
  loop: start=0, step=1, limit=4
  $region2: #{ddqn_forward.2} parent=0 // loop_pre_header
    _
  $region3: #{ddqn_forward.2} parent=0 // loop_header
    %s13 = sphi 0, %s17
    %p14 = scmp.ge.s32.totalorder %s13, 4
    %s23 = sphi 0, %s25
    %s26 = sphi 0, %s23
    %s27 = sphi 0, %s26
    %s43 = sphi 0, %s27
    %s47 = sphi 0, %s47
    %s49 = sphi 0, %s47
    %s50 = sphi 0, %s49
    %s64 = sphi 0, %s50
    %s68 = sphi 0, %s68
    %s70 = sphi 0, %s68
    %s71 = sphi 0, %s70
    %s85 = sphi 0, %s71
    %s89 = sphi 0, %s89
    %s91 = sphi 0, %s89
    %s92 = sphi 0, %s91
    %s106 = sphi 0, %s92
    %s110 = sphi 0, %s110
    %s112 = sphi 0, %s110
    %s113 = sphi 0, %s112
    %s127 = sphi 0, %s113
    %s131 = sphi 0, %s131
    %s133 = sphi 0, %s131
    %s134 = sphi 0, %s133
    %s148 = sphi 0, %s134
    %s152 = sphi 0, %s152
    %s154 = sphi 0, %s152
    %s155 = sphi 0, %s154
    %s169 = sphi 0, %s155
    %s175 = sphi 0, %s177
    %s178 = sphi 0, %s175
    %s179 = sphi 0, %s178
    %s195 = sphi 0, %s179
  $region4: #{ddqn_forward.2} parent=0 // loop_header_branch
    %16 = sbr.rel (%p14) target = $region8
  $region5: #{ddqn_forward.2} parent=0 // loop_body
    %s18 = ssub.s32 %s13, 1
    %s19 = ssub.s32 %s13, 2
    %s20 = sadd.s32 %s13, 1
    %s21 = ssub.s32 %s13, %s20
    %p22 = scmp.eq.s32.totalorder %s21, 0
    %s24 = sadd.s32 %s23, 1
    %s25 = scalar_select %p22, %s23, %s24
    %p28 = pneg %p22
    %p29 = scmp.eq.s32.totalorder %s13, 1
    %p30 = por %p28, %p29
    %p31 = scmp.ne.s32.totalorder %s23, %s26
    %p32 = scmp.eq.s32.totalorder %s13, 0
    %p33 = por %p31, %p32
    %p34 = scmp.ne.s32.totalorder %s23, %s26
    %p35 = scmp.eq.s32.totalorder %s18, 1
    %p36 = por %p34, %p35
    %p37 = scmp.ne.s32.totalorder %s26, %s27
    %p38 = scmp.eq.s32.totalorder %s18, 0
    %p39 = por %p37, %p38
    %p40 = scmp.ne.s32.totalorder %s26, %s27
    %p41 = scmp.eq.s32.totalorder %s19, 1
    %p42 = por %p40, %p41
    %p44 = scmp.ne.s32.totalorder %s27, %s43
    %p45 = scmp.eq.s32.totalorder %s19, 0
    %p46 = por %p44, %p45
    %s48 = sadd.s32 %s47, 1
    %p51 = scmp.eq.s32.totalorder %s13, 1
    %p52 = scmp.ne.s32.totalorder %s47, %s49
    %p53 = scmp.eq.s32.totalorder %s13, 0
    %p54 = por %p52, %p53
    %p55 = scmp.ne.s32.totalorder %s47, %s49
    %p56 = scmp.eq.s32.totalorder %s18, 1
    %p57 = por %p55, %p56
    %p58 = scmp.ne.s32.totalorder %s49, %s50
    %p59 = scmp.eq.s32.totalorder %s18, 0
    %p60 = por %p58, %p59
    %p61 = scmp.ne.s32.totalorder %s49, %s50
    %p62 = scmp.eq.s32.totalorder %s19, 1
    %p63 = por %p61, %p62
    %p65 = scmp.ne.s32.totalorder %s50, %s64
    %p66 = scmp.eq.s32.totalorder %s19, 0
    %p67 = por %p65, %p66
    %s69 = sadd.s32 %s68, 1
    %p72 = scmp.eq.s32.totalorder %s13, 1
    %p73 = scmp.ne.s32.totalorder %s68, %s70
    %p74 = scmp.eq.s32.totalorder %s13, 0
    %p75 = por %p73, %p74
    %p76 = scmp.ne.s32.totalorder %s68, %s70
    %p77 = scmp.eq.s32.totalorder %s18, 1
    %p78 = por %p76, %p77
    %p79 = scmp.ne.s32.totalorder %s70, %s71
    %p80 = scmp.eq.s32.totalorder %s18, 0
    %p81 = por %p79, %p80
    %p82 = scmp.ne.s32.totalorder %s70, %s71
    %p83 = scmp.eq.s32.totalorder %s19, 1
    %p84 = por %p82, %p83
    %p86 = scmp.ne.s32.totalorder %s71, %s85
    %p87 = scmp.eq.s32.totalorder %s19, 0
    %p88 = por %p86, %p87
    %s90 = sadd.s32 %s89, 1
    %p93 = scmp.eq.s32.totalorder %s13, 1
    %p94 = scmp.ne.s32.totalorder %s89, %s91
    %p95 = scmp.eq.s32.totalorder %s13, 0
    %p96 = por %p94, %p95
    %p97 = scmp.ne.s32.totalorder %s89, %s91
    %p98 = scmp.eq.s32.totalorder %s18, 1
    %p99 = por %p97, %p98
    %p100 = scmp.ne.s32.totalorder %s91, %s92
    %p101 = scmp.eq.s32.totalorder %s18, 0
    %p102 = por %p100, %p101
    %p103 = scmp.ne.s32.totalorder %s91, %s92
    %p104 = scmp.eq.s32.totalorder %s19, 1
    %p105 = por %p103, %p104
    %p107 = scmp.ne.s32.totalorder %s92, %s106
    %p108 = scmp.eq.s32.totalorder %s19, 0
    %p109 = por %p107, %p108
    %s111 = sadd.s32 %s110, 1
    %p114 = scmp.eq.s32.totalorder %s13, 1
    %p115 = scmp.ne.s32.totalorder %s110, %s112
    %p116 = scmp.eq.s32.totalorder %s13, 0
    %p117 = por %p115, %p116
    %p118 = scmp.ne.s32.totalorder %s110, %s112
    %p119 = scmp.eq.s32.totalorder %s18, 1
    %p120 = por %p118, %p119
    %p121 = scmp.ne.s32.totalorder %s112, %s113
    %p122 = scmp.eq.s32.totalorder %s18, 0
    %p123 = por %p121, %p122
    %p124 = scmp.ne.s32.totalorder %s112, %s113
    %p125 = scmp.eq.s32.totalorder %s19, 1
    %p126 = por %p124, %p125
    %p128 = scmp.ne.s32.totalorder %s113, %s127
    %p129 = scmp.eq.s32.totalorder %s19, 0
    %p130 = por %p128, %p129
    %s132 = sadd.s32 %s131, 1
    %p135 = scmp.eq.s32.totalorder %s13, 1
    %p136 = scmp.ne.s32.totalorder %s131, %s133
    %p137 = scmp.eq.s32.totalorder %s13, 0
    %p138 = por %p136, %p137
    %p139 = scmp.ne.s32.totalorder %s131, %s133
    %p140 = scmp.eq.s32.totalorder %s18, 1
    %p141 = por %p139, %p140
    %p142 = scmp.ne.s32.totalorder %s133, %s134
    %p143 = scmp.eq.s32.totalorder %s18, 0
    %p144 = por %p142, %p143
    %p145 = scmp.ne.s32.totalorder %s133, %s134
    %p146 = scmp.eq.s32.totalorder %s19, 1
    %p147 = por %p145, %p146
    %p149 = scmp.ne.s32.totalorder %s134, %s148
    %p150 = scmp.eq.s32.totalorder %s19, 0
    %p151 = por %p149, %p150
    %s153 = sadd.s32 %s152, 1
    %p156 = scmp.eq.s32.totalorder %s13, 1
    %p157 = scmp.ne.s32.totalorder %s152, %s154
    %p158 = scmp.eq.s32.totalorder %s13, 0
    %p159 = por %p157, %p158
    %p160 = scmp.ne.s32.totalorder %s152, %s154
    %p161 = scmp.eq.s32.totalorder %s18, 1
    %p162 = por %p160, %p161
    %p163 = scmp.ne.s32.totalorder %s154, %s155
    %p164 = scmp.eq.s32.totalorder %s18, 0
    %p165 = por %p163, %p164
    %p166 = scmp.ne.s32.totalorder %s154, %s155
    %p167 = scmp.eq.s32.totalorder %s19, 1
    %p168 = por %p166, %p167
    %p170 = scmp.ne.s32.totalorder %s155, %s169
    %p171 = scmp.eq.s32.totalorder %s19, 0
    %p172 = por %p170, %p171
    %s173 = ssub.s32 %s13, %s20
    %p174 = scmp.eq.s32.totalorder %s173, 0
    %s176 = sadd.s32 %s175, 1
    %s177 = scalar_select %p174, %s175, %s176
    %p180 = pneg %p174
    %p181 = scmp.eq.s32.totalorder %s13, 1
    %p182 = por %p180, %p181
    %p183 = scmp.ne.s32.totalorder %s175, %s178
    %p184 = scmp.eq.s32.totalorder %s13, 0
    %p185 = por %p183, %p184
    %p186 = scmp.ne.s32.totalorder %s175, %s178
    %p187 = scmp.eq.s32.totalorder %s18, 1
    %p188 = por %p186, %p187
    %p189 = scmp.ne.s32.totalorder %s178, %s179
    %p190 = scmp.eq.s32.totalorder %s18, 0
    %p191 = por %p189, %p190
    %p192 = scmp.ne.s32.totalorder %s178, %s179
    %p193 = scmp.eq.s32.totalorder %s19, 1
    %p194 = por %p192, %p193
    %p196 = scmp.ne.s32.totalorder %s179, %s195
    %p197 = scmp.eq.s32.totalorder %s19, 0
    %p198 = por %p196, %p197
    %p199 = scmp.le.s32.totalorder 1, %s13
    %p200 = scmp.lt.s32.totalorder %s13, 3
    %p201 = pnand %p199, %p200
    %p202 = pneg %p201
    // Predicated region
    $region9: #{ddqn_forward.2} parent=5 // pred_check
      _
    $region10: #{ddqn_forward.2} parent=5 // pred_check_branch
      %204 = sbr.rel (%p201) target = $region12
    $region11: #{ddqn_forward.2} parent=5 // pred_region
      %s205 = ssub.s32 %s13, 1
      // Predicated region
      $region13: #{ddqn_forward.2} parent=11 // pred_check
        %p206 = pneg %p60
      $region14: #{ddqn_forward.2} parent=11 // pred_check_branch
        %208 = sbr.rel (%p206) target = $region16
      $region15: #{ddqn_forward.2} parent=11 // pred_region
        _
      $region16: #{ddqn_forward.2} parent=11 // pred_fallthru
        _
      // Predicated region
      $region17: #{ddqn_forward.2} parent=11 // pred_check
        %p209 = pneg %p81
      $region18: #{ddqn_forward.2} parent=11 // pred_check_branch
        %211 = sbr.rel (%p209) target = $region20
      $region19: #{ddqn_forward.2} parent=11 // pred_region
        _
      $region20: #{ddqn_forward.2} parent=11 // pred_fallthru
        _
      // Predicated region
      $region21: #{ddqn_forward.2} parent=11 // pred_check
        %p212 = pneg %p102
      $region22: #{ddqn_forward.2} parent=11 // pred_check_branch
        %214 = sbr.rel (%p212) target = $region24
      $region23: #{ddqn_forward.2} parent=11 // pred_region
        _
      $region24: #{ddqn_forward.2} parent=11 // pred_fallthru
        _
      // Predicated region
      $region25: #{ddqn_forward.2} parent=11 // pred_check
        %p215 = pneg %p123
      $region26: #{ddqn_forward.2} parent=11 // pred_check_branch
        %217 = sbr.rel (%p215) target = $region28
      $region27: #{ddqn_forward.2} parent=11 // pred_region
        _
      $region28: #{ddqn_forward.2} parent=11 // pred_fallthru
        _
      // Predicated region
      $region29: #{ddqn_forward.2} parent=11 // pred_check
        %p218 = pneg %p144
      $region30: #{ddqn_forward.2} parent=11 // pred_check_branch
        %220 = sbr.rel (%p218) target = $region32
      $region31: #{ddqn_forward.2} parent=11 // pred_region
        _
      $region32: #{ddqn_forward.2} parent=11 // pred_fallthru
        _
      // Predicated region
      $region33: #{ddqn_forward.2} parent=11 // pred_check
        %p221 = pneg %p165
      $region34: #{ddqn_forward.2} parent=11 // pred_check_branch
        %223 = sbr.rel (%p221) target = $region36
      $region35: #{ddqn_forward.2} parent=11 // pred_region
        _
      $region36: #{ddqn_forward.2} parent=11 // pred_fallthru
        _
    $region12: #{ddqn_forward.2} parent=5 // pred_fallthru
      _
    %p224 = scmp.lt.s32.totalorder %s13, 2
    // Predicated region
    $region37: #{ddqn_forward.2} parent=5 // pred_check
      %p225 = pneg %p224
    $region38: #{ddqn_forward.2} parent=5 // pred_check_branch
      %227 = sbr.rel (%p225) target = $region40
    $region39: #{ddqn_forward.2} parent=5 // pred_region
      // Predicated region
      $region41: #{ddqn_forward.2} parent=39 // pred_check
        %p228 = pneg %p33
      $region42: #{ddqn_forward.2} parent=39 // pred_check_branch
        %230 = sbr.rel (%p228) target = $region44
      $region43: #{ddqn_forward.2} parent=39 // pred_region
        %p231 = scmp.lt.s32.totalorder %s13, 1
        %s232 = scalar_select %p231, %s13, 1
        %s233 = smul.addr %s232, 84
        %s234 = smul.addr %s233, 4
        %s235 = scalar_lea.vmem %s0, %s234
      $region44: #{ddqn_forward.2} parent=39 // pred_fallthru
        _
    $region40: #{ddqn_forward.2} parent=5 // pred_fallthru
      _
    %p236 = scmp.le.s32.totalorder 1, %s13
    %p237 = scmp.lt.s32.totalorder %s13, 3
    %p238 = pnand %p236, %p237
    %p239 = pneg %p238
    // Predicated region
    $region45: #{ddqn_forward.2} parent=5 // pred_check
      _
    $region46: #{ddqn_forward.2} parent=5 // pred_check_branch
      %241 = sbr.rel (%p238) target = $region48
    $region47: #{ddqn_forward.2} parent=5 // pred_region
      %s242 = ssub.s32 %s13, 1
      %p243 = scmp.lt.s32.totalorder %s18, 1
      %s244 = scalar_select %p243, %s18, 1
      %s245 = smul.addr %s244, 84
      %s246 = smul.addr %s245, 4
      %s247 = scalar_lea.vmem %s0, %s246
      %p248 = pneg %p39
      %p249 = pneg %p36
      %p250 = pneg %p60
      %p251 = pneg %p57
      %p252 = pneg %p81
      %p253 = pneg %p78
      %p254 = pneg %p102
      %p255 = pneg %p99
      %p256 = pneg %p123
      %p257 = pneg %p120
      %p258 = pneg %p144
      %p259 = pneg %p141
      %p260 = pneg %p165
      %p261 = pneg %p162
      %p262 = pneg %p191
      %p263 = pneg %p188
      %p264 = scmp.lt.s32.totalorder %s18, 1
      %s265 = scalar_select %p264, %s18, 1
      %s266 = smul.addr %s265, 7
      %s267 = smul.addr %s266, 4
      %s268 = scalar_lea.vmem %s7, %s267
      %p269 = scmp.lt.s32.totalorder %s18, 1
      %s270 = scalar_select %p269, %s18, 1
      %s271 = smul.addr %s270, 84
      %s272 = smul.addr %s271, 4
      %s273 = scalar_lea.vmem %s0, %s272
      %p274 = scmp.lt.s32.totalorder %s18, 1
      %s275 = scalar_select %p274, %s18, 1
      %s276 = smul.addr %s275, 7
      %s277 = smul.addr %s276, 4
      %s278 = scalar_lea.vmem %s7, %s277
      loop: start=0, step=1, limit=20
      $region49: #{ddqn_forward.2} parent=47 // loop_pre_header
        _
      $region50: #{ddqn_forward.2} parent=47 // loop_header
        %s281 = sphi 0, %s285
        %p282 = scmp.ge.s32.totalorder %s281, 20
      $region51: #{ddqn_forward.2} parent=47 // loop_header_branch
        %284 = sbr.rel (%p282) target = $region55
      $region52: #{ddqn_forward.2} parent=47 // loop_body
        %v286 = vld [vmem:[%s1] sm:$0xf]
        %v287 = vld [vmem:[%s1 + $0x4] sm:$0xf]
        %s288 = smul.u32 %s281, 4
        %s289 = smul.addr %s288, 4
        %s290 = scalar_lea.vmem %s273, %s289
        %v291 = vld [vmem:[%s290] sm:$0xf]
        %v292 = vld [vmem:[%s290 + $0x4] sm:$0x1]
        %s293 = sadd.s32 2, %s288
        %s294 = smul.addr %s293, 4
        %s295 = scalar_lea.vmem %s273, %s294
        %v296 = vld [vmem:[%s295] sm:$0xf]
        %v297 = vld [vmem:[%s295 + $0x4] sm:$0x1]
        %v298 = vld [vmem:[%s1 + $0x8] sm:$0xf]
        %v299 = vld [vmem:[%s1 + $0xc] sm:$0xf]
        %v300 = vld [vmem:[%s290 + $0x4] sm:$0x3]
        %v303 = vunpack.c.l.b16 %v296
        %v304 = vunpack.c.l.b16 %v297
        %v305 = vpack.c.b16 %v304, %v303
        %v308 = vunpack.c.l.b16 %v298
        %v309 = vunpack.c.l.b16 %v299
        %v310 = vpack.c.b16 %v309, %v308
        %vm312 = vcmask 130048
        %v314 = vsel %vm312, %v305, 0
        %316 = vmatprep.subr.bf16.mxu0 0
        %317 = vmatpush1.bf16.msra.mxu0 %v310
        %318 = vmatprep.subr.bf16.mxu0 0
        %319 = vmatpush1.bf16.msra.mxu0 0
        %320 = vmatprep.subr.bf16.mxu0 0
        %321 = vmatpush1.bf16.msra.mxu0 0
        %322 = vmatprep.subr.bf16.mxu0 0
        %323 = vmatpush1.bf16.msra.mxu0 0
        %324 = vmatprep.subr.bf16.mxu0 0
        %325 = vmatpush1.bf16.msra.mxu0 0
        %326 = vmatprep.subr.bf16.mxu0 0
        %327 = vmatpush1.bf16.msra.mxu0 0
        %328 = vmatprep.subr.bf16.mxu0 0
        %329 = vmatpush1.bf16.msra.mxu0 0
        %330 = vmatprep.subr.bf16.mxu0 0
        %331 = vmatpush1.bf16.msra.mxu0 0
        %332 = vmatprep.subr.bf16.mxu0 0
        %333 = vmatpush1.bf16.msra.mxu0 0
        %334 = vmatprep.subr.bf16.mxu0 0
        %335 = vmatpush1.bf16.msra.mxu0 0
        %336 = vmatprep.subr.bf16.mxu0 0
        %337 = vmatpush1.bf16.msra.mxu0 0
        %338 = vmatprep.subr.bf16.mxu0 0
        %339 = vmatpush1.bf16.msra.mxu0 0
        %340 = vmatprep.subr.bf16.mxu0 0
        %341 = vmatpush1.bf16.msra.mxu0 0
        %342 = vmatprep.subr.bf16.mxu0 0
        %343 = vmatpush1.bf16.msra.mxu0 0
        %344 = vmatprep.subr.bf16.mxu0 0
        %345 = vmatpush1.bf16.msra.mxu0 0
        %346 = vmatprep.subr.bf16.mxu0 0
        %347 = vmatpush1.bf16.msra.mxu0 0
        %348 = vmatprep.mubr.bf16.mxu0 0
        %349 = vmatmul.mubr.bf16.gmra.mrb[0].mxu0 %v314
        %v350 = vpop.f32.mrb[0].mxu0
        %v351 = vadd.f32 0.0, %v350
        %v352 = vpop.f32.mrb[0].mxu0
        %v353 = vpop.f32.mrb[0].mxu0
        %v354 = vadd.f32 0.0, %v353
        %v355 = vpop.f32.mrb[0].mxu0
        %356 = vdwg.mxu0
        %v359 = vunpack.c.l.b16 %v291
        %v360 = vunpack.c.l.b16 %v292
        %v361 = vpack.c.b16 %v360, %v359
        %v364 = vunpack.c.l.b16 %v286
        %v365 = vunpack.c.l.b16 %v287
        %v366 = vpack.c.b16 %v365, %v364
        %v369 = vsel %vm312, %v361, 0
        %371 = vmatprep.subr.bf16.mxu0 0
        %372 = vmatpush1.bf16.msra.mxu0 %v366
        %373 = vmatprep.subr.bf16.mxu0 0
        %374 = vmatpush1.bf16.msra.mxu0 0
        %375 = vmatprep.subr.bf16.mxu0 0
        %376 = vmatpush1.bf16.msra.mxu0 0
        %377 = vmatprep.subr.bf16.mxu0 0
        %378 = vmatpush1.bf16.msra.mxu0 0
        %379 = vmatprep.subr.bf16.mxu0 0
        %380 = vmatpush1.bf16.msra.mxu0 0
        %381 = vmatprep.subr.bf16.mxu0 0
        %382 = vmatpush1.bf16.msra.mxu0 0
        %383 = vmatprep.subr.bf16.mxu0 0
        %384 = vmatpush1.bf16.msra.mxu0 0
        %385 = vmatprep.subr.bf16.mxu0 0
        %386 = vmatpush1.bf16.msra.mxu0 0
        %387 = vmatprep.subr.bf16.mxu0 0
        %388 = vmatpush1.bf16.msra.mxu0 0
        %389 = vmatprep.subr.bf16.mxu0 0
        %390 = vmatpush1.bf16.msra.mxu0 0
        %391 = vmatprep.subr.bf16.mxu0 0
        %392 = vmatpush1.bf16.msra.mxu0 0
        %393 = vmatprep.subr.bf16.mxu0 0
        %394 = vmatpush1.bf16.msra.mxu0 0
        %395 = vmatprep.subr.bf16.mxu0 0
        %396 = vmatpush1.bf16.msra.mxu0 0
        %397 = vmatprep.subr.bf16.mxu0 0
        %398 = vmatpush1.bf16.msra.mxu0 0
        %399 = vmatprep.subr.bf16.mxu0 0
        %400 = vmatpush1.bf16.msra.mxu0 0
        %401 = vmatprep.subr.bf16.mxu0 0
        %402 = vmatpush1.bf16.msra.mxu0 0
        %403 = vmatprep.mubr.bf16.mxu0 0
        %404 = vmatmul.mubr.bf16.gmra.mrb[0].mxu0 %v369
        %v405 = vpop.f32.mrb[0].mxu0
        %v406 = vadd.f32 %v351, %v405
        %v407 = vpop.f32.mrb[0].mxu0
        %v408 = vpop.f32.mrb[0].mxu0
        %v409 = vadd.f32 %v354, %v408
        %v410 = vpop.f32.mrb[0].mxu0
        %411 = vdwg.mxu0
        %v413 = vunpack.c.l.b16 %v300
        %v414 = vpack.c.b16 %v413, %v359
        %v416 = vshrl.u32 %v414, 16
        %v418 = vshll.u32 %v414, 16
        %v420 = vrot.slane %v418, 1
        %v421 = vor.u32 %v416, %v420
        %v423 = vsel %vm312, %v421, 0
        %425 = vmatprep.subr.bf16.mxu0 0
        %426 = vmatpush1.bf16.msra.mxu0 %v310
        %427 = vmatprep.subr.bf16.mxu0 0
        %428 = vmatpush1.bf16.msra.mxu0 0
        %429 = vmatprep.subr.bf16.mxu0 0
        %430 = vmatpush1.bf16.msra.mxu0 0
        %431 = vmatprep.subr.bf16.mxu0 0
        %432 = vmatpush1.bf16.msra.mxu0 0
        %433 = vmatprep.subr.bf16.mxu0 0
        %434 = vmatpush1.bf16.msra.mxu0 0
        %435 = vmatprep.subr.bf16.mxu0 0
        %436 = vmatpush1.bf16.msra.mxu0 0
        %437 = vmatprep.subr.bf16.mxu0 0
        %438 = vmatpush1.bf16.msra.mxu0 0
        %439 = vmatprep.subr.bf16.mxu0 0
        %440 = vmatpush1.bf16.msra.mxu0 0
        %441 = vmatprep.subr.bf16.mxu0 0
        %442 = vmatpush1.bf16.msra.mxu0 0
        %443 = vmatprep.subr.bf16.mxu0 0
        %444 = vmatpush1.bf16.msra.mxu0 0
        %445 = vmatprep.subr.bf16.mxu0 0
        %446 = vmatpush1.bf16.msra.mxu0 0
        %447 = vmatprep.subr.bf16.mxu0 0
        %448 = vmatpush1.bf16.msra.mxu0 0
        %449 = vmatprep.subr.bf16.mxu0 0
        %450 = vmatpush1.bf16.msra.mxu0 0
        %451 = vmatprep.subr.bf16.mxu0 0
        %452 = vmatpush1.bf16.msra.mxu0 0
        %453 = vmatprep.subr.bf16.mxu0 0
        %454 = vmatpush1.bf16.msra.mxu0 0
        %455 = vmatprep.subr.bf16.mxu0 0
        %456 = vmatpush1.bf16.msra.mxu0 0
        %457 = vmatprep.mubr.bf16.mxu0 0
        %458 = vmatmul.mubr.bf16.gmra.mrb[0].mxu0 %v423
        %v459 = vpop.f32.mrb[0].mxu0
        %v460 = vadd.f32 0.0, %v459
        %v461 = vpop.f32.mrb[0].mxu0
        %v462 = vpop.f32.mrb[0].mxu0
        %v463 = vadd.f32 0.0, %v462
        %v464 = vpop.f32.mrb[0].mxu0
        %465 = vdwg.mxu0
        %466 = vmatprep.subr.bf16.mxu0 0
        %467 = vmatpush1.bf16.msra.mxu0 %v366
        %468 = vmatprep.subr.bf16.mxu0 0
        %469 = vmatpush1.bf16.msra.mxu0 0
        %470 = vmatprep.subr.bf16.mxu0 0
        %471 = vmatpush1.bf16.msra.mxu0 0
        %472 = vmatprep.subr.bf16.mxu0 0
        %473 = vmatpush1.bf16.msra.mxu0 0
        %474 = vmatprep.subr.bf16.mxu0 0
        %475 = vmatpush1.bf16.msra.mxu0 0
        %476 = vmatprep.subr.bf16.mxu0 0
        %477 = vmatpush1.bf16.msra.mxu0 0
        %478 = vmatprep.subr.bf16.mxu0 0
        %479 = vmatpush1.bf16.msra.mxu0 0
        %480 = vmatprep.subr.bf16.mxu0 0
        %481 = vmatpush1.bf16.msra.mxu0 0
        %482 = vmatprep.subr.bf16.mxu0 0
        %483 = vmatpush1.bf16.msra.mxu0 0
        %484 = vmatprep.subr.bf16.mxu0 0
        %485 = vmatpush1.bf16.msra.mxu0 0
        %486 = vmatprep.subr.bf16.mxu0 0
        %487 = vmatpush1.bf16.msra.mxu0 0
        %488 = vmatprep.subr.bf16.mxu0 0
        %489 = vmatpush1.bf16.msra.mxu0 0
        %490 = vmatprep.subr.bf16.mxu0 0
        %491 = vmatpush1.bf16.msra.mxu0 0
        %492 = vmatprep.subr.bf16.mxu0 0
        %493 = vmatpush1.bf16.msra.mxu0 0
        %494 = vmatprep.subr.bf16.mxu0 0
        %495 = vmatpush1.bf16.msra.mxu0 0
        %496 = vmatprep.subr.bf16.mxu0 0
        %497 = vmatpush1.bf16.msra.mxu0 0
        %498 = vmatprep.mubr.bf16.mxu0 0
        %499 = vmatmul.mubr.bf16.gmra.mrb[0].mxu0 %v314
        %v500 = vpop.f32.mrb[0].mxu0
        %v501 = vadd.f32 %v460, %v500
        %v502 = vpop.f32.mrb[0].mxu0
        %v503 = vpop.f32.mrb[0].mxu0
        %v504 = vadd.f32 %v463, %v503
        %v505 = vpop.f32.mrb[0].mxu0
        %506 = vdwg.mxu0
        %v507 = vld [vmem:[%s1 + $0x10] sm:$0xf]
        %v508 = vld [vmem:[%s1 + $0x14] sm:$0xf]
        %s509 = sadd.s32 %s281, 1
        %s510 = smul.u32 %s509, 4
        %s511 = smul.addr %s510, 4
        %s512 = scalar_lea.vmem %s273, %s511
        %v513 = vld [vmem:[%s512] sm:$0xf]
        %v514 = vld [vmem:[%s512 + $0x4] sm:$0x1]
        %s515 = sadd.s32 2, %s510
        %s516 = smul.addr %s515, 4
        %s517 = scalar_lea.vmem %s273, %s516
        %v518 = vld [vmem:[%s517] sm:$0xf]
        %v519 = vld [vmem:[%s517 + $0x4] sm:$0x1]
        %v522 = vunpack.c.l.b16 %v513
        %v523 = vunpack.c.l.b16 %v514
        %v524 = vpack.c.b16 %v523, %v522
        %v527 = vunpack.c.l.b16 %v507
        %v528 = vunpack.c.l.b16 %v508
        %v529 = vpack.c.b16 %v528, %v527
        %v532 = vsel %vm312, %v524, 0
        %534 = vmatprep.subr.bf16.mxu0 0
        %535 = vmatpush1.bf16.msra.mxu0 %v529
        %536 = vmatprep.subr.bf16.mxu0 0
        %537 = vmatpush1.bf16.msra.mxu0 0
        %538 = vmatprep.subr.bf16.mxu0 0
        %539 = vmatpush1.bf16.msra.mxu0 0
        %540 = vmatprep.subr.bf16.mxu0 0
        %541 = vmatpush1.bf16.msra.mxu0 0
        %542 = vmatprep.subr.bf16.mxu0 0
        %543 = vmatpush1.bf16.msra.mxu0 0
        %544 = vmatprep.subr.bf16.mxu0 0
        %545 = vmatpush1.bf16.msra.mxu0 0
        %546 = vmatprep.subr.bf16.mxu0 0
        %547 = vmatpush1.bf16.msra.mxu0 0
        %548 = vmatprep.subr.bf16.mxu0 0
        %549 = vmatpush1.bf16.msra.mxu0 0
        %550 = vmatprep.subr.bf16.mxu0 0
        %551 = vmatpush1.bf16.msra.mxu0 0
        %552 = vmatprep.subr.bf16.mxu0 0
        %553 = vmatpush1.bf16.msra.mxu0 0
        %554 = vmatprep.subr.bf16.mxu0 0
        %555 = vmatpush1.bf16.msra.mxu0 0
        %556 = vmatprep.subr.bf16.mxu0 0
        %557 = vmatpush1.bf16.msra.mxu0 0
        %558 = vmatprep.subr.bf16.mxu0 0
        %559 = vmatpush1.bf16.msra.mxu0 0
        %560 = vmatprep.subr.bf16.mxu0 0
        %561 = vmatpush1.bf16.msra.mxu0 0
        %562 = vmatprep.subr.bf16.mxu0 0
        %563 = vmatpush1.bf16.msra.mxu0 0
        %564 = vmatprep.subr.bf16.mxu0 0
        %565 = vmatpush1.bf16.msra.mxu0 0
        %566 = vmatprep.mubr.bf16.mxu0 0
        %567 = vmatmul.mubr.bf16.gmra.mrb[0].mxu0 %v532
        %v568 = vpop.f32.mrb[0].mxu0
        %v569 = vadd.f32 0.0, %v568
        %v570 = vpop.f32.mrb[0].mxu0
        %v571 = vpop.f32.mrb[0].mxu0
        %v572 = vadd.f32 0.0, %v571
        %v573 = vpop.f32.mrb[0].mxu0
        %574 = vdwg.mxu0
        %v575 = vadd.f32 %v406, %v569
        %v576 = vadd.f32 %v409, %v572
        %v579 = vunpack.c.l.b16 %v518
        %v580 = vunpack.c.l.b16 %v519
        %v581 = vpack.c.b16 %v580, %v579
        %v583 = vsel %vm312, %v581, 0
        %585 = vmatprep.subr.bf16.mxu0 0
        %586 = vmatpush1.bf16.msra.mxu0 %v529
        %587 = vmatprep.subr.bf16.mxu0 0
        %588 = vmatpush1.bf16.msra.mxu0 0
        %589 = vmatprep.subr.bf16.mxu0 0
        %590 = vmatpush1.bf16.msra.mxu0 0
        %591 = vmatprep.subr.bf16.mxu0 0
        %592 = vmatpush1.bf16.msra.mxu0 0
        %593 = vmatprep.subr.bf16.mxu0 0
        %594 = vmatpush1.bf16.msra.mxu0 0
        %595 = vmatprep.subr.bf16.mxu0 0
        %596 = vmatpush1.bf16.msra.mxu0 0
        %597 = vmatprep.subr.bf16.mxu0 0
        %598 = vmatpush1.bf16.msra.mxu0 0
        %599 = vmatprep.subr.bf16.mxu0 0
        %600 = vmatpush1.bf16.msra.mxu0 0
        %601 = vmatprep.subr.bf16.mxu0 0
        %602 = vmatpush1.bf16.msra.mxu0 0
        %603 = vmatprep.subr.bf16.mxu0 0
        %604 = vmatpush1.bf16.msra.mxu0 0
        %605 = vmatprep.subr.bf16.mxu0 0
        %606 = vmatpush1.bf16.msra.mxu0 0
        %607 = vmatprep.subr.bf16.mxu0 0
        %608 = vmatpush1.bf16.msra.mxu0 0
        %609 = vmatprep.subr.bf16.mxu0 0
        %610 = vmatpush1.bf16.msra.mxu0 0
        %611 = vmatprep.subr.bf16.mxu0 0
        %612 = vmatpush1.bf16.msra.mxu0 0
        %613 = vmatprep.subr.bf16.mxu0 0
        %614 = vmatpush1.bf16.msra.mxu0 0
        %615 = vmatprep.subr.bf16.mxu0 0
        %616 = vmatpush1.bf16.msra.mxu0 0
        %617 = vmatprep.mubr.bf16.mxu0 0
        %618 = vmatmul.mubr.bf16.gmra.mrb[0].mxu0 %v583
        %v619 = vpop.f32.mrb[0].mxu0
        %v620 = vadd.f32 0.0, %v619
        %v621 = vpop.f32.mrb[0].mxu0
        %v622 = vpop.f32.mrb[0].mxu0
        %v623 = vadd.f32 0.0, %v622
        %v624 = vpop.f32.mrb[0].mxu0
        %625 = vdwg.mxu0
        %v626 = vadd.f32 %v501, %v620
        %v627 = vadd.f32 %v504, %v623
        %v628 = vld [vmem:[%s1 + $0x18] sm:$0xf]
        %v629 = vld [vmem:[%s1 + $0x1c] sm:$0xf]
        %v630 = vld [vmem:[%s512 + $0x4] sm:$0x3]
        %v633 = vunpack.c.l.b16 %v628
        %v634 = vunpack.c.l.b16 %v629
        %v635 = vpack.c.b16 %v634, %v633
        %637 = vmatprep.subr.bf16.mxu0 0
        %638 = vmatpush1.bf16.msra.mxu0 %v635
        %639 = vmatprep.subr.bf16.mxu0 0
        %640 = vmatpush1.bf16.msra.mxu0 0
        %641 = vmatprep.subr.bf16.mxu0 0
        %642 = vmatpush1.bf16.msra.mxu0 0
        %643 = vmatprep.subr.bf16.mxu0 0
        %644 = vmatpush1.bf16.msra.mxu0 0
        %645 = vmatprep.subr.bf16.mxu0 0
        %646 = vmatpush1.bf16.msra.mxu0 0
        %647 = vmatprep.subr.bf16.mxu0 0
        %648 = vmatpush1.bf16.msra.mxu0 0
        %649 = vmatprep.subr.bf16.mxu0 0
        %650 = vmatpush1.bf16.msra.mxu0 0
        %651 = vmatprep.subr.bf16.mxu0 0
        %652 = vmatpush1.bf16.msra.mxu0 0
        %653 = vmatprep.subr.bf16.mxu0 0
        %654 = vmatpush1.bf16.msra.mxu0 0
        %655 = vmatprep.subr.bf16.mxu0 0
        %656 = vmatpush1.bf16.msra.mxu0 0
        %657 = vmatprep.subr.bf16.mxu0 0
        %658 = vmatpush1.bf16.msra.mxu0 0
        %659 = vmatprep.subr.bf16.mxu0 0
        %660 = vmatpush1.bf16.msra.mxu0 0
        %661 = vmatprep.subr.bf16.mxu0 0
        %662 = vmatpush1.bf16.msra.mxu0 0
        %663 = vmatprep.subr.bf16.mxu0 0
        %664 = vmatpush1.bf16.msra.mxu0 0
        %665 = vmatprep.subr.bf16.mxu0 0
        %666 = vmatpush1.bf16.msra.mxu0 0
        %667 = vmatprep.subr.bf16.mxu0 0
        %668 = vmatpush1.bf16.msra.mxu0 0
        %669 = vmatprep.mubr.bf16.mxu0 0
        %670 = vmatmul.mubr.bf16.gmra.mrb[0].mxu0 %v583
        %v671 = vpop.f32.mrb[0].mxu0
        %v672 = vadd.f32 0.0, %v671
        %v673 = vpop.f32.mrb[0].mxu0
        %v674 = vpop.f32.mrb[0].mxu0
        %v675 = vadd.f32 0.0, %v674
        %v676 = vpop.f32.mrb[0].mxu0
        %677 = vdwg.mxu0
        %v678 = vadd.f32 %v575, %v672
        %v679 = vadd.f32 %v576, %v675
        %v681 = vunpack.c.l.b16 %v630
        %v682 = vpack.c.b16 %v681, %v522
        %v684 = vshrl.u32 %v682, 16
        %v686 = vshll.u32 %v682, 16
        %v688 = vrot.slane %v686, 1
        %v689 = vor.u32 %v684, %v688
        %v691 = vsel %vm312, %v689, 0
        %693 = vmatprep.subr.bf16.mxu0 0
        %694 = vmatpush1.bf16.msra.mxu0 %v635
        %695 = vmatprep.subr.bf16.mxu0 0
        %696 = vmatpush1.bf16.msra.mxu0 0
        %697 = vmatprep.subr.bf16.mxu0 0
        %698 = vmatpush1.bf16.msra.mxu0 0
        %699 = vmatprep.subr.bf16.mxu0 0
        %700 = vmatpush1.bf16.msra.mxu0 0
        %701 = vmatprep.subr.bf16.mxu0 0
        %702 = vmatpush1.bf16.msra.mxu0 0
        %703 = vmatprep.subr.bf16.mxu0 0
        %704 = vmatpush1.bf16.msra.mxu0 0
        %705 = vmatprep.subr.bf16.mxu0 0
        %706 = vmatpush1.bf16.msra.mxu0 0
        %707 = vmatprep.subr.bf16.mxu0 0
        %708 = vmatpush1.bf16.msra.mxu0 0
        %709 = vmatprep.subr.bf16.mxu0 0
        %710 = vmatpush1.bf16.msra.mxu0 0
        %711 = vmatprep.subr.bf16.mxu0 0
        %712 = vmatpush1.bf16.msra.mxu0 0
        %713 = vmatprep.subr.bf16.mxu0 0
        %714 = vmatpush1.bf16.msra.mxu0 0
        %715 = vmatprep.subr.bf16.mxu0 0
        %716 = vmatpush1.bf16.msra.mxu0 0
        %717 = vmatprep.subr.bf16.mxu0 0
        %718 = vmatpush1.bf16.msra.mxu0 0
        %719 = vmatprep.subr.bf16.mxu0 0
        %720 = vmatpush1.bf16.msra.mxu0 0
        %721 = vmatprep.subr.bf16.mxu0 0
        %722 = vmatpush1.bf16.msra.mxu0 0
        %723 = vmatprep.subr.bf16.mxu0 0
        %724 = vmatpush1.bf16.msra.mxu0 0
        %725 = vmatprep.mubr.bf16.mxu0 0
        %726 = vmatmul.mubr.bf16.gmra.mrb[0].mxu0 %v691
        %v727 = vpop.f32.mrb[0].mxu0
        %v728 = vadd.f32 0.0, %v727
        %v729 = vpop.f32.mrb[0].mxu0
        %v730 = vpop.f32.mrb[0].mxu0
        %v731 = vadd.f32 0.0, %v730
        %v732 = vpop.f32.mrb[0].mxu0
        %733 = vdwg.mxu0
        %v734 = vadd.f32 %v626, %v728
        %v735 = vadd.f32 %v627, %v731
        %v736 = vld [vmem:[%s2] sm:$0x1]
        %v738 = vlaneseq
        %v739 = vshrl.u32 %v738, 7
        %v740 = vsub.s32 0, %v739
        %v741 = vrot.slane %v736, %v740
        %v743 = vadd.f32 %v678, %v741
        %v744 = vadd.f32 %v679, %v741
        %v745 = vmax.f32 %v743, 0.0
        %v746 = vmax.f32 %v744, 0.0
        %v747 = vpack.c.bf16 %v746, %v745
        %v749 = vunpack.c.l.b16 %v747
        %v750 = vunpack.c.h.b16 %v747
        %v751 = vpack.c.b16 %v749, %v749
        %v752 = vpack.c.b16 %v750, %v750
        %s755 = smul.addr %s288, 4
        %s756 = scalar_lea.vmem [#allocation2], %s755
        %vm757 = vcmask 257024
        %758 = vst.msk [vmem:[%s756] sm:$0xf] %vm757, %v751
        %vm759 = vcmask 253952
        %760 = vst.msk [vmem:[%s756 + $0x4] sm:$0x1] %vm759, %v752
        %v761 = vadd.f32 %v734, %v741
        %v762 = vadd.f32 %v735, %v741
        %v763 = vmax.f32 %v761, 0.0
        %v764 = vmax.f32 %v762, 0.0
        %v765 = vpack.c.bf16 %v764, %v763
        %v767 = vunpack.c.l.b16 %v765
        %v768 = vunpack.c.h.b16 %v765
        %v769 = vpack.c.b16 %v767, %v767
        %v770 = vpack.c.b16 %v768, %v768
        %s773 = smul.addr %s293, 4
        %s774 = scalar_lea.vmem [#allocation2], %s773
        %775 = vst.msk [vmem:[%s774] sm:$0xf] %vm757, %v769
        %776 = vst.msk [vmem:[%s774 + $0x4] sm:$0x1] %vm759, %v770
      $region53: #{ddqn_forward.2} parent=47 // loop_footer
        %s285 = sadd.s32 1, %s281
      $region54: #{ddqn_forward.2} parent=47 // loop_footer_branch
        %280 = sbr.rel target = $region50
      $region55: #{ddqn_forward.2} parent=47 // loop_exit
        _
      loop: start=0, step=1, limit=9
      $region56: #{ddqn_forward.2} parent=47 // loop_pre_header
        _
      $region57: #{ddqn_forward.2} parent=47 // loop_header
        %s778 = sphi 0, %s782
        %p779 = scmp.ge.s32.totalorder %s778, 9
      $region58: #{ddqn_forward.2} parent=47 // loop_header_branch
        %781 = sbr.rel (%p779) target = $region62
      $region59: #{ddqn_forward.2} parent=47 // loop_body
        %v783 = vld [vmem:[%s3] sm:$0xf]
        %v784 = vld [vmem:[%s3 + $0x4] sm:$0xf]
        %v785 = vld [vmem:[%s3 + $0x8] sm:$0xf]
        %v786 = vld [vmem:[%s3 + $0xc] sm:$0xf]
        %s787 = smul.u32 %s778, 2
        %s788 = smul.u32 %s787, 4
        %s789 = smul.addr %s788, 4
        %s790 = scalar_lea.vmem [#allocation2], %s789
        %v791 = vld [vmem:[%s790] sm:$0xf]
        %v792 = vld [vmem:[%s790 + $0x4] sm:$0x1]
        %v793 = vld [vmem:[%s3 + $0x10] sm:$0xf]
        %v794 = vld [vmem:[%s3 + $0x14] sm:$0xf]
        %v795 = vld [vmem:[%s3 + $0x18] sm:$0xf]
        %v796 = vld [vmem:[%s3 + $0x1c] sm:$0xf]
        %s797 = sadd.s32 2, %s788
        %s798 = smul.addr %s797, 4
        %s799 = scalar_lea.vmem [#allocation2], %s798
        %v800 = vld [vmem:[%s799] sm:$0xf]
        %v801 = vld [vmem:[%s799 + $0x4] sm:$0x1]
        %v804 = vunpack.c.l.b16 %v800
        %v805 = vunpack.c.l.b16 %v801
        %v806 = vpack.c.b16 %v805, %v804
        %v811 = vunpack.c.l.b16 %v793
        %v812 = vunpack.c.l.b16 %v794
        %v813 = vunpack.c.l.b16 %v795
        %v814 = vunpack.c.l.b16 %v796
        %v815 = vpack.c.b16 %v812, %v811
        %v816 = vpack.c.b16 %v814, %v813
        %vm819 = vcmask 261120
        %v821 = vsel %vm819, %v806, 0
        %823 = vmatprep.subr.bf16.mxu0 0
        %824 = vmatpush1.bf16.msra.mxu0 %v815
        %825 = vmatprep.subr.bf16.mxu0 0
        %826 = vmatpush1.bf16.msra.mxu0 %v816
        %827 = vmatprep.subr.bf16.mxu0 0
        %828 = vmatpush1.bf16.msra.mxu0 0
        %829 = vmatprep.subr.bf16.mxu0 0
        %830 = vmatpush1.bf16.msra.mxu0 0
        %831 = vmatprep.subr.bf16.mxu0 0
        %832 = vmatpush1.bf16.msra.mxu0 0
        %833 = vmatprep.subr.bf16.mxu0 0
        %834 = vmatpush1.bf16.msra.mxu0 0
        %835 = vmatprep.subr.bf16.mxu0 0
        %836 = vmatpush1.bf16.msra.mxu0 0
        %837 = vmatprep.subr.bf16.mxu0 0
        %838 = vmatpush1.bf16.msra.mxu0 0
        %839 = vmatprep.subr.bf16.mxu0 0
        %840 = vmatpush1.bf16.msra.mxu0 0
        %841 = vmatprep.subr.bf16.mxu0 0
        %842 = vmatpush1.bf16.msra.mxu0 0
        %843 = vmatprep.subr.bf16.mxu0 0
        %844 = vmatpush1.bf16.msra.mxu0 0
        %845 = vmatprep.subr.bf16.mxu0 0
        %846 = vmatpush1.bf16.msra.mxu0 0
        %847 = vmatprep.subr.bf16.mxu0 0
        %848 = vmatpush1.bf16.msra.mxu0 0
        %849 = vmatprep.subr.bf16.mxu0 0
        %850 = vmatpush1.bf16.msra.mxu0 0
        %851 = vmatprep.subr.bf16.mxu0 0
        %852 = vmatpush1.bf16.msra.mxu0 0
        %853 = vmatprep.subr.bf16.mxu0 0
        %854 = vmatpush1.bf16.msra.mxu0 0
        %855 = vmatprep.mubr.bf16.mxu0 0
        %856 = vmatmul.mubr.bf16.gmra.mrb[0].mxu0 %v821
        %v857 = vpop.f32.mrb[0].mxu0
        %v858 = vadd.f32 0.0, %v857
        %v859 = vpop.f32.mrb[0].mxu0
        %v860 = vpop.f32.mrb[0].mxu0
        %v861 = vadd.f32 0.0, %v860
        %v862 = vpop.f32.mrb[0].mxu0
        %863 = vdwg.mxu0
        %v866 = vunpack.c.l.b16 %v791
        %v867 = vunpack.c.l.b16 %v792
        %v868 = vpack.c.b16 %v867, %v866
        %v873 = vunpack.c.l.b16 %v783
        %v874 = vunpack.c.l.b16 %v784
        %v875 = vunpack.c.l.b16 %v785
        %v876 = vunpack.c.l.b16 %v786
        %v877 = vpack.c.b16 %v874, %v873
        %v878 = vpack.c.b16 %v876, %v875
        %v882 = vsel %vm819, %v868, 0
        %884 = vmatprep.subr.bf16.mxu0 0
        %885 = vmatpush1.bf16.msra.mxu0 %v877
        %886 = vmatprep.subr.bf16.mxu0 0
        %887 = vmatpush1.bf16.msra.mxu0 %v878
        %888 = vmatprep.subr.bf16.mxu0 0
        %889 = vmatpush1.bf16.msra.mxu0 0
        %890 = vmatprep.subr.bf16.mxu0 0
        %891 = vmatpush1.bf16.msra.mxu0 0
        %892 = vmatprep.subr.bf16.mxu0 0
        %893 = vmatpush1.bf16.msra.mxu0 0
        %894 = vmatprep.subr.bf16.mxu0 0
        %895 = vmatpush1.bf16.msra.mxu0 0
        %896 = vmatprep.subr.bf16.mxu0 0
        %897 = vmatpush1.bf16.msra.mxu0 0
        %898 = vmatprep.subr.bf16.mxu0 0
        %899 = vmatpush1.bf16.msra.mxu0 0
        %900 = vmatprep.subr.bf16.mxu0 0
        %901 = vmatpush1.bf16.msra.mxu0 0
        %902 = vmatprep.subr.bf16.mxu0 0
        %903 = vmatpush1.bf16.msra.mxu0 0
        %904 = vmatprep.subr.bf16.mxu0 0
        %905 = vmatpush1.bf16.msra.mxu0 0
        %906 = vmatprep.subr.bf16.mxu0 0
        %907 = vmatpush1.bf16.msra.mxu0 0
        %908 = vmatprep.subr.bf16.mxu0 0
        %909 = vmatpush1.bf16.msra.mxu0 0
        %910 = vmatprep.subr.bf16.mxu0 0
        %911 = vmatpush1.bf16.msra.mxu0 0
        %912 = vmatprep.subr.bf16.mxu0 0
        %913 = vmatpush1.bf16.msra.mxu0 0
        %914 = vmatprep.subr.bf16.mxu0 0
        %915 = vmatpush1.bf16.msra.mxu0 0
        %916 = vmatprep.mubr.bf16.mxu0 0
        %917 = vmatmul.mubr.bf16.gmra.mrb[0].mxu0 %v882
        %v918 = vpop.f32.mrb[0].mxu0
        %v919 = vadd.f32 %v858, %v918
        %v920 = vpop.f32.mrb[0].mxu0
        %v921 = vpop.f32.mrb[0].mxu0
        %v922 = vadd.f32 %v861, %v921
        %v923 = vpop.f32.mrb[0].mxu0
        %924 = vdwg.mxu0
        %v925 = vld [vmem:[%s3 + $0x20] sm:$0xf]
        %v926 = vld [vmem:[%s3 + $0x24] sm:$0xf]
        %v927 = vld [vmem:[%s3 + $0x28] sm:$0xf]
        %v928 = vld [vmem:[%s3 + $0x2c] sm:$0xf]
        %v929 = vshrl.u32 %v868, 16
        %v931 = vshll.u32 %v868, 16
        %v933 = vrot.slane %v931, 1
        %v934 = vor.u32 %v929, %v933
        %v939 = vunpack.c.l.b16 %v925
        %v940 = vunpack.c.l.b16 %v926
        %v941 = vunpack.c.l.b16 %v927
        %v942 = vunpack.c.l.b16 %v928
        %v943 = vpack.c.b16 %v940, %v939
        %v944 = vpack.c.b16 %v942, %v941
        %v948 = vsel %vm819, %v934, 0
        %950 = vmatprep.subr.bf16.mxu0 0
        %951 = vmatpush1.bf16.msra.mxu0 %v943
        %952 = vmatprep.subr.bf16.mxu0 0
        %953 = vmatpush1.bf16.msra.mxu0 %v944
        %954 = vmatprep.subr.bf16.mxu0 0
        %955 = vmatpush1.bf16.msra.mxu0 0
        %956 = vmatprep.subr.bf16.mxu0 0
        %957 = vmatpush1.bf16.msra.mxu0 0
        %958 = vmatprep.subr.bf16.mxu0 0
        %959 = vmatpush1.bf16.msra.mxu0 0
        %960 = vmatprep.subr.bf16.mxu0 0
        %961 = vmatpush1.bf16.msra.mxu0 0
        %962 = vmatprep.subr.bf16.mxu0 0
        %963 = vmatpush1.bf16.msra.mxu0 0
        %964 = vmatprep.subr.bf16.mxu0 0
        %965 = vmatpush1.bf16.msra.mxu0 0
        %966 = vmatprep.subr.bf16.mxu0 0
        %967 = vmatpush1.bf16.msra.mxu0 0
        %968 = vmatprep.subr.bf16.mxu0 0
        %969 = vmatpush1.bf16.msra.mxu0 0
        %970 = vmatprep.subr.bf16.mxu0 0
        %971 = vmatpush1.bf16.msra.mxu0 0
        %972 = vmatprep.subr.bf16.mxu0 0
        %973 = vmatpush1.bf16.msra.mxu0 0
        %974 = vmatprep.subr.bf16.mxu0 0
        %975 = vmatpush1.bf16.msra.mxu0 0
        %976 = vmatprep.subr.bf16.mxu0 0
        %977 = vmatpush1.bf16.msra.mxu0 0
        %978 = vmatprep.subr.bf16.mxu0 0
        %979 = vmatpush1.bf16.msra.mxu0 0
        %980 = vmatprep.subr.bf16.mxu0 0
        %981 = vmatpush1.bf16.msra.mxu0 0
        %982 = vmatprep.mubr.bf16.mxu0 0
        %983 = vmatmul.mubr.bf16.gmra.mrb[0].mxu0 %v948
        %v984 = vpop.f32.mrb[0].mxu0
        %v985 = vadd.f32 0.0, %v984
        %v986 = vpop.f32.mrb[0].mxu0
        %v987 = vpop.f32.mrb[0].mxu0
        %v988 = vadd.f32 0.0, %v987
        %v989 = vpop.f32.mrb[0].mxu0
        %990 = vdwg.mxu0
        %v991 = vadd.f32 %v919, %v985
        %v992 = vadd.f32 %v922, %v988
        %v993 = vld [vmem:[%s3 + $0x30] sm:$0xf]
        %v994 = vld [vmem:[%s3 + $0x34] sm:$0xf]
        %v995 = vld [vmem:[%s3 + $0x38] sm:$0xf]
        %v996 = vld [vmem:[%s3 + $0x3c] sm:$0xf]
        %v997 = vshrl.u32 %v806, 16
        %v999 = vshll.u32 %v806, 16
        %v1001 = vrot.slane %v999, 1
        %v1002 = vor.u32 %v997, %v1001
        %v1007 = vunpack.c.l.b16 %v993
        %v1008 = vunpack.c.l.b16 %v994
        %v1009 = vunpack.c.l.b16 %v995
        %v1010 = vunpack.c.l.b16 %v996
        %v1011 = vpack.c.b16 %v1008, %v1007
        %v1012 = vpack.c.b16 %v1010, %v1009
        %v1016 = vsel %vm819, %v1002, 0
        %1018 = vmatprep.subr.bf16.mxu0 0
        %1019 = vmatpush1.bf16.msra.mxu0 %v1011
        %1020 = vmatprep.subr.bf16.mxu0 0
        %1021 = vmatpush1.bf16.msra.mxu0 %v1012
        %1022 = vmatprep.subr.bf16.mxu0 0
        %1023 = vmatpush1.bf16.msra.mxu0 0
        %1024 = vmatprep.subr.bf16.mxu0 0
        %1025 = vmatpush1.bf16.msra.mxu0 0
        %1026 = vmatprep.subr.bf16.mxu0 0
        %1027 = vmatpush1.bf16.msra.mxu0 0
        %1028 = vmatprep.subr.bf16.mxu0 0
        %1029 = vmatpush1.bf16.msra.mxu0 0
        %1030 = vmatprep.subr.bf16.mxu0 0
        %1031 = vmatpush1.bf16.msra.mxu0 0
        %1032 = vmatprep.subr.bf16.mxu0 0
        %1033 = vmatpush1.bf16.msra.mxu0 0
        %1034 = vmatprep.subr.bf16.mxu0 0
        %1035 = vmatpush1.bf16.msra.mxu0 0
        %1036 = vmatprep.subr.bf16.mxu0 0
        %1037 = vmatpush1.bf16.msra.mxu0 0
        %1038 = vmatprep.subr.bf16.mxu0 0
        %1039 = vmatpush1.bf16.msra.mxu0 0
        %1040 = vmatprep.subr.bf16.mxu0 0
        %1041 = vmatpush1.bf16.msra.mxu0 0
        %1042 = vmatprep.subr.bf16.mxu0 0
        %1043 = vmatpush1.bf16.msra.mxu0 0
        %1044 = vmatprep.subr.bf16.mxu0 0
        %1045 = vmatpush1.bf16.msra.mxu0 0
        %1046 = vmatprep.subr.bf16.mxu0 0
        %1047 = vmatpush1.bf16.msra.mxu0 0
        %1048 = vmatprep.subr.bf16.mxu0 0
        %1049 = vmatpush1.bf16.msra.mxu0 0
        %1050 = vmatprep.mubr.bf16.mxu0 0
        %1051 = vmatmul.mubr.bf16.gmra.mrb[0].mxu0 %v1016
        %v1052 = vpop.f32.mrb[0].mxu0
        %v1053 = vadd.f32 0.0, %v1052
        %v1054 = vpop.f32.mrb[0].mxu0
        %v1055 = vpop.f32.mrb[0].mxu0
        %v1056 = vadd.f32 0.0, %v1055
        %v1057 = vpop.f32.mrb[0].mxu0
        %1058 = vdwg.mxu0
        %v1059 = vadd.f32 %v991, %v1053
        %v1060 = vadd.f32 %v992, %v1056
        %v1061 = vld [vmem:[%s3 + $0x40] sm:$0xf]
        %v1062 = vld [vmem:[%s3 + $0x44] sm:$0xf]
        %v1063 = vld [vmem:[%s3 + $0x48] sm:$0xf]
        %v1064 = vld [vmem:[%s3 + $0x4c] sm:$0xf]
        %s1065 = sadd.s32 %s787, 1
        %s1066 = smul.u32 %s1065, 4
        %s1067 = smul.addr %s1066, 4
        %s1068 = scalar_lea.vmem [#allocation2], %s1067
        %v1069 = vld [vmem:[%s1068] sm:$0xf]
        %v1070 = vld [vmem:[%s1068 + $0x4] sm:$0x1]
        %v1073 = vunpack.c.l.b16 %v1069
        %v1074 = vunpack.c.l.b16 %v1070
        %v1075 = vpack.c.b16 %v1074, %v1073
        %v1080 = vunpack.c.l.b16 %v1061
        %v1081 = vunpack.c.l.b16 %v1062
        %v1082 = vunpack.c.l.b16 %v1063
        %v1083 = vunpack.c.l.b16 %v1064
        %v1084 = vpack.c.b16 %v1081, %v1080
        %v1085 = vpack.c.b16 %v1083, %v1082
        %v1089 = vsel %vm819, %v1075, 0
        %1091 = vmatprep.subr.bf16.mxu0 0
        %1092 = vmatpush1.bf16.msra.mxu0 %v1084
        %1093 = vmatprep.subr.bf16.mxu0 0
        %1094 = vmatpush1.bf16.msra.mxu0 %v1085
        %1095 = vmatprep.subr.bf16.mxu0 0
        %1096 = vmatpush1.bf16.msra.mxu0 0
        %1097 = vmatprep.subr.bf16.mxu0 0
        %1098 = vmatpush1.bf16.msra.mxu0 0
        %1099 = vmatprep.subr.bf16.mxu0 0
        %1100 = vmatpush1.bf16.msra.mxu0 0
        %1101 = vmatprep.subr.bf16.mxu0 0
        %1102 = vmatpush1.bf16.msra.mxu0 0
        %1103 = vmatprep.subr.bf16.mxu0 0
        %1104 = vmatpush1.bf16.msra.mxu0 0
        %1105 = vmatprep.subr.bf16.mxu0 0
        %1106 = vmatpush1.bf16.msra.mxu0 0
        %1107 = vmatprep.subr.bf16.mxu0 0
        %1108 = vmatpush1.bf16.msra.mxu0 0
        %1109 = vmatprep.subr.bf16.mxu0 0
        %1110 = vmatpush1.bf16.msra.mxu0 0
        %1111 = vmatprep.subr.bf16.mxu0 0
        %1112 = vmatpush1.bf16.msra.mxu0 0
        %1113 = vmatprep.subr.bf16.mxu0 0
        %1114 = vmatpush1.bf16.msra.mxu0 0
        %1115 = vmatprep.subr.bf16.mxu0 0
        %1116 = vmatpush1.bf16.msra.mxu0 0
        %1117 = vmatprep.subr.bf16.mxu0 0
        %1118 = vmatpush1.bf16.msra.mxu0 0
        %1119 = vmatprep.subr.bf16.mxu0 0
        %1120 = vmatpush1.bf16.msra.mxu0 0
        %1121 = vmatprep.subr.bf16.mxu0 0
        %1122 = vmatpush1.bf16.msra.mxu0 0
        %1123 = vmatprep.mubr.bf16.mxu0 0
        %1124 = vmatmul.mubr.bf16.gmra.mrb[0].mxu0 %v1089
        %v1125 = vpop.f32.mrb[0].mxu0
        %v1126 = vadd.f32 0.0, %v1125
        %v1127 = vpop.f32.mrb[0].mxu0
        %v1128 = vpop.f32.mrb[0].mxu0
        %v1129 = vadd.f32 0.0, %v1128
        %v1130 = vpop.f32.mrb[0].mxu0
        %1131 = vdwg.mxu0
        %v1132 = vadd.f32 %v1059, %v1126
        %v1133 = vadd.f32 %v1060, %v1129
        %v1134 = vld [vmem:[%s3 + $0x50] sm:$0xf]
        %v1135 = vld [vmem:[%s3 + $0x54] sm:$0xf]
        %v1136 = vld [vmem:[%s3 + $0x58] sm:$0xf]
        %v1137 = vld [vmem:[%s3 + $0x5c] sm:$0xf]
        %s1138 = sadd.s32 2, %s1066
        %s1139 = smul.addr %s1138, 4
        %s1140 = scalar_lea.vmem [#allocation2], %s1139
        %v1141 = vld [vmem:[%s1140] sm:$0xf]
        %v1142 = vld [vmem:[%s1140 + $0x4] sm:$0x1]
        %v1145 = vunpack.c.l.b16 %v1141
        %v1146 = vunpack.c.l.b16 %v1142
        %v1147 = vpack.c.b16 %v1146, %v1145
        %v1152 = vunpack.c.l.b16 %v1134
        %v1153 = vunpack.c.l.b16 %v1135
        %v1154 = vunpack.c.l.b16 %v1136
        %v1155 = vunpack.c.l.b16 %v1137
        %v1156 = vpack.c.b16 %v1153, %v1152
        %v1157 = vpack.c.b16 %v1155, %v1154
        %v1161 = vsel %vm819, %v1147, 0
        %1163 = vmatprep.subr.bf16.mxu0 0
        %1164 = vmatpush1.bf16.msra.mxu0 %v1156
        %1165 = vmatprep.subr.bf16.mxu0 0
        %1166 = vmatpush1.bf16.msra.mxu0 %v1157
        %1167 = vmatprep.subr.bf16.mxu0 0
        %1168 = vmatpush1.bf16.msra.mxu0 0
        %1169 = vmatprep.subr.bf16.mxu0 0
        %1170 = vmatpush1.bf16.msra.mxu0 0
        %1171 = vmatprep.subr.bf16.mxu0 0
        %1172 = vmatpush1.bf16.msra.mxu0 0
        %1173 = vmatprep.subr.bf16.mxu0 0
        %1174 = vmatpush1.bf16.msra.mxu0 0
        %1175 = vmatprep.subr.bf16.mxu0 0
        %1176 = vmatpush1.bf16.msra.mxu0 0
        %1177 = vmatprep.subr.bf16.mxu0 0
        %1178 = vmatpush1.bf16.msra.mxu0 0
        %1179 = vmatprep.subr.bf16.mxu0 0
        %1180 = vmatpush1.bf16.msra.mxu0 0
        %1181 = vmatprep.subr.bf16.mxu0 0
        %1182 = vmatpush1.bf16.msra.mxu0 0
        %1183 = vmatprep.subr.bf16.mxu0 0
        %1184 = vmatpush1.bf16.msra.mxu0 0
        %1185 = vmatprep.subr.bf16.mxu0 0
        %1186 = vmatpush1.bf16.msra.mxu0 0
        %1187 = vmatprep.subr.bf16.mxu0 0
        %1188 = vmatpush1.bf16.msra.mxu0 0
        %1189 = vmatprep.subr.bf16.mxu0 0
        %1190 = vmatpush1.bf16.msra.mxu0 0
        %1191 = vmatprep.subr.bf16.mxu0 0
        %1192 = vmatpush1.bf16.msra.mxu0 0
        %1193 = vmatprep.subr.bf16.mxu0 0
        %1194 = vmatpush1.bf16.msra.mxu0 0
        %1195 = vmatprep.mubr.bf16.mxu0 0
        %1196 = vmatmul.mubr.bf16.gmra.mrb[0].mxu0 %v1161
        %v1197 = vpop.f32.mrb[0].mxu0
        %v1198 = vadd.f32 0.0, %v1197
        %v1199 = vpop.f32.mrb[0].mxu0
        %v1200 = vpop.f32.mrb[0].mxu0
        %v1201 = vadd.f32 0.0, %v1200
        %v1202 = vpop.f32.mrb[0].mxu0
        %1203 = vdwg.mxu0
        %v1204 = vadd.f32 %v1132, %v1198
        %v1205 = vadd.f32 %v1133, %v1201
        %v1206 = vld [vmem:[%s3 + $0x60] sm:$0xf]
        %v1207 = vld [vmem:[%s3 + $0x64] sm:$0xf]
        %v1208 = vld [vmem:[%s3 + $0x68] sm:$0xf]
        %v1209 = vld [vmem:[%s3 + $0x6c] sm:$0xf]
        %v1210 = vshrl.u32 %v1075, 16
        %v1212 = vshll.u32 %v1075, 16
        %v1214 = vrot.slane %v1212, 1
        %v1215 = vor.u32 %v1210, %v1214
        %v1220 = vunpack.c.l.b16 %v1206
        %v1221 = vunpack.c.l.b16 %v1207
        %v1222 = vunpack.c.l.b16 %v1208
        %v1223 = vunpack.c.l.b16 %v1209
        %v1224 = vpack.c.b16 %v1221, %v1220
        %v1225 = vpack.c.b16 %v1223, %v1222
        %v1229 = vsel %vm819, %v1215, 0
        %1231 = vmatprep.subr.bf16.mxu0 0
        %1232 = vmatpush1.bf16.msra.mxu0 %v1224
        %1233 = vmatprep.subr.bf16.mxu0 0
        %1234 = vmatpush1.bf16.msra.mxu0 %v1225
        %1235 = vmatprep.subr.bf16.mxu0 0
        %1236 = vmatpush1.bf16.msra.mxu0 0
        %1237 = vmatprep.subr.bf16.mxu0 0
        %1238 = vmatpush1.bf16.msra.mxu0 0
        %1239 = vmatprep.subr.bf16.mxu0 0
        %1240 = vmatpush1.bf16.msra.mxu0 0
        %1241 = vmatprep.subr.bf16.mxu0 0
        %1242 = vmatpush1.bf16.msra.mxu0 0
        %1243 = vmatprep.subr.bf16.mxu0 0
        %1244 = vmatpush1.bf16.msra.mxu0 0
        %1245 = vmatprep.subr.bf16.mxu0 0
        %1246 = vmatpush1.bf16.msra.mxu0 0
        %1247 = vmatprep.subr.bf16.mxu0 0
        %1248 = vmatpush1.bf16.msra.mxu0 0
        %1249 = vmatprep.subr.bf16.mxu0 0
        %1250 = vmatpush1.bf16.msra.mxu0 0
        %1251 = vmatprep.subr.bf16.mxu0 0
        %1252 = vmatpush1.bf16.msra.mxu0 0
        %1253 = vmatprep.subr.bf16.mxu0 0
        %1254 = vmatpush1.bf16.msra.mxu0 0
        %1255 = vmatprep.subr.bf16.mxu0 0
        %1256 = vmatpush1.bf16.msra.mxu0 0
        %1257 = vmatprep.subr.bf16.mxu0 0
        %1258 = vmatpush1.bf16.msra.mxu0 0
        %1259 = vmatprep.subr.bf16.mxu0 0
        %1260 = vmatpush1.bf16.msra.mxu0 0
        %1261 = vmatprep.subr.bf16.mxu0 0
        %1262 = vmatpush1.bf16.msra.mxu0 0
        %1263 = vmatprep.mubr.bf16.mxu0 0
        %1264 = vmatmul.mubr.bf16.gmra.mrb[0].mxu0 %v1229
        %v1265 = vpop.f32.mrb[0].mxu0
        %v1266 = vadd.f32 0.0, %v1265
        %v1267 = vpop.f32.mrb[0].mxu0
        %v1268 = vpop.f32.mrb[0].mxu0
        %v1269 = vadd.f32 0.0, %v1268
        %v1270 = vpop.f32.mrb[0].mxu0
        %1271 = vdwg.mxu0
        %v1272 = vadd.f32 %v1204, %v1266
        %v1273 = vadd.f32 %v1205, %v1269
        %v1274 = vld [vmem:[%s3 + $0x70] sm:$0xf]
        %v1275 = vld [vmem:[%s3 + $0x74] sm:$0xf]
        %v1276 = vld [vmem:[%s3 + $0x78] sm:$0xf]
        %v1277 = vld [vmem:[%s3 + $0x7c] sm:$0xf]
        %v1278 = vshrl.u32 %v1147, 16
        %v1280 = vshll.u32 %v1147, 16
        %v1282 = vrot.slane %v1280, 1
        %v1283 = vor.u32 %v1278, %v1282
        %v1288 = vunpack.c.l.b16 %v1274
        %v1289 = vunpack.c.l.b16 %v1275
        %v1290 = vunpack.c.l.b16 %v1276
        %v1291 = vunpack.c.l.b16 %v1277
        %v1292 = vpack.c.b16 %v1289, %v1288
        %v1293 = vpack.c.b16 %v1291, %v1290
        %v1297 = vsel %vm819, %v1283, 0
        %1299 = vmatprep.subr.bf16.mxu0 0
        %1300 = vmatpush1.bf16.msra.mxu0 %v1292
        %1301 = vmatprep.subr.bf16.mxu0 0
        %1302 = vmatpush1.bf16.msra.mxu0 %v1293
        %1303 = vmatprep.subr.bf16.mxu0 0
        %1304 = vmatpush1.bf16.msra.mxu0 0
        %1305 = vmatprep.subr.bf16.mxu0 0
        %1306 = vmatpush1.bf16.msra.mxu0 0
        %1307 = vmatprep.subr.bf16.mxu0 0
        %1308 = vmatpush1.bf16.msra.mxu0 0
        %1309 = vmatprep.subr.bf16.mxu0 0
        %1310 = vmatpush1.bf16.msra.mxu0 0
        %1311 = vmatprep.subr.bf16.mxu0 0
        %1312 = vmatpush1.bf16.msra.mxu0 0
        %1313 = vmatprep.subr.bf16.mxu0 0
        %1314 = vmatpush1.bf16.msra.mxu0 0
        %1315 = vmatprep.subr.bf16.mxu0 0
        %1316 = vmatpush1.bf16.msra.mxu0 0
        %1317 = vmatprep.subr.bf16.mxu0 0
        %1318 = vmatpush1.bf16.msra.mxu0 0
        %1319 = vmatprep.subr.bf16.mxu0 0
        %1320 = vmatpush1.bf16.msra.mxu0 0
        %1321 = vmatprep.subr.bf16.mxu0 0
        %1322 = vmatpush1.bf16.msra.mxu0 0
        %1323 = vmatprep.subr.bf16.mxu0 0
        %1324 = vmatpush1.bf16.msra.mxu0 0
        %1325 = vmatprep.subr.bf16.mxu0 0
        %1326 = vmatpush1.bf16.msra.mxu0 0
        %1327 = vmatprep.subr.bf16.mxu0 0
        %1328 = vmatpush1.bf16.msra.mxu0 0
        %1329 = vmatprep.subr.bf16.mxu0 0
        %1330 = vmatpush1.bf16.msra.mxu0 0
        %1331 = vmatprep.mubr.bf16.mxu0 0
        %1332 = vmatmul.mubr.bf16.gmra.mrb[0].mxu0 %v1297
        %v1333 = vpop.f32.mrb[0].mxu0
        %v1334 = vadd.f32 0.0, %v1333
        %v1335 = vpop.f32.mrb[0].mxu0
        %v1336 = vpop.f32.mrb[0].mxu0
        %v1337 = vadd.f32 0.0, %v1336
        %v1338 = vpop.f32.mrb[0].mxu0
        %1339 = vdwg.mxu0
        %v1340 = vadd.f32 %v1272, %v1334
        %v1341 = vadd.f32 %v1273, %v1337
        %v1342 = vld [vmem:[%s3 + $0x80] sm:$0xf]
        %v1343 = vld [vmem:[%s3 + $0x84] sm:$0xf]
        %v1344 = vld [vmem:[%s3 + $0x88] sm:$0xf]
        %v1345 = vld [vmem:[%s3 + $0x8c] sm:$0xf]
        %s1346 = sadd.s32 %s787, 2
        %s1347 = smul.u32 %s1346, 4
        %s1348 = smul.addr %s1347, 4
        %s1349 = scalar_lea.vmem [#allocation2], %s1348
        %v1350 = vld [vmem:[%s1349] sm:$0xf]
        %v1351 = vld [vmem:[%s1349 + $0x4] sm:$0x1]
        %v1354 = vunpack.c.l.b16 %v1350
        %v1355 = vunpack.c.l.b16 %v1351
        %v1356 = vpack.c.b16 %v1355, %v1354
        %v1361 = vunpack.c.l.b16 %v1342
        %v1362 = vunpack.c.l.b16 %v1343
        %v1363 = vunpack.c.l.b16 %v1344
        %v1364 = vunpack.c.l.b16 %v1345
        %v1365 = vpack.c.b16 %v1362, %v1361
        %v1366 = vpack.c.b16 %v1364, %v1363
        %v1370 = vsel %vm819, %v1356, 0
        %1372 = vmatprep.subr.bf16.mxu0 0
        %1373 = vmatpush1.bf16.msra.mxu0 %v1365
        %1374 = vmatprep.subr.bf16.mxu0 0
        %1375 = vmatpush1.bf16.msra.mxu0 %v1366
        %1376 = vmatprep.subr.bf16.mxu0 0
        %1377 = vmatpush1.bf16.msra.mxu0 0
        %1378 = vmatprep.subr.bf16.mxu0 0
        %1379 = vmatpush1.bf16.msra.mxu0 0
        %1380 = vmatprep.subr.bf16.mxu0 0
        %1381 = vmatpush1.bf16.msra.mxu0 0
        %1382 = vmatprep.subr.bf16.mxu0 0
        %1383 = vmatpush1.bf16.msra.mxu0 0
        %1384 = vmatprep.subr.bf16.mxu0 0
        %1385 = vmatpush1.bf16.msra.mxu0 0
        %1386 = vmatprep.subr.bf16.mxu0 0
        %1387 = vmatpush1.bf16.msra.mxu0 0
        %1388 = vmatprep.subr.bf16.mxu0 0
        %1389 = vmatpush1.bf16.msra.mxu0 0
        %1390 = vmatprep.subr.bf16.mxu0 0
        %1391 = vmatpush1.bf16.msra.mxu0 0
        %1392 = vmatprep.subr.bf16.mxu0 0
        %1393 = vmatpush1.bf16.msra.mxu0 0
        %1394 = vmatprep.subr.bf16.mxu0 0
        %1395 = vmatpush1.bf16.msra.mxu0 0
        %1396 = vmatprep.subr.bf16.mxu0 0
        %1397 = vmatpush1.bf16.msra.mxu0 0
        %1398 = vmatprep.subr.bf16.mxu0 0
        %1399 = vmatpush1.bf16.msra.mxu0 0
        %1400 = vmatprep.subr.bf16.mxu0 0
        %1401 = vmatpush1.bf16.msra.mxu0 0
        %1402 = vmatprep.subr.bf16.mxu0 0
        %1403 = vmatpush1.bf16.msra.mxu0 0
        %1404 = vmatprep.mubr.bf16.mxu0 0
        %1405 = vmatmul.mubr.bf16.gmra.mrb[0].mxu0 %v1370
        %v1406 = vpop.f32.mrb[0].mxu0
        %v1407 = vadd.f32 0.0, %v1406
        %v1408 = vpop.f32.mrb[0].mxu0
        %v1409 = vpop.f32.mrb[0].mxu0
        %v1410 = vadd.f32 0.0, %v1409
        %v1411 = vpop.f32.mrb[0].mxu0
        %1412 = vdwg.mxu0
        %v1413 = vadd.f32 %v1340, %v1407
        %v1414 = vadd.f32 %v1341, %v1410
        %v1415 = vld [vmem:[%s3 + $0x90] sm:$0xf]
        %v1416 = vld [vmem:[%s3 + $0x94] sm:$0xf]
        %v1417 = vld [vmem:[%s3 + $0x98] sm:$0xf]
        %v1418 = vld [vmem:[%s3 + $0x9c] sm:$0xf]
        %s1419 = sadd.s32 2, %s1347
        %s1420 = smul.addr %s1419, 4
        %s1421 = scalar_lea.vmem [#allocation2], %s1420
        %v1422 = vld [vmem:[%s1421] sm:$0xf]
        %v1423 = vld [vmem:[%s1421 + $0x4] sm:$0x1]
        %v1426 = vunpack.c.l.b16 %v1422
        %v1427 = vunpack.c.l.b16 %v1423
        %v1428 = vpack.c.b16 %v1427, %v1426
        %v1433 = vunpack.c.l.b16 %v1415
        %v1434 = vunpack.c.l.b16 %v1416
        %v1435 = vunpack.c.l.b16 %v1417
        %v1436 = vunpack.c.l.b16 %v1418
        %v1437 = vpack.c.b16 %v1434, %v1433
        %v1438 = vpack.c.b16 %v1436, %v1435
        %v1442 = vsel %vm819, %v1428, 0
        %1444 = vmatprep.subr.bf16.mxu0 0
        %1445 = vmatpush1.bf16.msra.mxu0 %v1437
        %1446 = vmatprep.subr.bf16.mxu0 0
        %1447 = vmatpush1.bf16.msra.mxu0 %v1438
        %1448 = vmatprep.subr.bf16.mxu0 0
        %1449 = vmatpush1.bf16.msra.mxu0 0
        %1450 = vmatprep.subr.bf16.mxu0 0
        %1451 = vmatpush1.bf16.msra.mxu0 0
        %1452 = vmatprep.subr.bf16.mxu0 0
        %1453 = vmatpush1.bf16.msra.mxu0 0
        %1454 = vmatprep.subr.bf16.mxu0 0
        %1455 = vmatpush1.bf16.msra.mxu0 0
        %1456 = vmatprep.subr.bf16.mxu0 0
        %1457 = vmatpush1.bf16.msra.mxu0 0
        %1458 = vmatprep.subr.bf16.mxu0 0
        %1459 = vmatpush1.bf16.msra.mxu0 0
        %1460 = vmatprep.subr.bf16.mxu0 0
        %1461 = vmatpush1.bf16.msra.mxu0 0
        %1462 = vmatprep.subr.bf16.mxu0 0
        %1463 = vmatpush1.bf16.msra.mxu0 0
        %1464 = vmatprep.subr.bf16.mxu0 0
        %1465 = vmatpush1.bf16.msra.mxu0 0
        %1466 = vmatprep.subr.bf16.mxu0 0
        %1467 = vmatpush1.bf16.msra.mxu0 0
        %1468 = vmatprep.subr.bf16.mxu0 0
        %1469 = vmatpush1.bf16.msra.mxu0 0
        %1470 = vmatprep.subr.bf16.mxu0 0
        %1471 = vmatpush1.bf16.msra.mxu0 0
        %1472 = vmatprep.subr.bf16.mxu0 0
        %1473 = vmatpush1.bf16.msra.mxu0 0
        %1474 = vmatprep.subr.bf16.mxu0 0
        %1475 = vmatpush1.bf16.msra.mxu0 0
        %1476 = vmatprep.mubr.bf16.mxu0 0
        %1477 = vmatmul.mubr.bf16.gmra.mrb[0].mxu0 %v1442
        %v1478 = vpop.f32.mrb[0].mxu0
        %v1479 = vadd.f32 0.0, %v1478
        %v1480 = vpop.f32.mrb[0].mxu0
        %v1481 = vpop.f32.mrb[0].mxu0
        %v1482 = vadd.f32 0.0, %v1481
        %v1483 = vpop.f32.mrb[0].mxu0
        %1484 = vdwg.mxu0
        %v1485 = vadd.f32 %v1413, %v1479
        %v1486 = vadd.f32 %v1414, %v1482
        %v1487 = vld [vmem:[%s3 + $0xa0] sm:$0xf]
        %v1488 = vld [vmem:[%s3 + $0xa4] sm:$0xf]
        %v1489 = vld [vmem:[%s3 + $0xa8] sm:$0xf]
        %v1490 = vld [vmem:[%s3 + $0xac] sm:$0xf]
        %v1491 = vshrl.u32 %v1356, 16
        %v1493 = vshll.u32 %v1356, 16
        %v1495 = vrot.slane %v1493, 1
        %v1496 = vor.u32 %v1491, %v1495
        %v1501 = vunpack.c.l.b16 %v1487
        %v1502 = vunpack.c.l.b16 %v1488
        %v1503 = vunpack.c.l.b16 %v1489
        %v1504 = vunpack.c.l.b16 %v1490
        %v1505 = vpack.c.b16 %v1502, %v1501
        %v1506 = vpack.c.b16 %v1504, %v1503
        %v1510 = vsel %vm819, %v1496, 0
        %1512 = vmatprep.subr.bf16.mxu0 0
        %1513 = vmatpush1.bf16.msra.mxu0 %v1505
        %1514 = vmatprep.subr.bf16.mxu0 0
        %1515 = vmatpush1.bf16.msra.mxu0 %v1506
        %1516 = vmatprep.subr.bf16.mxu0 0
        %1517 = vmatpush1.bf16.msra.mxu0 0
        %1518 = vmatprep.subr.bf16.mxu0 0
        %1519 = vmatpush1.bf16.msra.mxu0 0
        %1520 = vmatprep.subr.bf16.mxu0 0
        %1521 = vmatpush1.bf16.msra.mxu0 0
        %1522 = vmatprep.subr.bf16.mxu0 0
        %1523 = vmatpush1.bf16.msra.mxu0 0
        %1524 = vmatprep.subr.bf16.mxu0 0
        %1525 = vmatpush1.bf16.msra.mxu0 0
        %1526 = vmatprep.subr.bf16.mxu0 0
        %1527 = vmatpush1.bf16.msra.mxu0 0
        %1528 = vmatprep.subr.bf16.mxu0 0
        %1529 = vmatpush1.bf16.msra.mxu0 0
        %1530 = vmatprep.subr.bf16.mxu0 0
        %1531 = vmatpush1.bf16.msra.mxu0 0
        %1532 = vmatprep.subr.bf16.mxu0 0
        %1533 = vmatpush1.bf16.msra.mxu0 0
        %1534 = vmatprep.subr.bf16.mxu0 0
        %1535 = vmatpush1.bf16.msra.mxu0 0
        %1536 = vmatprep.subr.bf16.mxu0 0
        %1537 = vmatpush1.bf16.msra.mxu0 0
        %1538 = vmatprep.subr.bf16.mxu0 0
        %1539 = vmatpush1.bf16.msra.mxu0 0
        %1540 = vmatprep.subr.bf16.mxu0 0
        %1541 = vmatpush1.bf16.msra.mxu0 0
        %1542 = vmatprep.subr.bf16.mxu0 0
        %1543 = vmatpush1.bf16.msra.mxu0 0
        %1544 = vmatprep.mubr.bf16.mxu0 0
        %1545 = vmatmul.mubr.bf16.gmra.mrb[0].mxu0 %v1510
        %v1546 = vpop.f32.mrb[0].mxu0
        %v1547 = vadd.f32 0.0, %v1546
        %v1548 = vpop.f32.mrb[0].mxu0
        %v1549 = vpop.f32.mrb[0].mxu0
        %v1550 = vadd.f32 0.0, %v1549
        %v1551 = vpop.f32.mrb[0].mxu0
        %1552 = vdwg.mxu0
        %v1553 = vadd.f32 %v1485, %v1547
        %v1554 = vadd.f32 %v1486, %v1550
        %v1555 = vld [vmem:[%s3 + $0xb0] sm:$0xf]
        %v1556 = vld [vmem:[%s3 + $0xb4] sm:$0xf]
        %v1557 = vld [vmem:[%s3 + $0xb8] sm:$0xf]
        %v1558 = vld [vmem:[%s3 + $0xbc] sm:$0xf]
        %v1559 = vshrl.u32 %v1428, 16
        %v1561 = vshll.u32 %v1428, 16
        %v1563 = vrot.slane %v1561, 1
        %v1564 = vor.u32 %v1559, %v1563
        %v1569 = vunpack.c.l.b16 %v1555
        %v1570 = vunpack.c.l.b16 %v1556
        %v1571 = vunpack.c.l.b16 %v1557
        %v1572 = vunpack.c.l.b16 %v1558
        %v1573 = vpack.c.b16 %v1570, %v1569
        %v1574 = vpack.c.b16 %v1572, %v1571
        %v1578 = vsel %vm819, %v1564, 0
        %1580 = vmatprep.subr.bf16.mxu0 0
        %1581 = vmatpush1.bf16.msra.mxu0 %v1573
        %1582 = vmatprep.subr.bf16.mxu0 0
        %1583 = vmatpush1.bf16.msra.mxu0 %v1574
        %1584 = vmatprep.subr.bf16.mxu0 0
        %1585 = vmatpush1.bf16.msra.mxu0 0
        %1586 = vmatprep.subr.bf16.mxu0 0
        %1587 = vmatpush1.bf16.msra.mxu0 0
        %1588 = vmatprep.subr.bf16.mxu0 0
        %1589 = vmatpush1.bf16.msra.mxu0 0
        %1590 = vmatprep.subr.bf16.mxu0 0
        %1591 = vmatpush1.bf16.msra.mxu0 0
        %1592 = vmatprep.subr.bf16.mxu0 0
        %1593 = vmatpush1.bf16.msra.mxu0 0
        %1594 = vmatprep.subr.bf16.mxu0 0
        %1595 = vmatpush1.bf16.msra.mxu0 0
        %1596 = vmatprep.subr.bf16.mxu0 0
        %1597 = vmatpush1.bf16.msra.mxu0 0
        %1598 = vmatprep.subr.bf16.mxu0 0
        %1599 = vmatpush1.bf16.msra.mxu0 0
        %1600 = vmatprep.subr.bf16.mxu0 0
        %1601 = vmatpush1.bf16.msra.mxu0 0
        %1602 = vmatprep.subr.bf16.mxu0 0
        %1603 = vmatpush1.bf16.msra.mxu0 0
        %1604 = vmatprep.subr.bf16.mxu0 0
        %1605 = vmatpush1.bf16.msra.mxu0 0
        %1606 = vmatprep.subr.bf16.mxu0 0
        %1607 = vmatpush1.bf16.msra.mxu0 0
        %1608 = vmatprep.subr.bf16.mxu0 0
        %1609 = vmatpush1.bf16.msra.mxu0 0
        %1610 = vmatprep.subr.bf16.mxu0 0
        %1611 = vmatpush1.bf16.msra.mxu0 0
        %1612 = vmatprep.mubr.bf16.mxu0 0
        %1613 = vmatmul.mubr.bf16.gmra.mrb[0].mxu0 %v1578
        %v1614 = vpop.f32.mrb[0].mxu0
        %v1615 = vadd.f32 0.0, %v1614
        %v1616 = vpop.f32.mrb[0].mxu0
        %v1617 = vpop.f32.mrb[0].mxu0
        %v1618 = vadd.f32 0.0, %v1617
        %v1619 = vpop.f32.mrb[0].mxu0
        %1620 = vdwg.mxu0
        %v1621 = vadd.f32 %v1553, %v1615
        %v1622 = vadd.f32 %v1554, %v1618
        %v1623 = vld [vmem:[%s3 + $0xc0] sm:$0xf]
        %v1624 = vld [vmem:[%s3 + $0xc4] sm:$0xf]
        %v1625 = vld [vmem:[%s3 + $0xc8] sm:$0xf]
        %v1626 = vld [vmem:[%s3 + $0xcc] sm:$0xf]
        %s1627 = sadd.s32 %s787, 3
        %s1628 = smul.u32 %s1627, 4
        %s1629 = smul.addr %s1628, 4
        %s1630 = scalar_lea.vmem [#allocation2], %s1629
        %v1631 = vld [vmem:[%s1630] sm:$0xf]
        %v1632 = vld [vmem:[%s1630 + $0x4] sm:$0x1]
        %v1635 = vunpack.c.l.b16 %v1631
        %v1636 = vunpack.c.l.b16 %v1632
        %v1637 = vpack.c.b16 %v1636, %v1635
        %v1642 = vunpack.c.l.b16 %v1623
        %v1643 = vunpack.c.l.b16 %v1624
        %v1644 = vunpack.c.l.b16 %v1625
        %v1645 = vunpack.c.l.b16 %v1626
        %v1646 = vpack.c.b16 %v1643, %v1642
        %v1647 = vpack.c.b16 %v1645, %v1644
        %v1651 = vsel %vm819, %v1637, 0
        %1653 = vmatprep.subr.bf16.mxu0 0
        %1654 = vmatpush1.bf16.msra.mxu0 %v1646
        %1655 = vmatprep.subr.bf16.mxu0 0
        %1656 = vmatpush1.bf16.msra.mxu0 %v1647
        %1657 = vmatprep.subr.bf16.mxu0 0
        %1658 = vmatpush1.bf16.msra.mxu0 0
        %1659 = vmatprep.subr.bf16.mxu0 0
        %1660 = vmatpush1.bf16.msra.mxu0 0
        %1661 = vmatprep.subr.bf16.mxu0 0
        %1662 = vmatpush1.bf16.msra.mxu0 0
        %1663 = vmatprep.subr.bf16.mxu0 0
        %1664 = vmatpush1.bf16.msra.mxu0 0
        %1665 = vmatprep.subr.bf16.mxu0 0
        %1666 = vmatpush1.bf16.msra.mxu0 0
        %1667 = vmatprep.subr.bf16.mxu0 0
        %1668 = vmatpush1.bf16.msra.mxu0 0
        %1669 = vmatprep.subr.bf16.mxu0 0
        %1670 = vmatpush1.bf16.msra.mxu0 0
        %1671 = vmatprep.subr.bf16.mxu0 0
        %1672 = vmatpush1.bf16.msra.mxu0 0
        %1673 = vmatprep.subr.bf16.mxu0 0
        %1674 = vmatpush1.bf16.msra.mxu0 0
        %1675 = vmatprep.subr.bf16.mxu0 0
        %1676 = vmatpush1.bf16.msra.mxu0 0
        %1677 = vmatprep.subr.bf16.mxu0 0
        %1678 = vmatpush1.bf16.msra.mxu0 0
        %1679 = vmatprep.subr.bf16.mxu0 0
        %1680 = vmatpush1.bf16.msra.mxu0 0
        %1681 = vmatprep.subr.bf16.mxu0 0
        %1682 = vmatpush1.bf16.msra.mxu0 0
        %1683 = vmatprep.subr.bf16.mxu0 0
        %1684 = vmatpush1.bf16.msra.mxu0 0
        %1685 = vmatprep.mubr.bf16.mxu0 0
        %1686 = vmatmul.mubr.bf16.gmra.mrb[0].mxu0 %v1651
        %v1687 = vpop.f32.mrb[0].mxu0
        %v1688 = vadd.f32 0.0, %v1687
        %v1689 = vpop.f32.mrb[0].mxu0
        %v1690 = vpop.f32.mrb[0].mxu0
        %v1691 = vadd.f32 0.0, %v1690
        %v1692 = vpop.f32.mrb[0].mxu0
        %1693 = vdwg.mxu0
        %v1694 = vadd.f32 %v1621, %v1688
        %v1695 = vadd.f32 %v1622, %v1691
        %v1696 = vld [vmem:[%s3 + $0xd0] sm:$0xf]
        %v1697 = vld [vmem:[%s3 + $0xd4] sm:$0xf]
        %v1698 = vld [vmem:[%s3 + $0xd8] sm:$0xf]
        %v1699 = vld [vmem:[%s3 + $0xdc] sm:$0xf]
        %s1700 = sadd.s32 2, %s1628
        %s1701 = smul.addr %s1700, 4
        %s1702 = scalar_lea.vmem [#allocation2], %s1701
        %v1703 = vld [vmem:[%s1702] sm:$0xf]
        %v1704 = vld [vmem:[%s1702 + $0x4] sm:$0x1]
        %v1707 = vunpack.c.l.b16 %v1703
        %v1708 = vunpack.c.l.b16 %v1704
        %v1709 = vpack.c.b16 %v1708, %v1707
        %v1714 = vunpack.c.l.b16 %v1696
        %v1715 = vunpack.c.l.b16 %v1697
        %v1716 = vunpack.c.l.b16 %v1698
        %v1717 = vunpack.c.l.b16 %v1699
        %v1718 = vpack.c.b16 %v1715, %v1714
        %v1719 = vpack.c.b16 %v1717, %v1716
        %v1723 = vsel %vm819, %v1709, 0
        %1725 = vmatprep.subr.bf16.mxu0 0
        %1726 = vmatpush1.bf16.msra.mxu0 %v1718
        %1727 = vmatprep.subr.bf16.mxu0 0
        %1728 = vmatpush1.bf16.msra.mxu0 %v1719
        %1729 = vmatprep.subr.bf16.mxu0 0
        %1730 = vmatpush1.bf16.msra.mxu0 0
        %1731 = vmatprep.subr.bf16.mxu0 0
        %1732 = vmatpush1.bf16.msra.mxu0 0
        %1733 = vmatprep.subr.bf16.mxu0 0
        %1734 = vmatpush1.bf16.msra.mxu0 0
        %1735 = vmatprep.subr.bf16.mxu0 0
        %1736 = vmatpush1.bf16.msra.mxu0 0
        %1737 = vmatprep.subr.bf16.mxu0 0
        %1738 = vmatpush1.bf16.msra.mxu0 0
        %1739 = vmatprep.subr.bf16.mxu0 0
        %1740 = vmatpush1.bf16.msra.mxu0 0
        %1741 = vmatprep.subr.bf16.mxu0 0
        %1742 = vmatpush1.bf16.msra.mxu0 0
        %1743 = vmatprep.subr.bf16.mxu0 0
        %1744 = vmatpush1.bf16.msra.mxu0 0
        %1745 = vmatprep.subr.bf16.mxu0 0
        %1746 = vmatpush1.bf16.msra.mxu0 0
        %1747 = vmatprep.subr.bf16.mxu0 0
        %1748 = vmatpush1.bf16.msra.mxu0 0
        %1749 = vmatprep.subr.bf16.mxu0 0
        %1750 = vmatpush1.bf16.msra.mxu0 0
        %1751 = vmatprep.subr.bf16.mxu0 0
        %1752 = vmatpush1.bf16.msra.mxu0 0
        %1753 = vmatprep.subr.bf16.mxu0 0
        %1754 = vmatpush1.bf16.msra.mxu0 0
        %1755 = vmatprep.subr.bf16.mxu0 0
        %1756 = vmatpush1.bf16.msra.mxu0 0
        %1757 = vmatprep.mubr.bf16.mxu0 0
        %1758 = vmatmul.mubr.bf16.gmra.mrb[0].mxu0 %v1723
        %v1759 = vpop.f32.mrb[0].mxu0
        %v1760 = vadd.f32 0.0, %v1759
        %v1761 = vpop.f32.mrb[0].mxu0
        %v1762 = vpop.f32.mrb[0].mxu0
        %v1763 = vadd.f32 0.0, %v1762
        %v1764 = vpop.f32.mrb[0].mxu0
        %1765 = vdwg.mxu0
        %v1766 = vadd.f32 %v1694, %v1760
        %v1767 = vadd.f32 %v1695, %v1763
        %v1768 = vld [vmem:[%s3 + $0xe0] sm:$0xf]
        %v1769 = vld [vmem:[%s3 + $0xe4] sm:$0xf]
        %v1770 = vld [vmem:[%s3 + $0xe8] sm:$0xf]
        %v1771 = vld [vmem:[%s3 + $0xec] sm:$0xf]
        %v1772 = vshrl.u32 %v1637, 16
        %v1774 = vshll.u32 %v1637, 16
        %v1776 = vrot.slane %v1774, 1
        %v1777 = vor.u32 %v1772, %v1776
        %v1782 = vunpack.c.l.b16 %v1768
        %v1783 = vunpack.c.l.b16 %v1769
        %v1784 = vunpack.c.l.b16 %v1770
        %v1785 = vunpack.c.l.b16 %v1771
        %v1786 = vpack.c.b16 %v1783, %v1782
        %v1787 = vpack.c.b16 %v1785, %v1784
        %v1791 = vsel %vm819, %v1777, 0
        %1793 = vmatprep.subr.bf16.mxu0 0
        %1794 = vmatpush1.bf16.msra.mxu0 %v1786
        %1795 = vmatprep.subr.bf16.mxu0 0
        %1796 = vmatpush1.bf16.msra.mxu0 %v1787
        %1797 = vmatprep.subr.bf16.mxu0 0
        %1798 = vmatpush1.bf16.msra.mxu0 0
        %1799 = vmatprep.subr.bf16.mxu0 0
        %1800 = vmatpush1.bf16.msra.mxu0 0
        %1801 = vmatprep.subr.bf16.mxu0 0
        %1802 = vmatpush1.bf16.msra.mxu0 0
        %1803 = vmatprep.subr.bf16.mxu0 0
        %1804 = vmatpush1.bf16.msra.mxu0 0
        %1805 = vmatprep.subr.bf16.mxu0 0
        %1806 = vmatpush1.bf16.msra.mxu0 0
        %1807 = vmatprep.subr.bf16.mxu0 0
        %1808 = vmatpush1.bf16.msra.mxu0 0
        %1809 = vmatprep.subr.bf16.mxu0 0
        %1810 = vmatpush1.bf16.msra.mxu0 0
        %1811 = vmatprep.subr.bf16.mxu0 0
        %1812 = vmatpush1.bf16.msra.mxu0 0
        %1813 = vmatprep.subr.bf16.mxu0 0
        %1814 = vmatpush1.bf16.msra.mxu0 0
        %1815 = vmatprep.subr.bf16.mxu0 0
        %1816 = vmatpush1.bf16.msra.mxu0 0
        %1817 = vmatprep.subr.bf16.mxu0 0
        %1818 = vmatpush1.bf16.msra.mxu0 0
        %1819 = vmatprep.subr.bf16.mxu0 0
        %1820 = vmatpush1.bf16.msra.mxu0 0
        %1821 = vmatprep.subr.bf16.mxu0 0
        %1822 = vmatpush1.bf16.msra.mxu0 0
        %1823 = vmatprep.subr.bf16.mxu0 0
        %1824 = vmatpush1.bf16.msra.mxu0 0
        %1825 = vmatprep.mubr.bf16.mxu0 0
        %1826 = vmatmul.mubr.bf16.gmra.mrb[0].mxu0 %v1791
        %v1827 = vpop.f32.mrb[0].mxu0
        %v1828 = vadd.f32 0.0, %v1827
        %v1829 = vpop.f32.mrb[0].mxu0
        %v1830 = vpop.f32.mrb[0].mxu0
        %v1831 = vadd.f32 0.0, %v1830
        %v1832 = vpop.f32.mrb[0].mxu0
        %1833 = vdwg.mxu0
        %v1834 = vadd.f32 %v1766, %v1828
        %v1835 = vadd.f32 %v1767, %v1831
        %v1836 = vld [vmem:[%s3 + $0xf0] sm:$0xf]
        %v1837 = vld [vmem:[%s3 + $0xf4] sm:$0xf]
        %v1838 = vld [vmem:[%s3 + $0xf8] sm:$0xf]
        %v1839 = vld [vmem:[%s3 + $0xfc] sm:$0xf]
        %v1840 = vshrl.u32 %v1709, 16
        %v1842 = vshll.u32 %v1709, 16
        %v1844 = vrot.slane %v1842, 1
        %v1845 = vor.u32 %v1840, %v1844
        %v1850 = vunpack.c.l.b16 %v1836
        %v1851 = vunpack.c.l.b16 %v1837
        %v1852 = vunpack.c.l.b16 %v1838
        %v1853 = vunpack.c.l.b16 %v1839
        %v1854 = vpack.c.b16 %v1851, %v1850
        %v1855 = vpack.c.b16 %v1853, %v1852
        %v1859 = vsel %vm819, %v1845, 0
        %1861 = vmatprep.subr.bf16.mxu0 0
        %1862 = vmatpush1.bf16.msra.mxu0 %v1854
        %1863 = vmatprep.subr.bf16.mxu0 0
        %1864 = vmatpush1.bf16.msra.mxu0 %v1855
        %1865 = vmatprep.subr.bf16.mxu0 0
        %1866 = vmatpush1.bf16.msra.mxu0 0
        %1867 = vmatprep.subr.bf16.mxu0 0
        %1868 = vmatpush1.bf16.msra.mxu0 0
        %1869 = vmatprep.subr.bf16.mxu0 0
        %1870 = vmatpush1.bf16.msra.mxu0 0
        %1871 = vmatprep.subr.bf16.mxu0 0
        %1872 = vmatpush1.bf16.msra.mxu0 0
        %1873 = vmatprep.subr.bf16.mxu0 0
        %1874 = vmatpush1.bf16.msra.mxu0 0
        %1875 = vmatprep.subr.bf16.mxu0 0
        %1876 = vmatpush1.bf16.msra.mxu0 0
        %1877 = vmatprep.subr.bf16.mxu0 0
        %1878 = vmatpush1.bf16.msra.mxu0 0
        %1879 = vmatprep.subr.bf16.mxu0 0
        %1880 = vmatpush1.bf16.msra.mxu0 0
        %1881 = vmatprep.subr.bf16.mxu0 0
        %1882 = vmatpush1.bf16.msra.mxu0 0
        %1883 = vmatprep.subr.bf16.mxu0 0
        %1884 = vmatpush1.bf16.msra.mxu0 0
        %1885 = vmatprep.subr.bf16.mxu0 0
        %1886 = vmatpush1.bf16.msra.mxu0 0
        %1887 = vmatprep.subr.bf16.mxu0 0
        %1888 = vmatpush1.bf16.msra.mxu0 0
        %1889 = vmatprep.subr.bf16.mxu0 0
        %1890 = vmatpush1.bf16.msra.mxu0 0
        %1891 = vmatprep.subr.bf16.mxu0 0
        %1892 = vmatpush1.bf16.msra.mxu0 0
        %1893 = vmatprep.mubr.bf16.mxu0 0
        %1894 = vmatmul.mubr.bf16.gmra.mrb[0].mxu0 %v1859
        %v1895 = vpop.f32.mrb[0].mxu0
        %v1896 = vadd.f32 0.0, %v1895
        %v1897 = vpop.f32.mrb[0].mxu0
        %v1898 = vpop.f32.mrb[0].mxu0
        %v1899 = vadd.f32 0.0, %v1898
        %v1900 = vpop.f32.mrb[0].mxu0
        %1901 = vdwg.mxu0
        %v1902 = vadd.f32 %v1834, %v1896
        %v1903 = vadd.f32 %v1835, %v1899
        %v1904 = vld [vmem:[%s4] sm:$0x1]
        %v1906 = vlaneseq
        %v1907 = vshrl.u32 %v1906, 7
        %v1908 = vsub.s32 0, %v1907
        %v1909 = vrot.slane %v1904, %v1908
        %v1911 = vadd.f32 %v1902, %v1909
        %v1912 = vadd.f32 %v1903, %v1909
        %v1913 = vmax.f32 %v1911, 0.0
        %v1914 = vmax.f32 %v1912, 0.0
        %v1915 = vpack.c.bf16 %v1914, %v1913
        %v1917 = vunpack.c.l.b16 %v1915
        %v1918 = vunpack.c.h.b16 %v1915
        %v1919 = vpack.c.b16 %v1917, %v1917
        %v1920 = vpack.c.b16 %v1918, %v1918
        %s1923 = smul.addr %s787, 4
        %s1924 = scalar_lea.vmem [#allocation3], %s1923
        %vm1925 = vcmask 519168
        %1926 = vst.msk [vmem:[%s1924] sm:$0xf] %vm1925, %v1919
        %vm1927 = vcmask 516096
        %vm1928 = vsmask.f32 256
        %vm1929 = vmand %vm1927, %vm1928
        %v1930 = vld [vmem:[%s1924 + $0x4] sm:$0x1]
        %v1931 = vsel %vm1929, %v1920, %v1930
        %1932 = vst [vmem:[%s1924 + $0x4] sm:$0x1] %v1931
      $region60: #{ddqn_forward.2} parent=47 // loop_footer
        %s782 = sadd.s32 1, %s778
      $region61: #{ddqn_forward.2} parent=47 // loop_footer_branch
        %777 = sbr.rel target = $region57
      $region62: #{ddqn_forward.2} parent=47 // loop_exit
        _
      loop: start=0, step=1, limit=7
      $region63: #{ddqn_forward.2} parent=47 // loop_pre_header
        _
      $region64: #{ddqn_forward.2} parent=47 // loop_header
        %s1934 = sphi 0, %s1938
        %p1935 = scmp.ge.s32.totalorder %s1934, 7
      $region65: #{ddqn_forward.2} parent=47 // loop_header_branch
        %1937 = sbr.rel (%p1935) target = $region69
      $region66: #{ddqn_forward.2} parent=47 // loop_body
        %v1939 = vld [vmem:[%s5] sm:$0xf]
        %v1940 = vld [vmem:[%s5 + $0x4] sm:$0xf]
        %v1941 = vld [vmem:[%s5 + $0x8] sm:$0xf]
        %v1942 = vld [vmem:[%s5 + $0xc] sm:$0xf]
        %v1943 = vld [vmem:[%s5 + $0x10] sm:$0xf]
        %v1944 = vld [vmem:[%s5 + $0x14] sm:$0xf]
        %v1945 = vld [vmem:[%s5 + $0x18] sm:$0xf]
        %v1946 = vld [vmem:[%s5 + $0x1c] sm:$0xf]
        %s1947 = smul.u32 %s1934, 2
        %s1948 = smul.addr %s1947, 4
        %s1949 = scalar_lea.vmem [#allocation3], %s1948
        %v1950 = vld [vmem:[%s1949] sm:$0xf]
        %v1951 = vld [vmem:[%s5 + $0x20] sm:$0xf]
        %v1952 = vld [vmem:[%s5 + $0x24] sm:$0xf]
        %v1953 = vld [vmem:[%s5 + $0x28] sm:$0xf]
        %v1954 = vld [vmem:[%s5 + $0x2c] sm:$0xf]
        %v1955 = vld [vmem:[%s5 + $0x30] sm:$0xf]
        %v1956 = vld [vmem:[%s5 + $0x34] sm:$0xf]
        %v1957 = vld [vmem:[%s5 + $0x38] sm:$0xf]
        %v1958 = vld [vmem:[%s5 + $0x3c] sm:$0xf]
        %v1960 = vunpack.c.l.b16 %v1950
        %v1961 = vpack.c.b16 %v1960, %v1960
        %v1963 = vshrl.u32 %v1961, 16
        %v1965 = vshll.u32 %v1961, 16
        %v1967 = vrot.slane %v1965, 1
        %v1968 = vor.u32 %v1963, %v1967
        %v1977 = vunpack.c.l.b16 %v1951
        %v1978 = vunpack.c.l.b16 %v1952
        %v1979 = vunpack.c.l.b16 %v1953
        %v1980 = vunpack.c.l.b16 %v1954
        %v1981 = vunpack.c.l.b16 %v1955
        %v1982 = vunpack.c.l.b16 %v1956
        %v1983 = vunpack.c.l.b16 %v1957
        %v1984 = vunpack.c.l.b16 %v1958
        %v1985 = vpack.c.b16 %v1978, %v1977
        %v1986 = vpack.c.b16 %v1980, %v1979
        %v1987 = vpack.c.b16 %v1982, %v1981
        %v1988 = vpack.c.b16 %v1984, %v1983
        %vm1993 = vcmask 523264
        %v1995 = vsel %vm1993, %v1968, 0
        %1997 = vmatprep.subr.bf16.mxu0 0
        %1998 = vmatpush1.bf16.msra.mxu0 %v1985
        %1999 = vmatprep.subr.bf16.mxu0 0
        %2000 = vmatpush1.bf16.msra.mxu0 %v1986
        %2001 = vmatprep.subr.bf16.mxu0 0
        %2002 = vmatpush1.bf16.msra.mxu0 %v1987
        %2003 = vmatprep.subr.bf16.mxu0 0
        %2004 = vmatpush1.bf16.msra.mxu0 %v1988
        %2005 = vmatprep.subr.bf16.mxu0 0
        %2006 = vmatpush1.bf16.msra.mxu0 0
        %2007 = vmatprep.subr.bf16.mxu0 0
        %2008 = vmatpush1.bf16.msra.mxu0 0
        %2009 = vmatprep.subr.bf16.mxu0 0
        %2010 = vmatpush1.bf16.msra.mxu0 0
        %2011 = vmatprep.subr.bf16.mxu0 0
        %2012 = vmatpush1.bf16.msra.mxu0 0
        %2013 = vmatprep.subr.bf16.mxu0 0
        %2014 = vmatpush1.bf16.msra.mxu0 0
        %2015 = vmatprep.subr.bf16.mxu0 0
        %2016 = vmatpush1.bf16.msra.mxu0 0
        %2017 = vmatprep.subr.bf16.mxu0 0
        %2018 = vmatpush1.bf16.msra.mxu0 0
        %2019 = vmatprep.subr.bf16.mxu0 0
        %2020 = vmatpush1.bf16.msra.mxu0 0
        %2021 = vmatprep.subr.bf16.mxu0 0
        %2022 = vmatpush1.bf16.msra.mxu0 0
        %2023 = vmatprep.subr.bf16.mxu0 0
        %2024 = vmatpush1.bf16.msra.mxu0 0
        %2025 = vmatprep.subr.bf16.mxu0 0
        %2026 = vmatpush1.bf16.msra.mxu0 0
        %2027 = vmatprep.subr.bf16.mxu0 0
        %2028 = vmatpush1.bf16.msra.mxu0 0
        %2029 = vmatprep.mubr.bf16.mxu0 0
        %2030 = vmatmul.mubr.bf16.gmra.mrb[0].mxu0 %v1995
        %v2031 = vpop.f32.mrb[0].mxu0
        %v2032 = vadd.f32 0.0, %v2031
        %v2033 = vpop.f32.mrb[0].mxu0
        %v2034 = vpop.f32.mrb[0].mxu0
        %v2035 = vpop.f32.mrb[0].mxu0
        %2036 = vdwg.mxu0
        %v2045 = vunpack.c.l.b16 %v1939
        %v2046 = vunpack.c.l.b16 %v1940
        %v2047 = vunpack.c.l.b16 %v1941
        %v2048 = vunpack.c.l.b16 %v1942
        %v2049 = vunpack.c.l.b16 %v1943
        %v2050 = vunpack.c.l.b16 %v1944
        %v2051 = vunpack.c.l.b16 %v1945
        %v2052 = vunpack.c.l.b16 %v1946
        %v2053 = vpack.c.b16 %v2046, %v2045
        %v2054 = vpack.c.b16 %v2048, %v2047
        %v2055 = vpack.c.b16 %v2050, %v2049
        %v2056 = vpack.c.b16 %v2052, %v2051
        %v2062 = vsel %vm1993, %v1950, 0
        %2064 = vmatprep.subr.bf16.mxu0 0
        %2065 = vmatpush1.bf16.msra.mxu0 %v2053
        %2066 = vmatprep.subr.bf16.mxu0 0
        %2067 = vmatpush1.bf16.msra.mxu0 %v2054
        %2068 = vmatprep.subr.bf16.mxu0 0
        %2069 = vmatpush1.bf16.msra.mxu0 %v2055
        %2070 = vmatprep.subr.bf16.mxu0 0
        %2071 = vmatpush1.bf16.msra.mxu0 %v2056
        %2072 = vmatprep.subr.bf16.mxu0 0
        %2073 = vmatpush1.bf16.msra.mxu0 0
        %2074 = vmatprep.subr.bf16.mxu0 0
        %2075 = vmatpush1.bf16.msra.mxu0 0
        %2076 = vmatprep.subr.bf16.mxu0 0
        %2077 = vmatpush1.bf16.msra.mxu0 0
        %2078 = vmatprep.subr.bf16.mxu0 0
        %2079 = vmatpush1.bf16.msra.mxu0 0
        %2080 = vmatprep.subr.bf16.mxu0 0
        %2081 = vmatpush1.bf16.msra.mxu0 0
        %2082 = vmatprep.subr.bf16.mxu0 0
        %2083 = vmatpush1.bf16.msra.mxu0 0
        %2084 = vmatprep.subr.bf16.mxu0 0
        %2085 = vmatpush1.bf16.msra.mxu0 0
        %2086 = vmatprep.subr.bf16.mxu0 0
        %2087 = vmatpush1.bf16.msra.mxu0 0
        %2088 = vmatprep.subr.bf16.mxu0 0
        %2089 = vmatpush1.bf16.msra.mxu0 0
        %2090 = vmatprep.subr.bf16.mxu0 0
        %2091 = vmatpush1.bf16.msra.mxu0 0
        %2092 = vmatprep.subr.bf16.mxu0 0
        %2093 = vmatpush1.bf16.msra.mxu0 0
        %2094 = vmatprep.subr.bf16.mxu0 0
        %2095 = vmatpush1.bf16.msra.mxu0 0
        %2096 = vmatprep.mubr.bf16.mxu0 0
        %2097 = vmatmul.mubr.bf16.gmra.mrb[0].mxu0 %v2062
        %v2098 = vpop.f32.mrb[0].mxu0
        %v2099 = vadd.f32 %v2032, %v2098
        %v2100 = vpop.f32.mrb[0].mxu0
        %v2101 = vpop.f32.mrb[0].mxu0
        %v2102 = vpop.f32.mrb[0].mxu0
        %2103 = vdwg.mxu0
        %v2104 = vld [vmem:[%s5 + $0x40] sm:$0xf]
        %v2105 = vld [vmem:[%s5 + $0x44] sm:$0xf]
        %v2106 = vld [vmem:[%s5 + $0x48] sm:$0xf]
        %v2107 = vld [vmem:[%s5 + $0x4c] sm:$0xf]
        %v2108 = vld [vmem:[%s5 + $0x50] sm:$0xf]
        %v2109 = vld [vmem:[%s5 + $0x54] sm:$0xf]
        %v2110 = vld [vmem:[%s5 + $0x58] sm:$0xf]
        %v2111 = vld [vmem:[%s5 + $0x5c] sm:$0xf]
        %v2112 = vld [vmem:[%s1949] sm:$0xe]
        %v2113 = vld [vmem:[%s1949 + $0x4] sm:$0x1]
        %v2116 = vunpack.c.l.b16 %v2112
        %v2117 = vunpack.c.l.b16 %v2113
        %v2118 = vpack.c.b16 %v2117, %v2116
        %v2119 = vrot.slane %v2118, 1
        %v2128 = vunpack.c.l.b16 %v2104
        %v2129 = vunpack.c.l.b16 %v2105
        %v2130 = vunpack.c.l.b16 %v2106
        %v2131 = vunpack.c.l.b16 %v2107
        %v2132 = vunpack.c.l.b16 %v2108
        %v2133 = vunpack.c.l.b16 %v2109
        %v2134 = vunpack.c.l.b16 %v2110
        %v2135 = vunpack.c.l.b16 %v2111
        %v2136 = vpack.c.b16 %v2129, %v2128
        %v2137 = vpack.c.b16 %v2131, %v2130
        %v2138 = vpack.c.b16 %v2133, %v2132
        %v2139 = vpack.c.b16 %v2135, %v2134
        %v2145 = vsel %vm1993, %v2119, 0
        %2147 = vmatprep.subr.bf16.mxu0 0
        %2148 = vmatpush1.bf16.msra.mxu0 %v2136
        %2149 = vmatprep.subr.bf16.mxu0 0
        %2150 = vmatpush1.bf16.msra.mxu0 %v2137
        %2151 = vmatprep.subr.bf16.mxu0 0
        %2152 = vmatpush1.bf16.msra.mxu0 %v2138
        %2153 = vmatprep.subr.bf16.mxu0 0
        %2154 = vmatpush1.bf16.msra.mxu0 %v2139
        %2155 = vmatprep.subr.bf16.mxu0 0
        %2156 = vmatpush1.bf16.msra.mxu0 0
        %2157 = vmatprep.subr.bf16.mxu0 0
        %2158 = vmatpush1.bf16.msra.mxu0 0
        %2159 = vmatprep.subr.bf16.mxu0 0
        %2160 = vmatpush1.bf16.msra.mxu0 0
        %2161 = vmatprep.subr.bf16.mxu0 0
        %2162 = vmatpush1.bf16.msra.mxu0 0
        %2163 = vmatprep.subr.bf16.mxu0 0
        %2164 = vmatpush1.bf16.msra.mxu0 0
        %2165 = vmatprep.subr.bf16.mxu0 0
        %2166 = vmatpush1.bf16.msra.mxu0 0
        %2167 = vmatprep.subr.bf16.mxu0 0
        %2168 = vmatpush1.bf16.msra.mxu0 0
        %2169 = vmatprep.subr.bf16.mxu0 0
        %2170 = vmatpush1.bf16.msra.mxu0 0
        %2171 = vmatprep.subr.bf16.mxu0 0
        %2172 = vmatpush1.bf16.msra.mxu0 0
        %2173 = vmatprep.subr.bf16.mxu0 0
        %2174 = vmatpush1.bf16.msra.mxu0 0
        %2175 = vmatprep.subr.bf16.mxu0 0
        %2176 = vmatpush1.bf16.msra.mxu0 0
        %2177 = vmatprep.subr.bf16.mxu0 0
        %2178 = vmatpush1.bf16.msra.mxu0 0
        %2179 = vmatprep.mubr.bf16.mxu0 0
        %2180 = vmatmul.mubr.bf16.gmra.mrb[0].mxu0 %v2145
        %v2181 = vpop.f32.mrb[0].mxu0
        %v2182 = vadd.f32 0.0, %v2181
        %v2183 = vpop.f32.mrb[0].mxu0
        %v2184 = vpop.f32.mrb[0].mxu0
        %v2185 = vpop.f32.mrb[0].mxu0
        %2186 = vdwg.mxu0
        %v2187 = vadd.f32 %v2099, %v2182
        %v2188 = vld [vmem:[%s5 + $0x60] sm:$0xf]
        %v2189 = vld [vmem:[%s5 + $0x64] sm:$0xf]
        %v2190 = vld [vmem:[%s5 + $0x68] sm:$0xf]
        %v2191 = vld [vmem:[%s5 + $0x6c] sm:$0xf]
        %v2192 = vld [vmem:[%s5 + $0x70] sm:$0xf]
        %v2193 = vld [vmem:[%s5 + $0x74] sm:$0xf]
        %v2194 = vld [vmem:[%s5 + $0x78] sm:$0xf]
        %v2195 = vld [vmem:[%s5 + $0x7c] sm:$0xf]
        %s2196 = sadd.s32 %s1934, 1
        %s2197 = smul.u32 %s2196, 2
        %s2198 = smul.addr %s2197, 4
        %s2199 = scalar_lea.vmem [#allocation3], %s2198
        %v2200 = vld [vmem:[%s2199] sm:$0xf]
        %v2209 = vunpack.c.l.b16 %v2188
        %v2210 = vunpack.c.l.b16 %v2189
        %v2211 = vunpack.c.l.b16 %v2190
        %v2212 = vunpack.c.l.b16 %v2191
        %v2213 = vunpack.c.l.b16 %v2192
        %v2214 = vunpack.c.l.b16 %v2193
        %v2215 = vunpack.c.l.b16 %v2194
        %v2216 = vunpack.c.l.b16 %v2195
        %v2217 = vpack.c.b16 %v2210, %v2209
        %v2218 = vpack.c.b16 %v2212, %v2211
        %v2219 = vpack.c.b16 %v2214, %v2213
        %v2220 = vpack.c.b16 %v2216, %v2215
        %v2226 = vsel %vm1993, %v2200, 0
        %2228 = vmatprep.subr.bf16.mxu0 0
        %2229 = vmatpush1.bf16.msra.mxu0 %v2217
        %2230 = vmatprep.subr.bf16.mxu0 0
        %2231 = vmatpush1.bf16.msra.mxu0 %v2218
        %2232 = vmatprep.subr.bf16.mxu0 0
        %2233 = vmatpush1.bf16.msra.mxu0 %v2219
        %2234 = vmatprep.subr.bf16.mxu0 0
        %2235 = vmatpush1.bf16.msra.mxu0 %v2220
        %2236 = vmatprep.subr.bf16.mxu0 0
        %2237 = vmatpush1.bf16.msra.mxu0 0
        %2238 = vmatprep.subr.bf16.mxu0 0
        %2239 = vmatpush1.bf16.msra.mxu0 0
        %2240 = vmatprep.subr.bf16.mxu0 0
        %2241 = vmatpush1.bf16.msra.mxu0 0
        %2242 = vmatprep.subr.bf16.mxu0 0
        %2243 = vmatpush1.bf16.msra.mxu0 0
        %2244 = vmatprep.subr.bf16.mxu0 0
        %2245 = vmatpush1.bf16.msra.mxu0 0
        %2246 = vmatprep.subr.bf16.mxu0 0
        %2247 = vmatpush1.bf16.msra.mxu0 0
        %2248 = vmatprep.subr.bf16.mxu0 0
        %2249 = vmatpush1.bf16.msra.mxu0 0
        %2250 = vmatprep.subr.bf16.mxu0 0
        %2251 = vmatpush1.bf16.msra.mxu0 0
        %2252 = vmatprep.subr.bf16.mxu0 0
        %2253 = vmatpush1.bf16.msra.mxu0 0
        %2254 = vmatprep.subr.bf16.mxu0 0
        %2255 = vmatpush1.bf16.msra.mxu0 0
        %2256 = vmatprep.subr.bf16.mxu0 0
        %2257 = vmatpush1.bf16.msra.mxu0 0
        %2258 = vmatprep.subr.bf16.mxu0 0
        %2259 = vmatpush1.bf16.msra.mxu0 0
        %2260 = vmatprep.mubr.bf16.mxu0 0
        %2261 = vmatmul.mubr.bf16.gmra.mrb[0].mxu0 %v2226
        %v2262 = vpop.f32.mrb[0].mxu0
        %v2263 = vadd.f32 0.0, %v2262
        %v2264 = vpop.f32.mrb[0].mxu0
        %v2265 = vpop.f32.mrb[0].mxu0
        %v2266 = vpop.f32.mrb[0].mxu0
        %2267 = vdwg.mxu0
        %v2268 = vadd.f32 %v2187, %v2263
        %v2269 = vld [vmem:[%s5 + $0x80] sm:$0xf]
        %v2270 = vld [vmem:[%s5 + $0x84] sm:$0xf]
        %v2271 = vld [vmem:[%s5 + $0x88] sm:$0xf]
        %v2272 = vld [vmem:[%s5 + $0x8c] sm:$0xf]
        %v2273 = vld [vmem:[%s5 + $0x90] sm:$0xf]
        %v2274 = vld [vmem:[%s5 + $0x94] sm:$0xf]
        %v2275 = vld [vmem:[%s5 + $0x98] sm:$0xf]
        %v2276 = vld [vmem:[%s5 + $0x9c] sm:$0xf]
        %v2278 = vunpack.c.l.b16 %v2200
        %v2279 = vpack.c.b16 %v2278, %v2278
        %v2281 = vshrl.u32 %v2279, 16
        %v2283 = vshll.u32 %v2279, 16
        %v2285 = vrot.slane %v2283, 1
        %v2286 = vor.u32 %v2281, %v2285
        %v2295 = vunpack.c.l.b16 %v2269
        %v2296 = vunpack.c.l.b16 %v2270
        %v2297 = vunpack.c.l.b16 %v2271
        %v2298 = vunpack.c.l.b16 %v2272
        %v2299 = vunpack.c.l.b16 %v2273
        %v2300 = vunpack.c.l.b16 %v2274
        %v2301 = vunpack.c.l.b16 %v2275
        %v2302 = vunpack.c.l.b16 %v2276
        %v2303 = vpack.c.b16 %v2296, %v2295
        %v2304 = vpack.c.b16 %v2298, %v2297
        %v2305 = vpack.c.b16 %v2300, %v2299
        %v2306 = vpack.c.b16 %v2302, %v2301
        %v2312 = vsel %vm1993, %v2286, 0
        %2314 = vmatprep.subr.bf16.mxu0 0
        %2315 = vmatpush1.bf16.msra.mxu0 %v2303
        %2316 = vmatprep.subr.bf16.mxu0 0
        %2317 = vmatpush1.bf16.msra.mxu0 %v2304
        %2318 = vmatprep.subr.bf16.mxu0 0
        %2319 = vmatpush1.bf16.msra.mxu0 %v2305
        %2320 = vmatprep.subr.bf16.mxu0 0
        %2321 = vmatpush1.bf16.msra.mxu0 %v2306
        %2322 = vmatprep.subr.bf16.mxu0 0
        %2323 = vmatpush1.bf16.msra.mxu0 0
        %2324 = vmatprep.subr.bf16.mxu0 0
        %2325 = vmatpush1.bf16.msra.mxu0 0
        %2326 = vmatprep.subr.bf16.mxu0 0
        %2327 = vmatpush1.bf16.msra.mxu0 0
        %2328 = vmatprep.subr.bf16.mxu0 0
        %2329 = vmatpush1.bf16.msra.mxu0 0
        %2330 = vmatprep.subr.bf16.mxu0 0
        %2331 = vmatpush1.bf16.msra.mxu0 0
        %2332 = vmatprep.subr.bf16.mxu0 0
        %2333 = vmatpush1.bf16.msra.mxu0 0
        %2334 = vmatprep.subr.bf16.mxu0 0
        %2335 = vmatpush1.bf16.msra.mxu0 0
        %2336 = vmatprep.subr.bf16.mxu0 0
        %2337 = vmatpush1.bf16.msra.mxu0 0
        %2338 = vmatprep.subr.bf16.mxu0 0
        %2339 = vmatpush1.bf16.msra.mxu0 0
        %2340 = vmatprep.subr.bf16.mxu0 0
        %2341 = vmatpush1.bf16.msra.mxu0 0
        %2342 = vmatprep.subr.bf16.mxu0 0
        %2343 = vmatpush1.bf16.msra.mxu0 0
        %2344 = vmatprep.subr.bf16.mxu0 0
        %2345 = vmatpush1.bf16.msra.mxu0 0
        %2346 = vmatprep.mubr.bf16.mxu0 0
        %2347 = vmatmul.mubr.bf16.gmra.mrb[0].mxu0 %v2312
        %v2348 = vpop.f32.mrb[0].mxu0
        %v2349 = vadd.f32 0.0, %v2348
        %v2350 = vpop.f32.mrb[0].mxu0
        %v2351 = vpop.f32.mrb[0].mxu0
        %v2352 = vpop.f32.mrb[0].mxu0
        %2353 = vdwg.mxu0
        %v2354 = vadd.f32 %v2268, %v2349
        %v2355 = vld [vmem:[%s5 + $0xa0] sm:$0xf]
        %v2356 = vld [vmem:[%s5 + $0xa4] sm:$0xf]
        %v2357 = vld [vmem:[%s5 + $0xa8] sm:$0xf]
        %v2358 = vld [vmem:[%s5 + $0xac] sm:$0xf]
        %v2359 = vld [vmem:[%s5 + $0xb0] sm:$0xf]
        %v2360 = vld [vmem:[%s5 + $0xb4] sm:$0xf]
        %v2361 = vld [vmem:[%s5 + $0xb8] sm:$0xf]
        %v2362 = vld [vmem:[%s5 + $0xbc] sm:$0xf]
        %v2363 = vld [vmem:[%s2199] sm:$0xe]
        %v2364 = vld [vmem:[%s2199 + $0x4] sm:$0x1]
        %v2367 = vunpack.c.l.b16 %v2363
        %v2368 = vunpack.c.l.b16 %v2364
        %v2369 = vpack.c.b16 %v2368, %v2367
        %v2370 = vrot.slane %v2369, 1
        %v2379 = vunpack.c.l.b16 %v2355
        %v2380 = vunpack.c.l.b16 %v2356
        %v2381 = vunpack.c.l.b16 %v2357
        %v2382 = vunpack.c.l.b16 %v2358
        %v2383 = vunpack.c.l.b16 %v2359
        %v2384 = vunpack.c.l.b16 %v2360
        %v2385 = vunpack.c.l.b16 %v2361
        %v2386 = vunpack.c.l.b16 %v2362
        %v2387 = vpack.c.b16 %v2380, %v2379
        %v2388 = vpack.c.b16 %v2382, %v2381
        %v2389 = vpack.c.b16 %v2384, %v2383
        %v2390 = vpack.c.b16 %v2386, %v2385
        %v2396 = vsel %vm1993, %v2370, 0
        %2398 = vmatprep.subr.bf16.mxu0 0
        %2399 = vmatpush1.bf16.msra.mxu0 %v2387
        %2400 = vmatprep.subr.bf16.mxu0 0
        %2401 = vmatpush1.bf16.msra.mxu0 %v2388
        %2402 = vmatprep.subr.bf16.mxu0 0
        %2403 = vmatpush1.bf16.msra.mxu0 %v2389
        %2404 = vmatprep.subr.bf16.mxu0 0
        %2405 = vmatpush1.bf16.msra.mxu0 %v2390
        %2406 = vmatprep.subr.bf16.mxu0 0
        %2407 = vmatpush1.bf16.msra.mxu0 0
        %2408 = vmatprep.subr.bf16.mxu0 0
        %2409 = vmatpush1.bf16.msra.mxu0 0
        %2410 = vmatprep.subr.bf16.mxu0 0
        %2411 = vmatpush1.bf16.msra.mxu0 0
        %2412 = vmatprep.subr.bf16.mxu0 0
        %2413 = vmatpush1.bf16.msra.mxu0 0
        %2414 = vmatprep.subr.bf16.mxu0 0
        %2415 = vmatpush1.bf16.msra.mxu0 0
        %2416 = vmatprep.subr.bf16.mxu0 0
        %2417 = vmatpush1.bf16.msra.mxu0 0
        %2418 = vmatprep.subr.bf16.mxu0 0
        %2419 = vmatpush1.bf16.msra.mxu0 0
        %2420 = vmatprep.subr.bf16.mxu0 0
        %2421 = vmatpush1.bf16.msra.mxu0 0
        %2422 = vmatprep.subr.bf16.mxu0 0
        %2423 = vmatpush1.bf16.msra.mxu0 0
        %2424 = vmatprep.subr.bf16.mxu0 0
        %2425 = vmatpush1.bf16.msra.mxu0 0
        %2426 = vmatprep.subr.bf16.mxu0 0
        %2427 = vmatpush1.bf16.msra.mxu0 0
        %2428 = vmatprep.subr.bf16.mxu0 0
        %2429 = vmatpush1.bf16.msra.mxu0 0
        %2430 = vmatprep.mubr.bf16.mxu0 0
        %2431 = vmatmul.mubr.bf16.gmra.mrb[0].mxu0 %v2396
        %v2432 = vpop.f32.mrb[0].mxu0
        %v2433 = vadd.f32 0.0, %v2432
        %v2434 = vpop.f32.mrb[0].mxu0
        %v2435 = vpop.f32.mrb[0].mxu0
        %v2436 = vpop.f32.mrb[0].mxu0
        %2437 = vdwg.mxu0
        %v2438 = vadd.f32 %v2354, %v2433
        %v2439 = vld [vmem:[%s5 + $0xc0] sm:$0xf]
        %v2440 = vld [vmem:[%s5 + $0xc4] sm:$0xf]
        %v2441 = vld [vmem:[%s5 + $0xc8] sm:$0xf]
        %v2442 = vld [vmem:[%s5 + $0xcc] sm:$0xf]
        %v2443 = vld [vmem:[%s5 + $0xd0] sm:$0xf]
        %v2444 = vld [vmem:[%s5 + $0xd4] sm:$0xf]
        %v2445 = vld [vmem:[%s5 + $0xd8] sm:$0xf]
        %v2446 = vld [vmem:[%s5 + $0xdc] sm:$0xf]
        %s2447 = sadd.s32 %s1934, 2
        %s2448 = smul.u32 %s2447, 2
        %s2449 = smul.addr %s2448, 4
        %s2450 = scalar_lea.vmem [#allocation3], %s2449
        %v2451 = vld [vmem:[%s2450] sm:$0xf]
        %v2460 = vunpack.c.l.b16 %v2439
        %v2461 = vunpack.c.l.b16 %v2440
        %v2462 = vunpack.c.l.b16 %v2441
        %v2463 = vunpack.c.l.b16 %v2442
        %v2464 = vunpack.c.l.b16 %v2443
        %v2465 = vunpack.c.l.b16 %v2444
        %v2466 = vunpack.c.l.b16 %v2445
        %v2467 = vunpack.c.l.b16 %v2446
        %v2468 = vpack.c.b16 %v2461, %v2460
        %v2469 = vpack.c.b16 %v2463, %v2462
        %v2470 = vpack.c.b16 %v2465, %v2464
        %v2471 = vpack.c.b16 %v2467, %v2466
        %v2477 = vsel %vm1993, %v2451, 0
        %2479 = vmatprep.subr.bf16.mxu0 0
        %2480 = vmatpush1.bf16.msra.mxu0 %v2468
        %2481 = vmatprep.subr.bf16.mxu0 0
        %2482 = vmatpush1.bf16.msra.mxu0 %v2469
        %2483 = vmatprep.subr.bf16.mxu0 0
        %2484 = vmatpush1.bf16.msra.mxu0 %v2470
        %2485 = vmatprep.subr.bf16.mxu0 0
        %2486 = vmatpush1.bf16.msra.mxu0 %v2471
        %2487 = vmatprep.subr.bf16.mxu0 0
        %2488 = vmatpush1.bf16.msra.mxu0 0
        %2489 = vmatprep.subr.bf16.mxu0 0
        %2490 = vmatpush1.bf16.msra.mxu0 0
        %2491 = vmatprep.subr.bf16.mxu0 0
        %2492 = vmatpush1.bf16.msra.mxu0 0
        %2493 = vmatprep.subr.bf16.mxu0 0
        %2494 = vmatpush1.bf16.msra.mxu0 0
        %2495 = vmatprep.subr.bf16.mxu0 0
        %2496 = vmatpush1.bf16.msra.mxu0 0
        %2497 = vmatprep.subr.bf16.mxu0 0
        %2498 = vmatpush1.bf16.msra.mxu0 0
        %2499 = vmatprep.subr.bf16.mxu0 0
        %2500 = vmatpush1.bf16.msra.mxu0 0
        %2501 = vmatprep.subr.bf16.mxu0 0
        %2502 = vmatpush1.bf16.msra.mxu0 0
        %2503 = vmatprep.subr.bf16.mxu0 0
        %2504 = vmatpush1.bf16.msra.mxu0 0
        %2505 = vmatprep.subr.bf16.mxu0 0
        %2506 = vmatpush1.bf16.msra.mxu0 0
        %2507 = vmatprep.subr.bf16.mxu0 0
        %2508 = vmatpush1.bf16.msra.mxu0 0
        %2509 = vmatprep.subr.bf16.mxu0 0
        %2510 = vmatpush1.bf16.msra.mxu0 0
        %2511 = vmatprep.mubr.bf16.mxu0 0
        %2512 = vmatmul.mubr.bf16.gmra.mrb[0].mxu0 %v2477
        %v2513 = vpop.f32.mrb[0].mxu0
        %v2514 = vadd.f32 0.0, %v2513
        %v2515 = vpop.f32.mrb[0].mxu0
        %v2516 = vpop.f32.mrb[0].mxu0
        %v2517 = vpop.f32.mrb[0].mxu0
        %2518 = vdwg.mxu0
        %v2519 = vadd.f32 %v2438, %v2514
        %v2520 = vld [vmem:[%s5 + $0xe0] sm:$0xf]
        %v2521 = vld [vmem:[%s5 + $0xe4] sm:$0xf]
        %v2522 = vld [vmem:[%s5 + $0xe8] sm:$0xf]
        %v2523 = vld [vmem:[%s5 + $0xec] sm:$0xf]
        %v2524 = vld [vmem:[%s5 + $0xf0] sm:$0xf]
        %v2525 = vld [vmem:[%s5 + $0xf4] sm:$0xf]
        %v2526 = vld [vmem:[%s5 + $0xf8] sm:$0xf]
        %v2527 = vld [vmem:[%s5 + $0xfc] sm:$0xf]
        %v2529 = vunpack.c.l.b16 %v2451
        %v2530 = vpack.c.b16 %v2529, %v2529
        %v2532 = vshrl.u32 %v2530, 16
        %v2534 = vshll.u32 %v2530, 16
        %v2536 = vrot.slane %v2534, 1
        %v2537 = vor.u32 %v2532, %v2536
        %v2546 = vunpack.c.l.b16 %v2520
        %v2547 = vunpack.c.l.b16 %v2521
        %v2548 = vunpack.c.l.b16 %v2522
        %v2549 = vunpack.c.l.b16 %v2523
        %v2550 = vunpack.c.l.b16 %v2524
        %v2551 = vunpack.c.l.b16 %v2525
        %v2552 = vunpack.c.l.b16 %v2526
        %v2553 = vunpack.c.l.b16 %v2527
        %v2554 = vpack.c.b16 %v2547, %v2546
        %v2555 = vpack.c.b16 %v2549, %v2548
        %v2556 = vpack.c.b16 %v2551, %v2550
        %v2557 = vpack.c.b16 %v2553, %v2552
        %v2563 = vsel %vm1993, %v2537, 0
        %2565 = vmatprep.subr.bf16.mxu0 0
        %2566 = vmatpush1.bf16.msra.mxu0 %v2554
        %2567 = vmatprep.subr.bf16.mxu0 0
        %2568 = vmatpush1.bf16.msra.mxu0 %v2555
        %2569 = vmatprep.subr.bf16.mxu0 0
        %2570 = vmatpush1.bf16.msra.mxu0 %v2556
        %2571 = vmatprep.subr.bf16.mxu0 0
        %2572 = vmatpush1.bf16.msra.mxu0 %v2557
        %2573 = vmatprep.subr.bf16.mxu0 0
        %2574 = vmatpush1.bf16.msra.mxu0 0
        %2575 = vmatprep.subr.bf16.mxu0 0
        %2576 = vmatpush1.bf16.msra.mxu0 0
        %2577 = vmatprep.subr.bf16.mxu0 0
        %2578 = vmatpush1.bf16.msra.mxu0 0
        %2579 = vmatprep.subr.bf16.mxu0 0
        %2580 = vmatpush1.bf16.msra.mxu0 0
        %2581 = vmatprep.subr.bf16.mxu0 0
        %2582 = vmatpush1.bf16.msra.mxu0 0
        %2583 = vmatprep.subr.bf16.mxu0 0
        %2584 = vmatpush1.bf16.msra.mxu0 0
        %2585 = vmatprep.subr.bf16.mxu0 0
        %2586 = vmatpush1.bf16.msra.mxu0 0
        %2587 = vmatprep.subr.bf16.mxu0 0
        %2588 = vmatpush1.bf16.msra.mxu0 0
        %2589 = vmatprep.subr.bf16.mxu0 0
        %2590 = vmatpush1.bf16.msra.mxu0 0
        %2591 = vmatprep.subr.bf16.mxu0 0
        %2592 = vmatpush1.bf16.msra.mxu0 0
        %2593 = vmatprep.subr.bf16.mxu0 0
        %2594 = vmatpush1.bf16.msra.mxu0 0
        %2595 = vmatprep.subr.bf16.mxu0 0
        %2596 = vmatpush1.bf16.msra.mxu0 0
        %2597 = vmatprep.mubr.bf16.mxu0 0
        %2598 = vmatmul.mubr.bf16.gmra.mrb[0].mxu0 %v2563
        %v2599 = vpop.f32.mrb[0].mxu0
        %v2600 = vadd.f32 0.0, %v2599
        %v2601 = vpop.f32.mrb[0].mxu0
        %v2602 = vpop.f32.mrb[0].mxu0
        %v2603 = vpop.f32.mrb[0].mxu0
        %2604 = vdwg.mxu0
        %v2605 = vadd.f32 %v2519, %v2600
        %v2606 = vld [vmem:[%s5 + $0x100] sm:$0xf]
        %v2607 = vld [vmem:[%s5 + $0x104] sm:$0xf]
        %v2608 = vld [vmem:[%s5 + $0x108] sm:$0xf]
        %v2609 = vld [vmem:[%s5 + $0x10c] sm:$0xf]
        %v2610 = vld [vmem:[%s5 + $0x110] sm:$0xf]
        %v2611 = vld [vmem:[%s5 + $0x114] sm:$0xf]
        %v2612 = vld [vmem:[%s5 + $0x118] sm:$0xf]
        %v2613 = vld [vmem:[%s5 + $0x11c] sm:$0xf]
        %v2614 = vld [vmem:[%s2450] sm:$0xe]
        %v2615 = vld [vmem:[%s2450 + $0x4] sm:$0x1]
        %v2618 = vunpack.c.l.b16 %v2614
        %v2619 = vunpack.c.l.b16 %v2615
        %v2620 = vpack.c.b16 %v2619, %v2618
        %v2621 = vrot.slane %v2620, 1
        %v2630 = vunpack.c.l.b16 %v2606
        %v2631 = vunpack.c.l.b16 %v2607
        %v2632 = vunpack.c.l.b16 %v2608
        %v2633 = vunpack.c.l.b16 %v2609
        %v2634 = vunpack.c.l.b16 %v2610
        %v2635 = vunpack.c.l.b16 %v2611
        %v2636 = vunpack.c.l.b16 %v2612
        %v2637 = vunpack.c.l.b16 %v2613
        %v2638 = vpack.c.b16 %v2631, %v2630
        %v2639 = vpack.c.b16 %v2633, %v2632
        %v2640 = vpack.c.b16 %v2635, %v2634
        %v2641 = vpack.c.b16 %v2637, %v2636
        %v2647 = vsel %vm1993, %v2621, 0
        %2649 = vmatprep.subr.bf16.mxu0 0
        %2650 = vmatpush1.bf16.msra.mxu0 %v2638
        %2651 = vmatprep.subr.bf16.mxu0 0
        %2652 = vmatpush1.bf16.msra.mxu0 %v2639
        %2653 = vmatprep.subr.bf16.mxu0 0
        %2654 = vmatpush1.bf16.msra.mxu0 %v2640
        %2655 = vmatprep.subr.bf16.mxu0 0
        %2656 = vmatpush1.bf16.msra.mxu0 %v2641
        %2657 = vmatprep.subr.bf16.mxu0 0
        %2658 = vmatpush1.bf16.msra.mxu0 0
        %2659 = vmatprep.subr.bf16.mxu0 0
        %2660 = vmatpush1.bf16.msra.mxu0 0
        %2661 = vmatprep.subr.bf16.mxu0 0
        %2662 = vmatpush1.bf16.msra.mxu0 0
        %2663 = vmatprep.subr.bf16.mxu0 0
        %2664 = vmatpush1.bf16.msra.mxu0 0
        %2665 = vmatprep.subr.bf16.mxu0 0
        %2666 = vmatpush1.bf16.msra.mxu0 0
        %2667 = vmatprep.subr.bf16.mxu0 0
        %2668 = vmatpush1.bf16.msra.mxu0 0
        %2669 = vmatprep.subr.bf16.mxu0 0
        %2670 = vmatpush1.bf16.msra.mxu0 0
        %2671 = vmatprep.subr.bf16.mxu0 0
        %2672 = vmatpush1.bf16.msra.mxu0 0
        %2673 = vmatprep.subr.bf16.mxu0 0
        %2674 = vmatpush1.bf16.msra.mxu0 0
        %2675 = vmatprep.subr.bf16.mxu0 0
        %2676 = vmatpush1.bf16.msra.mxu0 0
        %2677 = vmatprep.subr.bf16.mxu0 0
        %2678 = vmatpush1.bf16.msra.mxu0 0
        %2679 = vmatprep.subr.bf16.mxu0 0
        %2680 = vmatpush1.bf16.msra.mxu0 0
        %2681 = vmatprep.mubr.bf16.mxu0 0
        %2682 = vmatmul.mubr.bf16.gmra.mrb[0].mxu0 %v2647
        %v2683 = vpop.f32.mrb[0].mxu0
        %v2684 = vadd.f32 0.0, %v2683
        %v2685 = vpop.f32.mrb[0].mxu0
        %v2686 = vpop.f32.mrb[0].mxu0
        %v2687 = vpop.f32.mrb[0].mxu0
        %2688 = vdwg.mxu0
        %v2689 = vadd.f32 %v2605, %v2684
        %v2690 = vld [vmem:[%s6] sm:$0x1]
        %v2692 = vlaneseq
        %v2693 = vshrl.u32 %v2692, 7
        %v2694 = vsub.s32 0, %v2693
        %v2695 = vrot.slane %v2690, %v2694
        %v2697 = vadd.f32 %v2689, %v2695
        %v2698 = vmax.f32 %v2697, 0.0
        %v2699 = vpack.c.bf16 %v2698, %v2698
        %s2700 = smul.addr %s1934, 4
        %s2701 = scalar_lea.vmem %s278, %s2700
        %vm2702 = vcmask 519168
        %vm2703 = vsmask.f32 3328
        %vm2704 = vmand %vm2702, %vm2703
        %v2705 = vld [vmem:[%s2701] sm:$0xf]
        %v2706 = vsel %vm2704, %v2699, %v2705
        %2707 = vst [vmem:[%s2701] sm:$0xf] %v2706
      $region67: #{ddqn_forward.2} parent=47 // loop_footer
        %s1938 = sadd.s32 1, %s1934
      $region68: #{ddqn_forward.2} parent=47 // loop_footer_branch
        %1933 = sbr.rel target = $region64
      $region69: #{ddqn_forward.2} parent=47 // loop_exit
        _
      %p2708 = scmp.lt.s32.totalorder %s18, 1
      %s2709 = scalar_select %p2708, %s18, 1
      %s2710 = smul.addr %s2709, 7
      %s2711 = smul.addr %s2710, 4
      %s2712 = scalar_lea.vmem %s7, %s2711
      // Predicated region
      $region70: #{ddqn_forward.2} parent=47 // pred_check
        %p2713 = pneg %p188
      $region71: #{ddqn_forward.2} parent=47 // pred_check_branch
        %2715 = sbr.rel (%p2713) target = $region73
      $region72: #{ddqn_forward.2} parent=47 // pred_region
        _
      $region73: #{ddqn_forward.2} parent=47 // pred_fallthru
        _
    $region48: #{ddqn_forward.2} parent=5 // pred_fallthru
      _
    %p2716 = scmp.le.s32.totalorder 2, %s13
    // Predicated region
    $region74: #{ddqn_forward.2} parent=5 // pred_check
      %p2717 = pneg %p2716
    $region75: #{ddqn_forward.2} parent=5 // pred_check_branch
      %2719 = sbr.rel (%p2717) target = $region77
    $region76: #{ddqn_forward.2} parent=5 // pred_region
      %s2720 = ssub.s32 %s13, 2
      // Predicated region
      $region78: #{ddqn_forward.2} parent=76 // pred_check
        %p2721 = pneg %p194
      $region79: #{ddqn_forward.2} parent=76 // pred_check_branch
        %2723 = sbr.rel (%p2721) target = $region81
      $region80: #{ddqn_forward.2} parent=76 // pred_region
        %p2724 = scmp.lt.s32.totalorder %s19, 1
        %s2725 = scalar_select %p2724, %s19, 1
        %s2726 = smul.addr %s2725, 7
        %s2727 = smul.addr %s2726, 4
        %s2728 = scalar_lea.vmem %s7, %s2727
      $region81: #{ddqn_forward.2} parent=76 // pred_fallthru
        _
    $region77: #{ddqn_forward.2} parent=5 // pred_fallthru
      _
  $region6: #{ddqn_forward.2} parent=0 // loop_footer
    %s17 = sadd.s32 1, %s13
  $region7: #{ddqn_forward.2} parent=0 // loop_footer_branch
    %12 = sbr.rel target = $region3
  $region8: #{ddqn_forward.2} parent=0 // loop_exit
    _

// kernel: ddqn_forward.3
$region0: #{ddqn_forward.3}
  #allocation0 [shape = 'u32[]', space=smem, size = 0x4, offset = 0x4, fixed_abs, tag = 'smem constant byte address 0x4 - core index']
  #allocation1 [shape = 'u32[144,128]{1,0:T(1,128)}', space=vmem, size = 0x12000, scoped, tag = 'internal scratch']
  %s0 = inlined_call_operand.vmem [shape: bf16[2,3136], index: 0, kind: input, shape index: {}]
  %s1 = inlined_call_operand.vmem [shape: bf16[3136,256], index: 1, kind: input, shape index: {}]
  %s2 = inlined_call_operand.vmem [shape: f32[1,256], index: 2, kind: input, shape index: {}]
  %s3 = inlined_call_operand.vmem [shape: bf16[256,3], index: 3, kind: input, shape index: {}]
  %s4 = inlined_call_operand.vmem [shape: f32[1,3], index: 4, kind: input, shape index: {}]
  %s5 = inlined_call_operand.hbm [shape: f32[2,3], index: 5, kind: output, shape index: {}]
  %s6 = sld [smem:[#allocation0]]
  $region30: #{ddqn_forward.3} parent=0
    _
  %s8 = ssub.s32 1, %s6
  %s9 = scalar_select 0, %s8, %s6
  $region1: #{ddqn_forward.3} parent=0
    #allocation2 [shape = 'u8[1024]{0}', space=vmem, size = 0x400, scoped, tag = 'output window, operand 0, single buffered']
    #allocation3 [shape = 's32[1]{0}', space=sflag, size = 0x4, scoped, tag = 'scoped memory for ddqn_forward.3']
    %10 = vsyncpa [#allocation3], 0
    // Predicated region
    $region2: #{ddqn_forward.3} parent=1 // pred_check
      _
    $region3: #{ddqn_forward.3} parent=1 // pred_check_branch
      %12 = sbr.rel (0) target = $region5
    $region4: #{ddqn_forward.3} parent=1 // pred_region
      _
    $region5: #{ddqn_forward.3} parent=1 // pred_fallthru
      _
    // Predicated region
    $region6: #{ddqn_forward.3} parent=1 // pred_check
      _
    $region7: #{ddqn_forward.3} parent=1 // pred_check_branch
      %14 = sbr.rel (0) target = $region9
    $region8: #{ddqn_forward.3} parent=1 // pred_region
      _
    $region9: #{ddqn_forward.3} parent=1 // pred_fallthru
      _
    // Predicated region
    $region10: #{ddqn_forward.3} parent=1 // pred_check
      _
    $region11: #{ddqn_forward.3} parent=1 // pred_check_branch
      %16 = sbr.rel (0) target = $region13
    $region12: #{ddqn_forward.3} parent=1 // pred_region
      _
    $region13: #{ddqn_forward.3} parent=1 // pred_fallthru
      _
    // Predicated region
    $region14: #{ddqn_forward.3} parent=1 // pred_check
      _
    $region15: #{ddqn_forward.3} parent=1 // pred_check_branch
      %18 = sbr.rel (0) target = $region17
    $region16: #{ddqn_forward.3} parent=1 // pred_region
      _
    $region17: #{ddqn_forward.3} parent=1 // pred_fallthru
      _
    // Predicated region
    $region18: #{ddqn_forward.3} parent=1 // pred_check
      _
    $region19: #{ddqn_forward.3} parent=1 // pred_check_branch
      %20 = sbr.rel (0) target = $region21
    $region20: #{ddqn_forward.3} parent=1 // pred_region
      _
    $region21: #{ddqn_forward.3} parent=1 // pred_fallthru
      _
    %v22 = vld [vmem:[%s0] sm:$0xff]
    %v23 = vld [vmem:[%s0 + $0x8] sm:$0xff]
    %v24 = vld [vmem:[%s0 + $0x10] sm:$0xff]
    %v25 = vld [vmem:[%s0 + $0x18] sm:$0x1]
    %v26 = vld [vmem:[%s1] sm:$0xff]
    %v27 = vld [vmem:[%s1 + $0x8] sm:$0xff]
    %v28 = vld [vmem:[%s1 + $0x10] sm:$0xff]
    %v29 = vld [vmem:[%s1 + $0x18] sm:$0xff]
    %v30 = vld [vmem:[%s1 + $0x20] sm:$0xff]
    %v31 = vld [vmem:[%s1 + $0x28] sm:$0xff]
    %v32 = vld [vmem:[%s1 + $0x30] sm:$0xff]
    %v33 = vld [vmem:[%s1 + $0x38] sm:$0xff]
    %v34 = vld [vmem:[%s1 + $0x40] sm:$0xff]
    %v35 = vld [vmem:[%s1 + $0x48] sm:$0xff]
    %v36 = vld [vmem:[%s1 + $0x50] sm:$0xff]
    %v37 = vld [vmem:[%s1 + $0x58] sm:$0xff]
    %v38 = vld [vmem:[%s1 + $0x60] sm:$0xff]
    %v39 = vld [vmem:[%s1 + $0x68] sm:$0xff]
    %v40 = vld [vmem:[%s1 + $0x70] sm:$0xff]
    %v41 = vld [vmem:[%s1 + $0x78] sm:$0xff]
    %v42 = vld [vmem:[%s1 + $0x80] sm:$0xff]
    %v43 = vld [vmem:[%s1 + $0x88] sm:$0xff]
    %v44 = vld [vmem:[%s1 + $0x90] sm:$0xff]
    %v45 = vld [vmem:[%s1 + $0x98] sm:$0xff]
    %v46 = vld [vmem:[%s1 + $0xa0] sm:$0xff]
    %v47 = vld [vmem:[%s1 + $0xa8] sm:$0xff]
    %v48 = vld [vmem:[%s1 + $0xb0] sm:$0xff]
    %v49 = vld [vmem:[%s1 + $0xb8] sm:$0xff]
    %v50 = vld [vmem:[%s1 + $0xc0] sm:$0xff]
    %v51 = vld [vmem:[%s1 + $0xc8] sm:$0xff]
    %v52 = vld [vmem:[%s1 + $0xd0] sm:$0xff]
    %v53 = vld [vmem:[%s1 + $0xd8] sm:$0xff]
    %v54 = vld [vmem:[%s1 + $0xe0] sm:$0xff]
    %v55 = vld [vmem:[%s1 + $0xe8] sm:$0xff]
    %v56 = vld [vmem:[%s1 + $0xf0] sm:$0xff]
    %v57 = vld [vmem:[%s1 + $0xf8] sm:$0xff]
    %v58 = vld [vmem:[%s1 + $0x100] sm:$0xff]
    %v59 = vld [vmem:[%s1 + $0x108] sm:$0xff]
    %v60 = vld [vmem:[%s1 + $0x110] sm:$0xff]
    %v61 = vld [vmem:[%s1 + $0x118] sm:$0xff]
    %v62 = vld [vmem:[%s1 + $0x120] sm:$0xff]
    %v63 = vld [vmem:[%s1 + $0x128] sm:$0xff]
    %v64 = vld [vmem:[%s1 + $0x130] sm:$0xff]
    %v65 = vld [vmem:[%s1 + $0x138] sm:$0xff]
    %v66 = vld [vmem:[%s1 + $0x140] sm:$0xff]
    %v67 = vld [vmem:[%s1 + $0x148] sm:$0xff]
    %v68 = vld [vmem:[%s1 + $0x150] sm:$0xff]
    %v69 = vld [vmem:[%s1 + $0x158] sm:$0xff]
    %v70 = vld [vmem:[%s1 + $0x160] sm:$0xff]
    %v71 = vld [vmem:[%s1 + $0x168] sm:$0xff]
    %v72 = vld [vmem:[%s1 + $0x170] sm:$0xff]
    %v73 = vld [vmem:[%s1 + $0x178] sm:$0xff]
    %v74 = vld [vmem:[%s1 + $0x180] sm:$0xff]
    %v75 = vld [vmem:[%s1 + $0x188] sm:$0xff]
    %v76 = vld [vmem:[%s1 + $0x190] sm:$0xff]
    %v77 = vld [vmem:[%s1 + $0x198] sm:$0xff]
    %v78 = vld [vmem:[%s1 + $0x1a0] sm:$0xff]
    %v79 = vld [vmem:[%s1 + $0x1a8] sm:$0xff]
    %v80 = vld [vmem:[%s1 + $0x1b0] sm:$0xff]
    %v81 = vld [vmem:[%s1 + $0x1b8] sm:$0xff]
    %v82 = vld [vmem:[%s1 + $0x1c0] sm:$0xff]
    %v83 = vld [vmem:[%s1 + $0x1c8] sm:$0xff]
    %v84 = vld [vmem:[%s1 + $0x1d0] sm:$0xff]
    %v85 = vld [vmem:[%s1 + $0x1d8] sm:$0xff]
    %v86 = vld [vmem:[%s1 + $0x1e0] sm:$0xff]
    %v87 = vld [vmem:[%s1 + $0x1e8] sm:$0xff]
    %v88 = vld [vmem:[%s1 + $0x1f0] sm:$0xff]
    %v89 = vld [vmem:[%s1 + $0x1f8] sm:$0xff]
    %v90 = vld [vmem:[%s1 + $0x200] sm:$0xff]
    %v91 = vld [vmem:[%s1 + $0x208] sm:$0xff]
    %v92 = vld [vmem:[%s1 + $0x210] sm:$0xff]
    %v93 = vld [vmem:[%s1 + $0x218] sm:$0xff]
    %v94 = vld [vmem:[%s1 + $0x220] sm:$0xff]
    %v95 = vld [vmem:[%s1 + $0x228] sm:$0xff]
    %v96 = vld [vmem:[%s1 + $0x230] sm:$0xff]
    %v97 = vld [vmem:[%s1 + $0x238] sm:$0xff]
    %v98 = vld [vmem:[%s1 + $0x240] sm:$0xff]
    %v99 = vld [vmem:[%s1 + $0x248] sm:$0xff]
    %v100 = vld [vmem:[%s1 + $0x250] sm:$0xff]
    %v101 = vld [vmem:[%s1 + $0x258] sm:$0xff]
    %v102 = vld [vmem:[%s1 + $0x260] sm:$0xff]
    %v103 = vld [vmem:[%s1 + $0x268] sm:$0xff]
    %v104 = vld [vmem:[%s1 + $0x270] sm:$0xff]
    %v105 = vld [vmem:[%s1 + $0x278] sm:$0xff]
    %v106 = vld [vmem:[%s1 + $0x280] sm:$0xff]
    %v107 = vld [vmem:[%s1 + $0x288] sm:$0xff]
    %v108 = vld [vmem:[%s1 + $0x290] sm:$0xff]
    %v109 = vld [vmem:[%s1 + $0x298] sm:$0xff]
    %v110 = vld [vmem:[%s1 + $0x2a0] sm:$0xff]
    %v111 = vld [vmem:[%s1 + $0x2a8] sm:$0xff]
    %v112 = vld [vmem:[%s1 + $0x2b0] sm:$0xff]
    %v113 = vld [vmem:[%s1 + $0x2b8] sm:$0xff]
    %v114 = vld [vmem:[%s1 + $0x2c0] sm:$0xff]
    %v115 = vld [vmem:[%s1 + $0x2c8] sm:$0xff]
    %v116 = vld [vmem:[%s1 + $0x2d0] sm:$0xff]
    %v117 = vld [vmem:[%s1 + $0x2d8] sm:$0xff]
    %v118 = vld [vmem:[%s1 + $0x2e0] sm:$0xff]
    %v119 = vld [vmem:[%s1 + $0x2e8] sm:$0xff]
    %v120 = vld [vmem:[%s1 + $0x2f0] sm:$0xff]
    %v121 = vld [vmem:[%s1 + $0x2f8] sm:$0xff]
    %v122 = vld [vmem:[%s1 + $0x300] sm:$0xff]
    %v123 = vld [vmem:[%s1 + $0x308] sm:$0xff]
    %v124 = vld [vmem:[%s1 + $0x310] sm:$0xff]
    %v125 = vld [vmem:[%s1 + $0x318] sm:$0xff]
    %v126 = vld [vmem:[%s1 + $0x320] sm:$0xff]
    %v127 = vld [vmem:[%s1 + $0x328] sm:$0xff]
    %v128 = vld [vmem:[%s1 + $0x330] sm:$0xff]
    %v129 = vld [vmem:[%s1 + $0x338] sm:$0xff]
    %v130 = vld [vmem:[%s1 + $0x340] sm:$0xff]
    %v131 = vld [vmem:[%s1 + $0x348] sm:$0xff]
    %v132 = vld [vmem:[%s1 + $0x350] sm:$0xff]
    %v133 = vld [vmem:[%s1 + $0x358] sm:$0xff]
    %v134 = vld [vmem:[%s1 + $0x360] sm:$0xff]
    %v135 = vld [vmem:[%s1 + $0x368] sm:$0xff]
    %v136 = vld [vmem:[%s1 + $0x370] sm:$0xff]
    %v137 = vld [vmem:[%s1 + $0x378] sm:$0xff]
    %v138 = vld [vmem:[%s1 + $0x380] sm:$0xff]
    %v139 = vld [vmem:[%s1 + $0x388] sm:$0xff]
    %v140 = vld [vmem:[%s1 + $0x390] sm:$0xff]
    %v141 = vld [vmem:[%s1 + $0x398] sm:$0xff]
    %v142 = vld [vmem:[%s1 + $0x3a0] sm:$0xff]
    %v143 = vld [vmem:[%s1 + $0x3a8] sm:$0xff]
    %v144 = vld [vmem:[%s1 + $0x3b0] sm:$0xff]
    %v145 = vld [vmem:[%s1 + $0x3b8] sm:$0xff]
    %v146 = vld [vmem:[%s1 + $0x3c0] sm:$0xff]
    %v147 = vld [vmem:[%s1 + $0x3c8] sm:$0xff]
    %v148 = vld [vmem:[%s1 + $0x3d0] sm:$0xff]
    %v149 = vld [vmem:[%s1 + $0x3d8] sm:$0xff]
    %v150 = vld [vmem:[%s1 + $0x3e0] sm:$0xff]
    %v151 = vld [vmem:[%s1 + $0x3e8] sm:$0xff]
    %v152 = vld [vmem:[%s1 + $0x3f0] sm:$0xff]
    %v153 = vld [vmem:[%s1 + $0x3f8] sm:$0xff]
    %v154 = vld [vmem:[%s1 + $0x400] sm:$0xff]
    %v155 = vld [vmem:[%s1 + $0x408] sm:$0xff]
    %v156 = vld [vmem:[%s1 + $0x410] sm:$0xff]
    %v157 = vld [vmem:[%s1 + $0x418] sm:$0xff]
    %v158 = vld [vmem:[%s1 + $0x420] sm:$0xff]
    %v159 = vld [vmem:[%s1 + $0x428] sm:$0xff]
    %v160 = vld [vmem:[%s1 + $0x430] sm:$0xff]
    %v161 = vld [vmem:[%s1 + $0x438] sm:$0xff]
    %v162 = vld [vmem:[%s1 + $0x440] sm:$0xff]
    %v163 = vld [vmem:[%s1 + $0x448] sm:$0xff]
    %v164 = vld [vmem:[%s1 + $0x450] sm:$0xff]
    %v165 = vld [vmem:[%s1 + $0x458] sm:$0xff]
    %v166 = vld [vmem:[%s1 + $0x460] sm:$0xff]
    %v167 = vld [vmem:[%s1 + $0x468] sm:$0xff]
    %v168 = vld [vmem:[%s1 + $0x470] sm:$0xff]
    %v169 = vld [vmem:[%s1 + $0x478] sm:$0xff]
    %v170 = vld [vmem:[%s1 + $0x480] sm:$0xff]
    %v171 = vld [vmem:[%s1 + $0x488] sm:$0xff]
    %v172 = vld [vmem:[%s1 + $0x490] sm:$0xff]
    %v173 = vld [vmem:[%s1 + $0x498] sm:$0xff]
    %v174 = vld [vmem:[%s1 + $0x4a0] sm:$0xff]
    %v175 = vld [vmem:[%s1 + $0x4a8] sm:$0xff]
    %v176 = vld [vmem:[%s1 + $0x4b0] sm:$0xff]
    %v177 = vld [vmem:[%s1 + $0x4b8] sm:$0xff]
    %v178 = vld [vmem:[%s1 + $0x4c0] sm:$0xff]
    %v179 = vld [vmem:[%s1 + $0x4c8] sm:$0xff]
    %v180 = vld [vmem:[%s1 + $0x4d0] sm:$0xff]
    %v181 = vld [vmem:[%s1 + $0x4d8] sm:$0xff]
    %v182 = vld [vmem:[%s1 + $0x4e0] sm:$0xff]
    %v183 = vld [vmem:[%s1 + $0x4e8] sm:$0xff]
    %v184 = vld [vmem:[%s1 + $0x4f0] sm:$0xff]
    %v185 = vld [vmem:[%s1 + $0x4f8] sm:$0xff]
    %v186 = vld [vmem:[%s1 + $0x500] sm:$0xff]
    %v187 = vld [vmem:[%s1 + $0x508] sm:$0xff]
    %v188 = vld [vmem:[%s1 + $0x510] sm:$0xff]
    %v189 = vld [vmem:[%s1 + $0x518] sm:$0xff]
    %v190 = vld [vmem:[%s1 + $0x520] sm:$0xff]
    %v191 = vld [vmem:[%s1 + $0x528] sm:$0xff]
    %v192 = vld [vmem:[%s1 + $0x530] sm:$0xff]
    %v193 = vld [vmem:[%s1 + $0x538] sm:$0xff]
    %v194 = vld [vmem:[%s1 + $0x540] sm:$0xff]
    %v195 = vld [vmem:[%s1 + $0x548] sm:$0xff]
    %v196 = vld [vmem:[%s1 + $0x550] sm:$0xff]
    %v197 = vld [vmem:[%s1 + $0x558] sm:$0xff]
    %v198 = vld [vmem:[%s1 + $0x560] sm:$0xff]
    %v199 = vld [vmem:[%s1 + $0x568] sm:$0xff]
    %v200 = vld [vmem:[%s1 + $0x570] sm:$0xff]
    %v201 = vld [vmem:[%s1 + $0x578] sm:$0xff]
    %v202 = vld [vmem:[%s1 + $0x580] sm:$0xff]
    %v203 = vld [vmem:[%s1 + $0x588] sm:$0xff]
    %v204 = vld [vmem:[%s1 + $0x590] sm:$0xff]
    %v205 = vld [vmem:[%s1 + $0x598] sm:$0xff]
    %v206 = vld [vmem:[%s1 + $0x5a0] sm:$0xff]
    %v207 = vld [vmem:[%s1 + $0x5a8] sm:$0xff]
    %v208 = vld [vmem:[%s1 + $0x5b0] sm:$0xff]
    %v209 = vld [vmem:[%s1 + $0x5b8] sm:$0xff]
    %v210 = vld [vmem:[%s1 + $0x5c0] sm:$0xff]
    %v211 = vld [vmem:[%s1 + $0x5c8] sm:$0xff]
    %v212 = vld [vmem:[%s1 + $0x5d0] sm:$0xff]
    %v213 = vld [vmem:[%s1 + $0x5d8] sm:$0xff]
    %v214 = vld [vmem:[%s1 + $0x5e0] sm:$0xff]
    %v215 = vld [vmem:[%s1 + $0x5e8] sm:$0xff]
    %v216 = vld [vmem:[%s1 + $0x5f0] sm:$0xff]
    %v217 = vld [vmem:[%s1 + $0x5f8] sm:$0xff]
    %v218 = vld [vmem:[%s1 + $0x600] sm:$0xff]
    %v219 = vld [vmem:[%s1 + $0x608] sm:$0xff]
    %v220 = vld [vmem:[%s1 + $0x610] sm:$0xff]
    %v221 = vld [vmem:[%s1 + $0x618] sm:$0xff]
    %v222 = vld [vmem:[%s1 + $0x620] sm:$0xff]
    %v223 = vld [vmem:[%s1 + $0x628] sm:$0xff]
    %v224 = vld [vmem:[%s1 + $0x630] sm:$0xff]
    %v225 = vld [vmem:[%s1 + $0x638] sm:$0xff]
    %v226 = vld [vmem:[%s1 + $0x640] sm:$0xff]
    %v227 = vld [vmem:[%s1 + $0x648] sm:$0xff]
    %v228 = vld [vmem:[%s1 + $0x650] sm:$0xff]
    %v229 = vld [vmem:[%s1 + $0x658] sm:$0xff]
    %v230 = vld [vmem:[%s1 + $0x660] sm:$0xff]
    %v231 = vld [vmem:[%s1 + $0x668] sm:$0xff]
    %v232 = vld [vmem:[%s1 + $0x670] sm:$0xff]
    %v233 = vld [vmem:[%s1 + $0x678] sm:$0xff]
    %v234 = vld [vmem:[%s1 + $0x680] sm:$0xff]
    %v235 = vld [vmem:[%s1 + $0x688] sm:$0xff]
    %v236 = vld [vmem:[%s1 + $0x690] sm:$0xff]
    %v237 = vld [vmem:[%s1 + $0x698] sm:$0xff]
    %v238 = vld [vmem:[%s1 + $0x6a0] sm:$0xff]
    %v239 = vld [vmem:[%s1 + $0x6a8] sm:$0xff]
    %v240 = vld [vmem:[%s1 + $0x6b0] sm:$0xff]
    %v241 = vld [vmem:[%s1 + $0x6b8] sm:$0xff]
    %v242 = vld [vmem:[%s1 + $0x6c0] sm:$0xff]
    %v243 = vld [vmem:[%s1 + $0x6c8] sm:$0xff]
    %v244 = vld [vmem:[%s1 + $0x6d0] sm:$0xff]
    %v245 = vld [vmem:[%s1 + $0x6d8] sm:$0xff]
    %v246 = vld [vmem:[%s1 + $0x6e0] sm:$0xff]
    %v247 = vld [vmem:[%s1 + $0x6e8] sm:$0xff]
    %v248 = vld [vmem:[%s1 + $0x6f0] sm:$0xff]
    %v249 = vld [vmem:[%s1 + $0x6f8] sm:$0xff]
    %v250 = vld [vmem:[%s1 + $0x700] sm:$0xff]
    %v251 = vld [vmem:[%s1 + $0x708] sm:$0xff]
    %v252 = vld [vmem:[%s1 + $0x710] sm:$0xff]
    %v253 = vld [vmem:[%s1 + $0x718] sm:$0xff]
    %v254 = vld [vmem:[%s1 + $0x720] sm:$0xff]
    %v255 = vld [vmem:[%s1 + $0x728] sm:$0xff]
    %v256 = vld [vmem:[%s1 + $0x730] sm:$0xff]
    %v257 = vld [vmem:[%s1 + $0x738] sm:$0xff]
    %v258 = vld [vmem:[%s1 + $0x740] sm:$0xff]
    %v259 = vld [vmem:[%s1 + $0x748] sm:$0xff]
    %v260 = vld [vmem:[%s1 + $0x750] sm:$0xff]
    %v261 = vld [vmem:[%s1 + $0x758] sm:$0xff]
    %v262 = vld [vmem:[%s1 + $0x760] sm:$0xff]
    %v263 = vld [vmem:[%s1 + $0x768] sm:$0xff]
    %v264 = vld [vmem:[%s1 + $0x770] sm:$0xff]
    %v265 = vld [vmem:[%s1 + $0x778] sm:$0xff]
    %v266 = vld [vmem:[%s1 + $0x780] sm:$0xff]
    %v267 = vld [vmem:[%s1 + $0x788] sm:$0xff]
    %v268 = vld [vmem:[%s1 + $0x790] sm:$0xff]
    %v269 = vld [vmem:[%s1 + $0x798] sm:$0xff]
    %v270 = vld [vmem:[%s1 + $0x7a0] sm:$0xff]
    %v271 = vld [vmem:[%s1 + $0x7a8] sm:$0xff]
    %v272 = vld [vmem:[%s1 + $0x7b0] sm:$0xff]
    %v273 = vld [vmem:[%s1 + $0x7b8] sm:$0xff]
    %v274 = vld [vmem:[%s1 + $0x7c0] sm:$0xff]
    %v275 = vld [vmem:[%s1 + $0x7c8] sm:$0xff]
    %v276 = vld [vmem:[%s1 + $0x7d0] sm:$0xff]
    %v277 = vld [vmem:[%s1 + $0x7d8] sm:$0xff]
    %v278 = vld [vmem:[%s1 + $0x7e0] sm:$0xff]
    %v279 = vld [vmem:[%s1 + $0x7e8] sm:$0xff]
    %v280 = vld [vmem:[%s1 + $0x7f0] sm:$0xff]
    %v281 = vld [vmem:[%s1 + $0x7f8] sm:$0xff]
    %v282 = vld [vmem:[%s1 + $0x800] sm:$0xff]
    %v283 = vld [vmem:[%s1 + $0x808] sm:$0xff]
    %v284 = vld [vmem:[%s1 + $0x810] sm:$0xff]
    %v285 = vld [vmem:[%s1 + $0x818] sm:$0xff]
    %v286 = vld [vmem:[%s1 + $0x820] sm:$0xff]
    %v287 = vld [vmem:[%s1 + $0x828] sm:$0xff]
    %v288 = vld [vmem:[%s1 + $0x830] sm:$0xff]
    %v289 = vld [vmem:[%s1 + $0x838] sm:$0xff]
    %v290 = vld [vmem:[%s1 + $0x840] sm:$0xff]
    %v291 = vld [vmem:[%s1 + $0x848] sm:$0xff]
    %v292 = vld [vmem:[%s1 + $0x850] sm:$0xff]
    %v293 = vld [vmem:[%s1 + $0x858] sm:$0xff]
    %v294 = vld [vmem:[%s1 + $0x860] sm:$0xff]
    %v295 = vld [vmem:[%s1 + $0x868] sm:$0xff]
    %v296 = vld [vmem:[%s1 + $0x870] sm:$0xff]
    %v297 = vld [vmem:[%s1 + $0x878] sm:$0xff]
    %v298 = vld [vmem:[%s1 + $0x880] sm:$0xff]
    %v299 = vld [vmem:[%s1 + $0x888] sm:$0xff]
    %v300 = vld [vmem:[%s1 + $0x890] sm:$0xff]
    %v301 = vld [vmem:[%s1 + $0x898] sm:$0xff]
    %v302 = vld [vmem:[%s1 + $0x8a0] sm:$0xff]
    %v303 = vld [vmem:[%s1 + $0x8a8] sm:$0xff]
    %v304 = vld [vmem:[%s1 + $0x8b0] sm:$0xff]
    %v305 = vld [vmem:[%s1 + $0x8b8] sm:$0xff]
    %v306 = vld [vmem:[%s1 + $0x8c0] sm:$0xff]
    %v307 = vld [vmem:[%s1 + $0x8c8] sm:$0xff]
    %v308 = vld [vmem:[%s1 + $0x8d0] sm:$0xff]
    %v309 = vld [vmem:[%s1 + $0x8d8] sm:$0xff]
    %v310 = vld [vmem:[%s1 + $0x8e0] sm:$0xff]
    %v311 = vld [vmem:[%s1 + $0x8e8] sm:$0xff]
    %v312 = vld [vmem:[%s1 + $0x8f0] sm:$0xff]
    %v313 = vld [vmem:[%s1 + $0x8f8] sm:$0xff]
    %v314 = vld [vmem:[%s1 + $0x900] sm:$0xff]
    %v315 = vld [vmem:[%s1 + $0x908] sm:$0xff]
    %v316 = vld [vmem:[%s1 + $0x910] sm:$0xff]
    %v317 = vld [vmem:[%s1 + $0x918] sm:$0xff]
    %v318 = vld [vmem:[%s1 + $0x920] sm:$0xff]
    %v319 = vld [vmem:[%s1 + $0x928] sm:$0xff]
    %v320 = vld [vmem:[%s1 + $0x930] sm:$0xff]
    %v321 = vld [vmem:[%s1 + $0x938] sm:$0xff]
    %v322 = vld [vmem:[%s1 + $0x940] sm:$0xff]
    %v323 = vld [vmem:[%s1 + $0x948] sm:$0xff]
    %v324 = vld [vmem:[%s1 + $0x950] sm:$0xff]
    %v325 = vld [vmem:[%s1 + $0x958] sm:$0xff]
    %v326 = vld [vmem:[%s1 + $0x960] sm:$0xff]
    %v327 = vld [vmem:[%s1 + $0x968] sm:$0xff]
    %v328 = vld [vmem:[%s1 + $0x970] sm:$0xff]
    %v329 = vld [vmem:[%s1 + $0x978] sm:$0xff]
    %v330 = vld [vmem:[%s1 + $0x980] sm:$0xff]
    %v331 = vld [vmem:[%s1 + $0x988] sm:$0xff]
    %v332 = vld [vmem:[%s1 + $0x990] sm:$0xff]
    %v333 = vld [vmem:[%s1 + $0x998] sm:$0xff]
    %v334 = vld [vmem:[%s1 + $0x9a0] sm:$0xff]
    %v335 = vld [vmem:[%s1 + $0x9a8] sm:$0xff]
    %v336 = vld [vmem:[%s1 + $0x9b0] sm:$0xff]
    %v337 = vld [vmem:[%s1 + $0x9b8] sm:$0xff]
    %v338 = vld [vmem:[%s1 + $0x9c0] sm:$0xff]
    %v339 = vld [vmem:[%s1 + $0x9c8] sm:$0xff]
    %v340 = vld [vmem:[%s1 + $0x9d0] sm:$0xff]
    %v341 = vld [vmem:[%s1 + $0x9d8] sm:$0xff]
    %v342 = vld [vmem:[%s1 + $0x9e0] sm:$0xff]
    %v343 = vld [vmem:[%s1 + $0x9e8] sm:$0xff]
    %v344 = vld [vmem:[%s1 + $0x9f0] sm:$0xff]
    %v345 = vld [vmem:[%s1 + $0x9f8] sm:$0xff]
    %v346 = vld [vmem:[%s1 + $0xa00] sm:$0xff]
    %v347 = vld [vmem:[%s1 + $0xa08] sm:$0xff]
    %v348 = vld [vmem:[%s1 + $0xa10] sm:$0xff]
    %v349 = vld [vmem:[%s1 + $0xa18] sm:$0xff]
    %v350 = vld [vmem:[%s1 + $0xa20] sm:$0xff]
    %v351 = vld [vmem:[%s1 + $0xa28] sm:$0xff]
    %v352 = vld [vmem:[%s1 + $0xa30] sm:$0xff]
    %v353 = vld [vmem:[%s1 + $0xa38] sm:$0xff]
    %v354 = vld [vmem:[%s1 + $0xa40] sm:$0xff]
    %v355 = vld [vmem:[%s1 + $0xa48] sm:$0xff]
    %v356 = vld [vmem:[%s1 + $0xa50] sm:$0xff]
    %v357 = vld [vmem:[%s1 + $0xa58] sm:$0xff]
    %v358 = vld [vmem:[%s1 + $0xa60] sm:$0xff]
    %v359 = vld [vmem:[%s1 + $0xa68] sm:$0xff]
    %v360 = vld [vmem:[%s1 + $0xa70] sm:$0xff]
    %v361 = vld [vmem:[%s1 + $0xa78] sm:$0xff]
    %v362 = vld [vmem:[%s1 + $0xa80] sm:$0xff]
    %v363 = vld [vmem:[%s1 + $0xa88] sm:$0xff]
    %v364 = vld [vmem:[%s1 + $0xa90] sm:$0xff]
    %v365 = vld [vmem:[%s1 + $0xa98] sm:$0xff]
    %v366 = vld [vmem:[%s1 + $0xaa0] sm:$0xff]
    %v367 = vld [vmem:[%s1 + $0xaa8] sm:$0xff]
    %v368 = vld [vmem:[%s1 + $0xab0] sm:$0xff]
    %v369 = vld [vmem:[%s1 + $0xab8] sm:$0xff]
    %v370 = vld [vmem:[%s1 + $0xac0] sm:$0xff]
    %v371 = vld [vmem:[%s1 + $0xac8] sm:$0xff]
    %v372 = vld [vmem:[%s1 + $0xad0] sm:$0xff]
    %v373 = vld [vmem:[%s1 + $0xad8] sm:$0xff]
    %v374 = vld [vmem:[%s1 + $0xae0] sm:$0xff]
    %v375 = vld [vmem:[%s1 + $0xae8] sm:$0xff]
    %v376 = vld [vmem:[%s1 + $0xaf0] sm:$0xff]
    %v377 = vld [vmem:[%s1 + $0xaf8] sm:$0xff]
    %v378 = vld [vmem:[%s1 + $0xb00] sm:$0xff]
    %v379 = vld [vmem:[%s1 + $0xb08] sm:$0xff]
    %v380 = vld [vmem:[%s1 + $0xb10] sm:$0xff]
    %v381 = vld [vmem:[%s1 + $0xb18] sm:$0xff]
    %v382 = vld [vmem:[%s1 + $0xb20] sm:$0xff]
    %v383 = vld [vmem:[%s1 + $0xb28] sm:$0xff]
    %v384 = vld [vmem:[%s1 + $0xb30] sm:$0xff]
    %v385 = vld [vmem:[%s1 + $0xb38] sm:$0xff]
    %v386 = vld [vmem:[%s1 + $0xb40] sm:$0xff]
    %v387 = vld [vmem:[%s1 + $0xb48] sm:$0xff]
    %v388 = vld [vmem:[%s1 + $0xb50] sm:$0xff]
    %v389 = vld [vmem:[%s1 + $0xb58] sm:$0xff]
    %v390 = vld [vmem:[%s1 + $0xb60] sm:$0xff]
    %v391 = vld [vmem:[%s1 + $0xb68] sm:$0xff]
    %v392 = vld [vmem:[%s1 + $0xb70] sm:$0xff]
    %v393 = vld [vmem:[%s1 + $0xb78] sm:$0xff]
    %v394 = vld [vmem:[%s1 + $0xb80] sm:$0xff]
    %v395 = vld [vmem:[%s1 + $0xb88] sm:$0xff]
    %v396 = vld [vmem:[%s1 + $0xb90] sm:$0xff]
    %v397 = vld [vmem:[%s1 + $0xb98] sm:$0xff]
    %v398 = vld [vmem:[%s1 + $0xba0] sm:$0xff]
    %v399 = vld [vmem:[%s1 + $0xba8] sm:$0xff]
    %v400 = vld [vmem:[%s1 + $0xbb0] sm:$0xff]
    %v401 = vld [vmem:[%s1 + $0xbb8] sm:$0xff]
    %v402 = vld [vmem:[%s1 + $0xbc0] sm:$0xff]
    %v403 = vld [vmem:[%s1 + $0xbc8] sm:$0xff]
    %v404 = vld [vmem:[%s1 + $0xbd0] sm:$0xff]
    %v405 = vld [vmem:[%s1 + $0xbd8] sm:$0xff]
    %v406 = vld [vmem:[%s1 + $0xbe0] sm:$0xff]
    %v407 = vld [vmem:[%s1 + $0xbe8] sm:$0xff]
    %v408 = vld [vmem:[%s1 + $0xbf0] sm:$0xff]
    %v409 = vld [vmem:[%s1 + $0xbf8] sm:$0xff]
    %v410 = vld [vmem:[%s1 + $0xc00] sm:$0xff]
    %v411 = vld [vmem:[%s1 + $0xc08] sm:$0xff]
    %v412 = vld [vmem:[%s1 + $0xc10] sm:$0xff]
    %v413 = vld [vmem:[%s1 + $0xc18] sm:$0xff]
    %v414 = vld [vmem:[%s1 + $0xc20] sm:$0xff]
    %v415 = vld [vmem:[%s1 + $0xc28] sm:$0xff]
    %v416 = vld [vmem:[%s1 + $0xc30] sm:$0xff]
    %v417 = vld [vmem:[%s1 + $0xc38] sm:$0xff]
    %v418 = vld [vmem:[%s2] sm:$0x3]
    %v420 = vlaneseq
    %v421 = vshrl.u32 %v420, 7
    %v422 = vsub.s32 0, %v421
    %v423 = vrot.slane %v418, %v422
    %v424 = vlaneseq
    %v425 = vshrl.u32 %v424, 7
    %v426 = vsub.s32 1, %v425
    %v427 = vrot.slane %v418, %v426
    %v434 = vcombine.high %v22, %v22
    %v436 = vunpack.c.l.s4 1966171168
    %v437 = vunpack.c.0.s8 %v436
    %v438 = vlaneseq
    %v439 = vshrl.u32 %v438, 7
    %v440 = vsub.s32 %v437, %v439
    %v441 = vrot.slane %v22, %v440
    %v443 = vunpack.c.l.s4 1966171168
    %v444 = vunpack.c.0.s8 %v443
    %v445 = vlaneseq
    %v446 = vshrl.u32 %v445, 7
    %v447 = vsub.s32 %v444, %v446
    %v448 = vrot.slane %v434, %v447
    %v449 = vcombine.high %v441, %v441
    %v450 = vcombine.high %v448, %v448
    %v452 = vunpack.c.l.s4 1966171168
    %v453 = vunpack.c.0.s8 %v452
    %v454 = vlaneseq
    %v455 = vshrl.u32 %v454, 7
    %v456 = vsub.s32 %v453, %v455
    %v457 = vrot.slane %v441, %v456
    %v459 = vunpack.c.l.s4 1966171168
    %v460 = vunpack.c.0.s8 %v459
    %v461 = vlaneseq
    %v462 = vshrl.u32 %v461, 7
    %v463 = vsub.s32 %v460, %v462
    %v464 = vrot.slane %v448, %v463
    %v466 = vunpack.c.l.s4 1966171168
    %v467 = vunpack.c.0.s8 %v466
    %v468 = vlaneseq
    %v469 = vshrl.u32 %v468, 7
    %v470 = vsub.s32 %v467, %v469
    %v471 = vrot.slane %v449, %v470
    %v473 = vunpack.c.l.s4 1966171168
    %v474 = vunpack.c.0.s8 %v473
    %v475 = vlaneseq
    %v476 = vshrl.u32 %v475, 7
    %v477 = vsub.s32 %v474, %v476
    %v478 = vrot.slane %v450, %v477
    %v479 = vcombine.high %v457, %v457
    %v480 = vcombine.high %v464, %v464
    %v481 = vcombine.high %v471, %v471
    %v482 = vcombine.high %v478, %v478
    %v483 = vcombine.high %v23, %v23
    %v485 = vunpack.c.l.s4 1966171168
    %v486 = vunpack.c.0.s8 %v485
    %v487 = vlaneseq
    %v488 = vshrl.u32 %v487, 7
    %v489 = vsub.s32 %v486, %v488
    %v490 = vrot.slane %v23, %v489
    %v492 = vunpack.c.l.s4 1966171168
    %v493 = vunpack.c.0.s8 %v492
    %v494 = vlaneseq
    %v495 = vshrl.u32 %v494, 7
    %v496 = vsub.s32 %v493, %v495
    %v497 = vrot.slane %v483, %v496
    %v498 = vcombine.high %v490, %v490
    %v499 = vcombine.high %v497, %v497
    %v501 = vunpack.c.l.s4 1966171168
    %v502 = vunpack.c.0.s8 %v501
    %v503 = vlaneseq
    %v504 = vshrl.u32 %v503, 7
    %v505 = vsub.s32 %v502, %v504
    %v506 = vrot.slane %v490, %v505
    %v508 = vunpack.c.l.s4 1966171168
    %v509 = vunpack.c.0.s8 %v508
    %v510 = vlaneseq
    %v511 = vshrl.u32 %v510, 7
    %v512 = vsub.s32 %v509, %v511
    %v513 = vrot.slane %v497, %v512
    %v515 = vunpack.c.l.s4 1966171168
    %v516 = vunpack.c.0.s8 %v515
    %v517 = vlaneseq
    %v518 = vshrl.u32 %v517, 7
    %v519 = vsub.s32 %v516, %v518
    %v520 = vrot.slane %v498, %v519
    %v522 = vunpack.c.l.s4 1966171168
    %v523 = vunpack.c.0.s8 %v522
    %v524 = vlaneseq
    %v525 = vshrl.u32 %v524, 7
    %v526 = vsub.s32 %v523, %v525
    %v527 = vrot.slane %v499, %v526
    %v528 = vcombine.high %v506, %v506
    %v529 = vcombine.high %v513, %v513
    %v530 = vcombine.high %v520, %v520
    %v531 = vcombine.high %v527, %v527
    %v532 = vcombine.high %v24, %v24
    %v534 = vunpack.c.l.s4 1966171168
    %v535 = vunpack.c.0.s8 %v534
    %v536 = vlaneseq
    %v537 = vshrl.u32 %v536, 7
    %v538 = vsub.s32 %v535, %v537
    %v539 = vrot.slane %v24, %v538
    %v541 = vunpack.c.l.s4 1966171168
    %v542 = vunpack.c.0.s8 %v541
    %v543 = vlaneseq
    %v544 = vshrl.u32 %v543, 7
    %v545 = vsub.s32 %v542, %v544
    %v546 = vrot.slane %v532, %v545
    %v547 = vcombine.high %v539, %v539
    %v548 = vcombine.high %v546, %v546
    %v550 = vunpack.c.l.s4 1966171168
    %v551 = vunpack.c.0.s8 %v550
    %v552 = vlaneseq
    %v553 = vshrl.u32 %v552, 7
    %v554 = vsub.s32 %v551, %v553
    %v555 = vrot.slane %v539, %v554
    %v557 = vunpack.c.l.s4 1966171168
    %v558 = vunpack.c.0.s8 %v557
    %v559 = vlaneseq
    %v560 = vshrl.u32 %v559, 7
    %v561 = vsub.s32 %v558, %v560
    %v562 = vrot.slane %v546, %v561
    %v564 = vunpack.c.l.s4 1966171168
    %v565 = vunpack.c.0.s8 %v564
    %v566 = vlaneseq
    %v567 = vshrl.u32 %v566, 7
    %v568 = vsub.s32 %v565, %v567
    %v569 = vrot.slane %v547, %v568
    %v571 = vunpack.c.l.s4 1966171168
    %v572 = vunpack.c.0.s8 %v571
    %v573 = vlaneseq
    %v574 = vshrl.u32 %v573, 7
    %v575 = vsub.s32 %v572, %v574
    %v576 = vrot.slane %v548, %v575
    %v577 = vcombine.high %v555, %v555
    %v578 = vcombine.high %v562, %v562
    %v579 = vcombine.high %v569, %v569
    %v580 = vcombine.high %v576, %v576
    %v582 = vunpack.c.l.s4 1966171168
    %v583 = vunpack.c.0.s8 %v582
    %v584 = vlaneseq
    %v585 = vshrl.u32 %v584, 7
    %v586 = vsub.s32 %v583, %v585
    %v587 = vrot.slane %v25, %v586
    %v589 = vunpack.c.l.s4 1966171168
    %v590 = vunpack.c.0.s8 %v589
    %v591 = vlaneseq
    %v592 = vshrl.u32 %v591, 7
    %v593 = vsub.s32 %v590, %v592
    %v594 = vrot.slane %v587, %v593
    %v1011 = vunpack.c.l.b16 %v26
    %v1012 = vunpack.c.h.b16 %v26
    %v1013 = vunpack.c.l.b16 %v27
    %v1014 = vunpack.c.h.b16 %v27
    %v1015 = vunpack.c.l.b16 %v28
    %v1016 = vunpack.c.h.b16 %v28
    %v1017 = vunpack.c.l.b16 %v29
    %v1018 = vunpack.c.h.b16 %v29
    %v1019 = vunpack.c.l.b16 %v30
    %v1020 = vunpack.c.h.b16 %v30
    %v1021 = vunpack.c.l.b16 %v31
    %v1022 = vunpack.c.h.b16 %v31
    %v1023 = vunpack.c.l.b16 %v32
    %v1024 = vunpack.c.h.b16 %v32
    %v1025 = vunpack.c.l.b16 %v33
    %v1026 = vunpack.c.h.b16 %v33
    %v1027 = vunpack.c.l.b16 %v34
    %v1028 = vunpack.c.h.b16 %v34
    %v1029 = vunpack.c.l.b16 %v35
    %v1030 = vunpack.c.h.b16 %v35
    %v1031 = vunpack.c.l.b16 %v36
    %v1032 = vunpack.c.h.b16 %v36
    %v1033 = vunpack.c.l.b16 %v37
    %v1034 = vunpack.c.h.b16 %v37
    %v1035 = vunpack.c.l.b16 %v38
    %v1036 = vunpack.c.h.b16 %v38
    %v1037 = vunpack.c.l.b16 %v39
    %v1038 = vunpack.c.h.b16 %v39
    %v1039 = vunpack.c.l.b16 %v40
    %v1040 = vunpack.c.h.b16 %v40
    %v1041 = vunpack.c.l.b16 %v41
    %v1042 = vunpack.c.h.b16 %v41
    %v1043 = vunpack.c.l.b16 %v42
    %v1044 = vunpack.c.h.b16 %v42
    %v1045 = vunpack.c.l.b16 %v43
    %v1046 = vunpack.c.h.b16 %v43
    %v1047 = vunpack.c.l.b16 %v44
    %v1048 = vunpack.c.h.b16 %v44
    %v1049 = vunpack.c.l.b16 %v45
    %v1050 = vunpack.c.h.b16 %v45
    %v1051 = vunpack.c.l.b16 %v46
    %v1052 = vunpack.c.h.b16 %v46
    %v1053 = vunpack.c.l.b16 %v47
    %v1054 = vunpack.c.h.b16 %v47
    %v1055 = vunpack.c.l.b16 %v48
    %v1056 = vunpack.c.h.b16 %v48
    %v1057 = vunpack.c.l.b16 %v49
    %v1058 = vunpack.c.h.b16 %v49
    %v1059 = vunpack.c.l.b16 %v50
    %v1060 = vunpack.c.h.b16 %v50
    %v1061 = vunpack.c.l.b16 %v51
    %v1062 = vunpack.c.h.b16 %v51
    %v1063 = vunpack.c.l.b16 %v52
    %v1064 = vunpack.c.h.b16 %v52
    %v1065 = vunpack.c.l.b16 %v53
    %v1066 = vunpack.c.h.b16 %v53
    %v1067 = vunpack.c.l.b16 %v54
    %v1068 = vunpack.c.h.b16 %v54
    %v1069 = vunpack.c.l.b16 %v55
    %v1070 = vunpack.c.h.b16 %v55
    %v1071 = vunpack.c.l.b16 %v56
    %v1072 = vunpack.c.h.b16 %v56
    %v1073 = vunpack.c.l.b16 %v57
    %v1074 = vunpack.c.h.b16 %v57
    %v1075 = vunpack.c.l.b16 %v58
    %v1076 = vunpack.c.h.b16 %v58
    %v1077 = vunpack.c.l.b16 %v59
    %v1078 = vunpack.c.h.b16 %v59
    %v1079 = vunpack.c.l.b16 %v60
    %v1080 = vunpack.c.h.b16 %v60
    %v1081 = vunpack.c.l.b16 %v61
    %v1082 = vunpack.c.h.b16 %v61
    %v1083 = vunpack.c.l.b16 %v62
    %v1084 = vunpack.c.h.b16 %v62
    %v1085 = vunpack.c.l.b16 %v63
    %v1086 = vunpack.c.h.b16 %v63
    %v1087 = vunpack.c.l.b16 %v64
    %v1088 = vunpack.c.h.b16 %v64
    %v1089 = vunpack.c.l.b16 %v65
    %v1090 = vunpack.c.h.b16 %v65
    %v1091 = vunpack.c.l.b16 %v66
    %v1092 = vunpack.c.h.b16 %v66
    %v1093 = vunpack.c.l.b16 %v67
    %v1094 = vunpack.c.h.b16 %v67
    %v1095 = vunpack.c.l.b16 %v68
    %v1096 = vunpack.c.h.b16 %v68
    %v1097 = vunpack.c.l.b16 %v69
    %v1098 = vunpack.c.h.b16 %v69
    %v1099 = vunpack.c.l.b16 %v70
    %v1100 = vunpack.c.h.b16 %v70
    %v1101 = vunpack.c.l.b16 %v71
    %v1102 = vunpack.c.h.b16 %v71
    %v1103 = vunpack.c.l.b16 %v72
    %v1104 = vunpack.c.h.b16 %v72
    %v1105 = vunpack.c.l.b16 %v73
    %v1106 = vunpack.c.h.b16 %v73
    %v1107 = vunpack.c.l.b16 %v74
    %v1108 = vunpack.c.h.b16 %v74
    %v1109 = vunpack.c.l.b16 %v75
    %v1110 = vunpack.c.h.b16 %v75
    %v1111 = vunpack.c.l.b16 %v76
    %v1112 = vunpack.c.h.b16 %v76
    %v1113 = vunpack.c.l.b16 %v77
    %v1114 = vunpack.c.h.b16 %v77
    %v1115 = vunpack.c.l.b16 %v78
    %v1116 = vunpack.c.h.b16 %v78
    %v1117 = vunpack.c.l.b16 %v79
    %v1118 = vunpack.c.h.b16 %v79
    %v1119 = vunpack.c.l.b16 %v80
    %v1120 = vunpack.c.h.b16 %v80
    %v1121 = vunpack.c.l.b16 %v81
    %v1122 = vunpack.c.h.b16 %v81
    %v1123 = vunpack.c.l.b16 %v82
    %v1124 = vunpack.c.h.b16 %v82
    %v1125 = vunpack.c.l.b16 %v83
    %v1126 = vunpack.c.h.b16 %v83
    %v1127 = vunpack.c.l.b16 %v84
    %v1128 = vunpack.c.h.b16 %v84
    %v1129 = vunpack.c.l.b16 %v85
    %v1130 = vunpack.c.h.b16 %v85
    %v1131 = vunpack.c.l.b16 %v86
    %v1132 = vunpack.c.h.b16 %v86
    %v1133 = vunpack.c.l.b16 %v87
    %v1134 = vunpack.c.h.b16 %v87
    %v1135 = vunpack.c.l.b16 %v88
    %v1136 = vunpack.c.h.b16 %v88
    %v1137 = vunpack.c.l.b16 %v89
    %v1138 = vunpack.c.h.b16 %v89
    %v1139 = vunpack.c.l.b16 %v90
    %v1140 = vunpack.c.h.b16 %v90
    %v1141 = vunpack.c.l.b16 %v91
    %v1142 = vunpack.c.h.b16 %v91
    %v1143 = vunpack.c.l.b16 %v92
    %v1144 = vunpack.c.h.b16 %v92
    %v1145 = vunpack.c.l.b16 %v93
    %v1146 = vunpack.c.h.b16 %v93
    %v1147 = vunpack.c.l.b16 %v94
    %v1148 = vunpack.c.h.b16 %v94
    %v1149 = vunpack.c.l.b16 %v95
    %v1150 = vunpack.c.h.b16 %v95
    %v1151 = vunpack.c.l.b16 %v96
    %v1152 = vunpack.c.h.b16 %v96
    %v1153 = vunpack.c.l.b16 %v97
    %v1154 = vunpack.c.h.b16 %v97
    %v1155 = vunpack.c.l.b16 %v98
    %v1156 = vunpack.c.h.b16 %v98
    %v1157 = vunpack.c.l.b16 %v99
    %v1158 = vunpack.c.h.b16 %v99
    %v1159 = vunpack.c.l.b16 %v100
    %v1160 = vunpack.c.h.b16 %v100
    %v1161 = vunpack.c.l.b16 %v101
    %v1162 = vunpack.c.h.b16 %v101
    %v1163 = vunpack.c.l.b16 %v102
    %v1164 = vunpack.c.h.b16 %v102
    %v1165 = vunpack.c.l.b16 %v103
    %v1166 = vunpack.c.h.b16 %v103
    %v1167 = vunpack.c.l.b16 %v104
    %v1168 = vunpack.c.h.b16 %v104
    %v1169 = vunpack.c.l.b16 %v105
    %v1170 = vunpack.c.h.b16 %v105
    %v1171 = vunpack.c.l.b16 %v106
    %v1172 = vunpack.c.h.b16 %v106
    %v1173 = vunpack.c.l.b16 %v107
    %v1174 = vunpack.c.h.b16 %v107
    %v1175 = vunpack.c.l.b16 %v108
    %v1176 = vunpack.c.h.b16 %v108
    %v1177 = vunpack.c.l.b16 %v109
    %v1178 = vunpack.c.h.b16 %v109
    %v1179 = vunpack.c.l.b16 %v110
    %v1180 = vunpack.c.h.b16 %v110
    %v1181 = vunpack.c.l.b16 %v111
    %v1182 = vunpack.c.h.b16 %v111
    %v1183 = vunpack.c.l.b16 %v112
    %v1184 = vunpack.c.h.b16 %v112
    %v1185 = vunpack.c.l.b16 %v113
    %v1186 = vunpack.c.h.b16 %v113
    %v1187 = vunpack.c.l.b16 %v114
    %v1188 = vunpack.c.h.b16 %v114
    %v1189 = vunpack.c.l.b16 %v115
    %v1190 = vunpack.c.h.b16 %v115
    %v1191 = vunpack.c.l.b16 %v116
    %v1192 = vunpack.c.h.b16 %v116
    %v1193 = vunpack.c.l.b16 %v117
    %v1194 = vunpack.c.h.b16 %v117
    %v1195 = vunpack.c.l.b16 %v118
    %v1196 = vunpack.c.h.b16 %v118
    %v1197 = vunpack.c.l.b16 %v119
    %v1198 = vunpack.c.h.b16 %v119
    %v1199 = vunpack.c.l.b16 %v120
    %v1200 = vunpack.c.h.b16 %v120
    %v1201 = vunpack.c.l.b16 %v121
    %v1202 = vunpack.c.h.b16 %v121
    %v1203 = vunpack.c.l.b16 %v122
    %v1204 = vunpack.c.h.b16 %v122
    %v1205 = vunpack.c.l.b16 %v123
    %v1206 = vunpack.c.h.b16 %v123
    %v1207 = vunpack.c.l.b16 %v124
    %v1208 = vunpack.c.h.b16 %v124
    %v1209 = vunpack.c.l.b16 %v125
    %v1210 = vunpack.c.h.b16 %v125
    %v1211 = vunpack.c.l.b16 %v126
    %v1212 = vunpack.c.h.b16 %v126
    %v1213 = vunpack.c.l.b16 %v127
    %v1214 = vunpack.c.h.b16 %v127
    %v1215 = vunpack.c.l.b16 %v128
    %v1216 = vunpack.c.h.b16 %v128
    %v1217 = vunpack.c.l.b16 %v129
    %v1218 = vunpack.c.h.b16 %v129
    %v1219 = vunpack.c.l.b16 %v130
    %v1220 = vunpack.c.h.b16 %v130
    %v1221 = vunpack.c.l.b16 %v131
    %v1222 = vunpack.c.h.b16 %v131
    %v1223 = vunpack.c.l.b16 %v132
    %v1224 = vunpack.c.h.b16 %v132
    %v1225 = vunpack.c.l.b16 %v133
    %v1226 = vunpack.c.h.b16 %v133
    %v1227 = vunpack.c.l.b16 %v134
    %v1228 = vunpack.c.h.b16 %v134
    %v1229 = vunpack.c.l.b16 %v135
    %v1230 = vunpack.c.h.b16 %v135
    %v1231 = vunpack.c.l.b16 %v136
    %v1232 = vunpack.c.h.b16 %v136
    %v1233 = vunpack.c.l.b16 %v137
    %v1234 = vunpack.c.h.b16 %v137
    %v1235 = vunpack.c.l.b16 %v138
    %v1236 = vunpack.c.h.b16 %v138
    %v1237 = vunpack.c.l.b16 %v139
    %v1238 = vunpack.c.h.b16 %v139
    %v1239 = vunpack.c.l.b16 %v140
    %v1240 = vunpack.c.h.b16 %v140
    %v1241 = vunpack.c.l.b16 %v141
    %v1242 = vunpack.c.h.b16 %v141
    %v1243 = vunpack.c.l.b16 %v142
    %v1244 = vunpack.c.h.b16 %v142
    %v1245 = vunpack.c.l.b16 %v143
    %v1246 = vunpack.c.h.b16 %v143
    %v1247 = vunpack.c.l.b16 %v144
    %v1248 = vunpack.c.h.b16 %v144
    %v1249 = vunpack.c.l.b16 %v145
    %v1250 = vunpack.c.h.b16 %v145
    %v1251 = vunpack.c.l.b16 %v146
    %v1252 = vunpack.c.h.b16 %v146
    %v1253 = vunpack.c.l.b16 %v147
    %v1254 = vunpack.c.h.b16 %v147
    %v1255 = vunpack.c.l.b16 %v148
    %v1256 = vunpack.c.h.b16 %v148
    %v1257 = vunpack.c.l.b16 %v149
    %v1258 = vunpack.c.h.b16 %v149
    %v1259 = vunpack.c.l.b16 %v150
    %v1260 = vunpack.c.h.b16 %v150
    %v1261 = vunpack.c.l.b16 %v151
    %v1262 = vunpack.c.h.b16 %v151
    %v1263 = vunpack.c.l.b16 %v152
    %v1264 = vunpack.c.h.b16 %v152
    %v1265 = vunpack.c.l.b16 %v153
    %v1266 = vunpack.c.h.b16 %v153
    %v1267 = vunpack.c.l.b16 %v154
    %v1268 = vunpack.c.h.b16 %v154
    %v1269 = vunpack.c.l.b16 %v155
    %v1270 = vunpack.c.h.b16 %v155
    %v1271 = vunpack.c.l.b16 %v156
    %v1272 = vunpack.c.h.b16 %v156
    %v1273 = vunpack.c.l.b16 %v157
    %v1274 = vunpack.c.h.b16 %v157
    %v1275 = vunpack.c.l.b16 %v158
    %v1276 = vunpack.c.h.b16 %v158
    %v1277 = vunpack.c.l.b16 %v159
    %v1278 = vunpack.c.h.b16 %v159
    %v1279 = vunpack.c.l.b16 %v160
    %v1280 = vunpack.c.h.b16 %v160
    %v1281 = vunpack.c.l.b16 %v161
    %v1282 = vunpack.c.h.b16 %v161
    %v1283 = vunpack.c.l.b16 %v162
    %v1284 = vunpack.c.h.b16 %v162
    %v1285 = vunpack.c.l.b16 %v163
    %v1286 = vunpack.c.h.b16 %v163
    %v1287 = vunpack.c.l.b16 %v164
    %v1288 = vunpack.c.h.b16 %v164
    %v1289 = vunpack.c.l.b16 %v165
    %v1290 = vunpack.c.h.b16 %v165
    %v1291 = vunpack.c.l.b16 %v166
    %v1292 = vunpack.c.h.b16 %v166
    %v1293 = vunpack.c.l.b16 %v167
    %v1294 = vunpack.c.h.b16 %v167
    %v1295 = vunpack.c.l.b16 %v168
    %v1296 = vunpack.c.h.b16 %v168
    %v1297 = vunpack.c.l.b16 %v169
    %v1298 = vunpack.c.h.b16 %v169
    %v1299 = vunpack.c.l.b16 %v170
    %v1300 = vunpack.c.h.b16 %v170
    %v1301 = vunpack.c.l.b16 %v171
    %v1302 = vunpack.c.h.b16 %v171
    %v1303 = vunpack.c.l.b16 %v172
    %v1304 = vunpack.c.h.b16 %v172
    %v1305 = vunpack.c.l.b16 %v173
    %v1306 = vunpack.c.h.b16 %v173
    %v1307 = vunpack.c.l.b16 %v174
    %v1308 = vunpack.c.h.b16 %v174
    %v1309 = vunpack.c.l.b16 %v175
    %v1310 = vunpack.c.h.b16 %v175
    %v1311 = vunpack.c.l.b16 %v176
    %v1312 = vunpack.c.h.b16 %v176
    %v1313 = vunpack.c.l.b16 %v177
    %v1314 = vunpack.c.h.b16 %v177
    %v1315 = vunpack.c.l.b16 %v178
    %v1316 = vunpack.c.h.b16 %v178
    %v1317 = vunpack.c.l.b16 %v179
    %v1318 = vunpack.c.h.b16 %v179
    %v1319 = vunpack.c.l.b16 %v180
    %v1320 = vunpack.c.h.b16 %v180
    %v1321 = vunpack.c.l.b16 %v181
    %v1322 = vunpack.c.h.b16 %v181
    %v1323 = vunpack.c.l.b16 %v182
    %v1324 = vunpack.c.h.b16 %v182
    %v1325 = vunpack.c.l.b16 %v183
    %v1326 = vunpack.c.h.b16 %v183
    %v1327 = vunpack.c.l.b16 %v184
    %v1328 = vunpack.c.h.b16 %v184
    %v1329 = vunpack.c.l.b16 %v185
    %v1330 = vunpack.c.h.b16 %v185
    %v1331 = vunpack.c.l.b16 %v186
    %v1332 = vunpack.c.h.b16 %v186
    %v1333 = vunpack.c.l.b16 %v187
    %v1334 = vunpack.c.h.b16 %v187
    %v1335 = vunpack.c.l.b16 %v188
    %v1336 = vunpack.c.h.b16 %v188
    %v1337 = vunpack.c.l.b16 %v189
    %v1338 = vunpack.c.h.b16 %v189
    %v1339 = vunpack.c.l.b16 %v190
    %v1340 = vunpack.c.h.b16 %v190
    %v1341 = vunpack.c.l.b16 %v191
    %v1342 = vunpack.c.h.b16 %v191
    %v1343 = vunpack.c.l.b16 %v192
    %v1344 = vunpack.c.h.b16 %v192
    %v1345 = vunpack.c.l.b16 %v193
    %v1346 = vunpack.c.h.b16 %v193
    %v1347 = vunpack.c.l.b16 %v194
    %v1348 = vunpack.c.h.b16 %v194
    %v1349 = vunpack.c.l.b16 %v195
    %v1350 = vunpack.c.h.b16 %v195
    %v1351 = vunpack.c.l.b16 %v196
    %v1352 = vunpack.c.h.b16 %v196
    %v1353 = vunpack.c.l.b16 %v197
    %v1354 = vunpack.c.h.b16 %v197
    %v1355 = vunpack.c.l.b16 %v198
    %v1356 = vunpack.c.h.b16 %v198
    %v1357 = vunpack.c.l.b16 %v199
    %v1358 = vunpack.c.h.b16 %v199
    %v1359 = vunpack.c.l.b16 %v200
    %v1360 = vunpack.c.h.b16 %v200
    %v1361 = vunpack.c.l.b16 %v201
    %v1362 = vunpack.c.h.b16 %v201
    %v1363 = vunpack.c.l.b16 %v202
    %v1364 = vunpack.c.h.b16 %v202
    %v1365 = vunpack.c.l.b16 %v203
    %v1366 = vunpack.c.h.b16 %v203
    %v1367 = vunpack.c.l.b16 %v204
    %v1368 = vunpack.c.h.b16 %v204
    %v1369 = vunpack.c.l.b16 %v205
    %v1370 = vunpack.c.h.b16 %v205
    %v1371 = vunpack.c.l.b16 %v206
    %v1372 = vunpack.c.h.b16 %v206
    %v1373 = vunpack.c.l.b16 %v207
    %v1374 = vunpack.c.h.b16 %v207
    %v1375 = vunpack.c.l.b16 %v208
    %v1376 = vunpack.c.h.b16 %v208
    %v1377 = vunpack.c.l.b16 %v209
    %v1378 = vunpack.c.h.b16 %v209
    %v1379 = vunpack.c.l.b16 %v210
    %v1380 = vunpack.c.h.b16 %v210
    %v1381 = vunpack.c.l.b16 %v211
    %v1382 = vunpack.c.h.b16 %v211
    %v1383 = vunpack.c.l.b16 %v212
    %v1384 = vunpack.c.h.b16 %v212
    %v1385 = vunpack.c.l.b16 %v213
    %v1386 = vunpack.c.h.b16 %v213
    %v1387 = vunpack.c.l.b16 %v214
    %v1388 = vunpack.c.h.b16 %v214
    %v1389 = vunpack.c.l.b16 %v215
    %v1390 = vunpack.c.h.b16 %v215
    %v1391 = vunpack.c.l.b16 %v216
    %v1392 = vunpack.c.h.b16 %v216
    %v1393 = vunpack.c.l.b16 %v217
    %v1394 = vunpack.c.h.b16 %v217
    %v1395 = vunpack.c.l.b16 %v218
    %v1396 = vunpack.c.h.b16 %v218
    %v1397 = vunpack.c.l.b16 %v219
    %v1398 = vunpack.c.h.b16 %v219
    %v1399 = vunpack.c.l.b16 %v220
    %v1400 = vunpack.c.h.b16 %v220
    %v1401 = vunpack.c.l.b16 %v221
    %v1402 = vunpack.c.h.b16 %v221
    %v1403 = vunpack.c.l.b16 %v222
    %v1404 = vunpack.c.h.b16 %v222
    %v1405 = vunpack.c.l.b16 %v223
    %v1406 = vunpack.c.h.b16 %v223
    %v1407 = vunpack.c.l.b16 %v224
    %v1408 = vunpack.c.h.b16 %v224
    %v1409 = vunpack.c.l.b16 %v225
    %v1410 = vunpack.c.h.b16 %v225
    %v1411 = vunpack.c.l.b16 %v226
    %v1412 = vunpack.c.h.b16 %v226
    %v1413 = vunpack.c.l.b16 %v227
    %v1414 = vunpack.c.h.b16 %v227
    %v1415 = vunpack.c.l.b16 %v228
    %v1416 = vunpack.c.h.b16 %v228
    %v1417 = vunpack.c.l.b16 %v229
    %v1418 = vunpack.c.h.b16 %v229
    %v1419 = vunpack.c.l.b16 %v230
    %v1420 = vunpack.c.h.b16 %v230
    %v1421 = vunpack.c.l.b16 %v231
    %v1422 = vunpack.c.h.b16 %v231
    %v1423 = vunpack.c.l.b16 %v232
    %v1424 = vunpack.c.h.b16 %v232
    %v1425 = vunpack.c.l.b16 %v233
    %v1426 = vunpack.c.h.b16 %v233
    %v1427 = vunpack.c.l.b16 %v234
    %v1428 = vunpack.c.h.b16 %v234
    %v1429 = vunpack.c.l.b16 %v235
    %v1430 = vunpack.c.h.b16 %v235
    %v1431 = vunpack.c.l.b16 %v236
    %v1432 = vunpack.c.h.b16 %v236
    %v1433 = vunpack.c.l.b16 %v237
    %v1434 = vunpack.c.h.b16 %v237
    %v1435 = vunpack.c.l.b16 %v238
    %v1436 = vunpack.c.h.b16 %v238
    %v1437 = vunpack.c.l.b16 %v239
    %v1438 = vunpack.c.h.b16 %v239
    %v1439 = vunpack.c.l.b16 %v240
    %v1440 = vunpack.c.h.b16 %v240
    %v1441 = vunpack.c.l.b16 %v241
    %v1442 = vunpack.c.h.b16 %v241
    %v1443 = vunpack.c.l.b16 %v242
    %v1444 = vunpack.c.h.b16 %v242
    %v1445 = vunpack.c.l.b16 %v243
    %v1446 = vunpack.c.h.b16 %v243
    %v1447 = vunpack.c.l.b16 %v244
    %v1448 = vunpack.c.h.b16 %v244
    %v1449 = vunpack.c.l.b16 %v245
    %v1450 = vunpack.c.h.b16 %v245
    %v1451 = vunpack.c.l.b16 %v246
    %v1452 = vunpack.c.h.b16 %v246
    %v1453 = vunpack.c.l.b16 %v247
    %v1454 = vunpack.c.h.b16 %v247
    %v1455 = vunpack.c.l.b16 %v248
    %v1456 = vunpack.c.h.b16 %v248
    %v1457 = vunpack.c.l.b16 %v249
    %v1458 = vunpack.c.h.b16 %v249
    %v1459 = vunpack.c.l.b16 %v250
    %v1460 = vunpack.c.h.b16 %v250
    %v1461 = vunpack.c.l.b16 %v251
    %v1462 = vunpack.c.h.b16 %v251
    %v1463 = vunpack.c.l.b16 %v252
    %v1464 = vunpack.c.h.b16 %v252
    %v1465 = vunpack.c.l.b16 %v253
    %v1466 = vunpack.c.h.b16 %v253
    %v1467 = vunpack.c.l.b16 %v254
    %v1468 = vunpack.c.h.b16 %v254
    %v1469 = vunpack.c.l.b16 %v255
    %v1470 = vunpack.c.h.b16 %v255
    %v1471 = vunpack.c.l.b16 %v256
    %v1472 = vunpack.c.h.b16 %v256
    %v1473 = vunpack.c.l.b16 %v257
    %v1474 = vunpack.c.h.b16 %v257
    %v1475 = vunpack.c.l.b16 %v258
    %v1476 = vunpack.c.h.b16 %v258
    %v1477 = vunpack.c.l.b16 %v259
    %v1478 = vunpack.c.h.b16 %v259
    %v1479 = vunpack.c.l.b16 %v260
    %v1480 = vunpack.c.h.b16 %v260
    %v1481 = vunpack.c.l.b16 %v261
    %v1482 = vunpack.c.h.b16 %v261
    %v1483 = vunpack.c.l.b16 %v262
    %v1484 = vunpack.c.h.b16 %v262
    %v1485 = vunpack.c.l.b16 %v263
    %v1486 = vunpack.c.h.b16 %v263
    %v1487 = vunpack.c.l.b16 %v264
    %v1488 = vunpack.c.h.b16 %v264
    %v1489 = vunpack.c.l.b16 %v265
    %v1490 = vunpack.c.h.b16 %v265
    %v1491 = vunpack.c.l.b16 %v266
    %v1492 = vunpack.c.h.b16 %v266
    %v1493 = vunpack.c.l.b16 %v267
    %v1494 = vunpack.c.h.b16 %v267
    %v1495 = vunpack.c.l.b16 %v268
    %v1496 = vunpack.c.h.b16 %v268
    %v1497 = vunpack.c.l.b16 %v269
    %v1498 = vunpack.c.h.b16 %v269
    %v1499 = vunpack.c.l.b16 %v270
    %v1500 = vunpack.c.h.b16 %v270
    %v1501 = vunpack.c.l.b16 %v271
    %v1502 = vunpack.c.h.b16 %v271
    %v1503 = vunpack.c.l.b16 %v272
    %v1504 = vunpack.c.h.b16 %v272
    %v1505 = vunpack.c.l.b16 %v273
    %v1506 = vunpack.c.h.b16 %v273
    %v1507 = vunpack.c.l.b16 %v274
    %v1508 = vunpack.c.h.b16 %v274
    %v1509 = vunpack.c.l.b16 %v275
    %v1510 = vunpack.c.h.b16 %v275
    %v1511 = vunpack.c.l.b16 %v276
    %v1512 = vunpack.c.h.b16 %v276
    %v1513 = vunpack.c.l.b16 %v277
    %v1514 = vunpack.c.h.b16 %v277
    %v1515 = vunpack.c.l.b16 %v278
    %v1516 = vunpack.c.h.b16 %v278
    %v1517 = vunpack.c.l.b16 %v279
    %v1518 = vunpack.c.h.b16 %v279
    %v1519 = vunpack.c.l.b16 %v280
    %v1520 = vunpack.c.h.b16 %v280
    %v1521 = vunpack.c.l.b16 %v281
    %v1522 = vunpack.c.h.b16 %v281
    %v1523 = vunpack.c.l.b16 %v282
    %v1524 = vunpack.c.h.b16 %v282
    %v1525 = vunpack.c.l.b16 %v283
    %v1526 = vunpack.c.h.b16 %v283
    %v1527 = vunpack.c.l.b16 %v284
    %v1528 = vunpack.c.h.b16 %v284
    %v1529 = vunpack.c.l.b16 %v285
    %v1530 = vunpack.c.h.b16 %v285
    %v1531 = vunpack.c.l.b16 %v286
    %v1532 = vunpack.c.h.b16 %v286
    %v1533 = vunpack.c.l.b16 %v287
    %v1534 = vunpack.c.h.b16 %v287
    %v1535 = vunpack.c.l.b16 %v288
    %v1536 = vunpack.c.h.b16 %v288
    %v1537 = vunpack.c.l.b16 %v289
    %v1538 = vunpack.c.h.b16 %v289
    %v1539 = vunpack.c.l.b16 %v290
    %v1540 = vunpack.c.h.b16 %v290
    %v1541 = vunpack.c.l.b16 %v291
    %v1542 = vunpack.c.h.b16 %v291
    %v1543 = vunpack.c.l.b16 %v292
    %v1544 = vunpack.c.h.b16 %v292
    %v1545 = vunpack.c.l.b16 %v293
    %v1546 = vunpack.c.h.b16 %v293
    %v1547 = vunpack.c.l.b16 %v294
    %v1548 = vunpack.c.h.b16 %v294
    %v1549 = vunpack.c.l.b16 %v295
    %v1550 = vunpack.c.h.b16 %v295
    %v1551 = vunpack.c.l.b16 %v296
    %v1552 = vunpack.c.h.b16 %v296
    %v1553 = vunpack.c.l.b16 %v297
    %v1554 = vunpack.c.h.b16 %v297
    %v1555 = vunpack.c.l.b16 %v298
    %v1556 = vunpack.c.h.b16 %v298
    %v1557 = vunpack.c.l.b16 %v299
    %v1558 = vunpack.c.h.b16 %v299
    %v1559 = vunpack.c.l.b16 %v300
    %v1560 = vunpack.c.h.b16 %v300
    %v1561 = vunpack.c.l.b16 %v301
    %v1562 = vunpack.c.h.b16 %v301
    %v1563 = vunpack.c.l.b16 %v302
    %v1564 = vunpack.c.h.b16 %v302
    %v1565 = vunpack.c.l.b16 %v303
    %v1566 = vunpack.c.h.b16 %v303
    %v1567 = vunpack.c.l.b16 %v304
    %v1568 = vunpack.c.h.b16 %v304
    %v1569 = vunpack.c.l.b16 %v305
    %v1570 = vunpack.c.h.b16 %v305
    %v1571 = vunpack.c.l.b16 %v306
    %v1572 = vunpack.c.h.b16 %v306
    %v1573 = vunpack.c.l.b16 %v307
    %v1574 = vunpack.c.h.b16 %v307
    %v1575 = vunpack.c.l.b16 %v308
    %v1576 = vunpack.c.h.b16 %v308
    %v1577 = vunpack.c.l.b16 %v309
    %v1578 = vunpack.c.h.b16 %v309
    %v1579 = vunpack.c.l.b16 %v310
    %v1580 = vunpack.c.h.b16 %v310
    %v1581 = vunpack.c.l.b16 %v311
    %v1582 = vunpack.c.h.b16 %v311
    %v1583 = vunpack.c.l.b16 %v312
    %v1584 = vunpack.c.h.b16 %v312
    %v1585 = vunpack.c.l.b16 %v313
    %v1586 = vunpack.c.h.b16 %v313
    %v1587 = vunpack.c.l.b16 %v314
    %v1588 = vunpack.c.h.b16 %v314
    %v1589 = vunpack.c.l.b16 %v315
    %v1590 = vunpack.c.h.b16 %v315
    %v1591 = vunpack.c.l.b16 %v316
    %v1592 = vunpack.c.h.b16 %v316
    %v1593 = vunpack.c.l.b16 %v317
    %v1594 = vunpack.c.h.b16 %v317
    %v1595 = vunpack.c.l.b16 %v318
    %v1596 = vunpack.c.h.b16 %v318
    %v1597 = vunpack.c.l.b16 %v319
    %v1598 = vunpack.c.h.b16 %v319
    %v1599 = vunpack.c.l.b16 %v320
    %v1600 = vunpack.c.h.b16 %v320
    %v1601 = vunpack.c.l.b16 %v321
    %v1602 = vunpack.c.h.b16 %v321
    %v1603 = vunpack.c.l.b16 %v322
    %v1604 = vunpack.c.h.b16 %v322
    %v1605 = vunpack.c.l.b16 %v323
    %v1606 = vunpack.c.h.b16 %v323
    %v1607 = vunpack.c.l.b16 %v324
    %v1608 = vunpack.c.h.b16 %v324
    %v1609 = vunpack.c.l.b16 %v325
    %v1610 = vunpack.c.h.b16 %v325
    %v1611 = vunpack.c.l.b16 %v326
    %v1612 = vunpack.c.h.b16 %v326
    %v1613 = vunpack.c.l.b16 %v327
    %v1614 = vunpack.c.h.b16 %v327
    %v1615 = vunpack.c.l.b16 %v328
    %v1616 = vunpack.c.h.b16 %v328
    %v1617 = vunpack.c.l.b16 %v329
    %v1618 = vunpack.c.h.b16 %v329
    %v1619 = vunpack.c.l.b16 %v330
    %v1620 = vunpack.c.h.b16 %v330
    %v1621 = vunpack.c.l.b16 %v331
    %v1622 = vunpack.c.h.b16 %v331
    %v1623 = vunpack.c.l.b16 %v332
    %v1624 = vunpack.c.h.b16 %v332
    %v1625 = vunpack.c.l.b16 %v333
    %v1626 = vunpack.c.h.b16 %v333
    %v1627 = vunpack.c.l.b16 %v334
    %v1628 = vunpack.c.h.b16 %v334
    %v1629 = vunpack.c.l.b16 %v335
    %v1630 = vunpack.c.h.b16 %v335
    %v1631 = vunpack.c.l.b16 %v336
    %v1632 = vunpack.c.h.b16 %v336
    %v1633 = vunpack.c.l.b16 %v337
    %v1634 = vunpack.c.h.b16 %v337
    %v1635 = vunpack.c.l.b16 %v338
    %v1636 = vunpack.c.h.b16 %v338
    %v1637 = vunpack.c.l.b16 %v339
    %v1638 = vunpack.c.h.b16 %v339
    %v1639 = vunpack.c.l.b16 %v340
    %v1640 = vunpack.c.h.b16 %v340
    %v1641 = vunpack.c.l.b16 %v341
    %v1642 = vunpack.c.h.b16 %v341
    %v1643 = vunpack.c.l.b16 %v342
    %v1644 = vunpack.c.h.b16 %v342
    %v1645 = vunpack.c.l.b16 %v343
    %v1646 = vunpack.c.h.b16 %v343
    %v1647 = vunpack.c.l.b16 %v344
    %v1648 = vunpack.c.h.b16 %v344
    %v1649 = vunpack.c.l.b16 %v345
    %v1650 = vunpack.c.h.b16 %v345
    %v1651 = vunpack.c.l.b16 %v346
    %v1652 = vunpack.c.h.b16 %v346
    %v1653 = vunpack.c.l.b16 %v347
    %v1654 = vunpack.c.h.b16 %v347
    %v1655 = vunpack.c.l.b16 %v348
    %v1656 = vunpack.c.h.b16 %v348
    %v1657 = vunpack.c.l.b16 %v349
    %v1658 = vunpack.c.h.b16 %v349
    %v1659 = vunpack.c.l.b16 %v350
    %v1660 = vunpack.c.h.b16 %v350
    %v1661 = vunpack.c.l.b16 %v351
    %v1662 = vunpack.c.h.b16 %v351
    %v1663 = vunpack.c.l.b16 %v352
    %v1664 = vunpack.c.h.b16 %v352
    %v1665 = vunpack.c.l.b16 %v353
    %v1666 = vunpack.c.h.b16 %v353
    %v1667 = vunpack.c.l.b16 %v354
    %v1668 = vunpack.c.h.b16 %v354
    %v1669 = vunpack.c.l.b16 %v355
    %v1670 = vunpack.c.h.b16 %v355
    %v1671 = vunpack.c.l.b16 %v356
    %v1672 = vunpack.c.h.b16 %v356
    %v1673 = vunpack.c.l.b16 %v357
    %v1674 = vunpack.c.h.b16 %v357
    %v1675 = vunpack.c.l.b16 %v358
    %v1676 = vunpack.c.h.b16 %v358
    %v1677 = vunpack.c.l.b16 %v359
    %v1678 = vunpack.c.h.b16 %v359
    %v1679 = vunpack.c.l.b16 %v360
    %v1680 = vunpack.c.h.b16 %v360
    %v1681 = vunpack.c.l.b16 %v361
    %v1682 = vunpack.c.h.b16 %v361
    %v1683 = vunpack.c.l.b16 %v362
    %v1684 = vunpack.c.h.b16 %v362
    %v1685 = vunpack.c.l.b16 %v363
    %v1686 = vunpack.c.h.b16 %v363
    %v1687 = vunpack.c.l.b16 %v364
    %v1688 = vunpack.c.h.b16 %v364
    %v1689 = vunpack.c.l.b16 %v365
    %v1690 = vunpack.c.h.b16 %v365
    %v1691 = vunpack.c.l.b16 %v366
    %v1692 = vunpack.c.h.b16 %v366
    %v1693 = vunpack.c.l.b16 %v367
    %v1694 = vunpack.c.h.b16 %v367
    %v1695 = vunpack.c.l.b16 %v368
    %v1696 = vunpack.c.h.b16 %v368
    %v1697 = vunpack.c.l.b16 %v369
    %v1698 = vunpack.c.h.b16 %v369
    %v1699 = vunpack.c.l.b16 %v370
    %v1700 = vunpack.c.h.b16 %v370
    %v1701 = vunpack.c.l.b16 %v371
    %v1702 = vunpack.c.h.b16 %v371
    %v1703 = vunpack.c.l.b16 %v372
    %v1704 = vunpack.c.h.b16 %v372
    %v1705 = vunpack.c.l.b16 %v373
    %v1706 = vunpack.c.h.b16 %v373
    %v1707 = vunpack.c.l.b16 %v374
    %v1708 = vunpack.c.h.b16 %v374
    %v1709 = vunpack.c.l.b16 %v375
    %v1710 = vunpack.c.h.b16 %v375
    %v1711 = vunpack.c.l.b16 %v376
    %v1712 = vunpack.c.h.b16 %v376
    %v1713 = vunpack.c.l.b16 %v377
    %v1714 = vunpack.c.h.b16 %v377
    %v1715 = vunpack.c.l.b16 %v378
    %v1716 = vunpack.c.h.b16 %v378
    %v1717 = vunpack.c.l.b16 %v379
    %v1718 = vunpack.c.h.b16 %v379
    %v1719 = vunpack.c.l.b16 %v380
    %v1720 = vunpack.c.h.b16 %v380
    %v1721 = vunpack.c.l.b16 %v381
    %v1722 = vunpack.c.h.b16 %v381
    %v1723 = vunpack.c.l.b16 %v382
    %v1724 = vunpack.c.h.b16 %v382
    %v1725 = vunpack.c.l.b16 %v383
    %v1726 = vunpack.c.h.b16 %v383
    %v1727 = vunpack.c.l.b16 %v384
    %v1728 = vunpack.c.h.b16 %v384
    %v1729 = vunpack.c.l.b16 %v385
    %v1730 = vunpack.c.h.b16 %v385
    %v1731 = vunpack.c.l.b16 %v386
    %v1732 = vunpack.c.h.b16 %v386
    %v1733 = vunpack.c.l.b16 %v387
    %v1734 = vunpack.c.h.b16 %v387
    %v1735 = vunpack.c.l.b16 %v388
    %v1736 = vunpack.c.h.b16 %v388
    %v1737 = vunpack.c.l.b16 %v389
    %v1738 = vunpack.c.h.b16 %v389
    %v1739 = vunpack.c.l.b16 %v390
    %v1740 = vunpack.c.h.b16 %v390
    %v1741 = vunpack.c.l.b16 %v391
    %v1742 = vunpack.c.h.b16 %v391
    %v1743 = vunpack.c.l.b16 %v392
    %v1744 = vunpack.c.h.b16 %v392
    %v1745 = vunpack.c.l.b16 %v393
    %v1746 = vunpack.c.h.b16 %v393
    %v1747 = vunpack.c.l.b16 %v394
    %v1748 = vunpack.c.h.b16 %v394
    %v1749 = vunpack.c.l.b16 %v395
    %v1750 = vunpack.c.h.b16 %v395
    %v1751 = vunpack.c.l.b16 %v396
    %v1752 = vunpack.c.h.b16 %v396
    %v1753 = vunpack.c.l.b16 %v397
    %v1754 = vunpack.c.h.b16 %v397
    %v1755 = vunpack.c.l.b16 %v398
    %v1756 = vunpack.c.h.b16 %v398
    %v1757 = vunpack.c.l.b16 %v399
    %v1758 = vunpack.c.h.b16 %v399
    %v1759 = vunpack.c.l.b16 %v400
    %v1760 = vunpack.c.h.b16 %v400
    %v1761 = vunpack.c.l.b16 %v401
    %v1762 = vunpack.c.h.b16 %v401
    %v1763 = vunpack.c.l.b16 %v402
    %v1764 = vunpack.c.h.b16 %v402
    %v1765 = vunpack.c.l.b16 %v403
    %v1766 = vunpack.c.h.b16 %v403
    %v1767 = vunpack.c.l.b16 %v404
    %v1768 = vunpack.c.h.b16 %v404
    %v1769 = vunpack.c.l.b16 %v405
    %v1770 = vunpack.c.h.b16 %v405
    %v1771 = vunpack.c.l.b16 %v406
    %v1772 = vunpack.c.h.b16 %v406
    %v1773 = vunpack.c.l.b16 %v407
    %v1774 = vunpack.c.h.b16 %v407
    %v1775 = vunpack.c.l.b16 %v408
    %v1776 = vunpack.c.h.b16 %v408
    %v1777 = vunpack.c.l.b16 %v409
    %v1778 = vunpack.c.h.b16 %v409
    %v1779 = vunpack.c.l.b16 %v410
    %v1780 = vunpack.c.h.b16 %v410
    %v1781 = vunpack.c.l.b16 %v411
    %v1782 = vunpack.c.h.b16 %v411
    %v1783 = vunpack.c.l.b16 %v412
    %v1784 = vunpack.c.h.b16 %v412
    %v1785 = vunpack.c.l.b16 %v413
    %v1786 = vunpack.c.h.b16 %v413
    %v1787 = vunpack.c.l.b16 %v414
    %v1788 = vunpack.c.h.b16 %v414
    %v1789 = vunpack.c.l.b16 %v415
    %v1790 = vunpack.c.h.b16 %v415
    %v1791 = vunpack.c.l.b16 %v416
    %v1792 = vunpack.c.h.b16 %v416
    %v1793 = vunpack.c.l.b16 %v417
    %v1794 = vunpack.c.h.b16 %v417
    %v1795 = vpack.c.b16 %v1013, %v1011
    %v1796 = vpack.c.b16 %v1014, %v1012
    %v1797 = vpack.c.b16 %v1017, %v1015
    %v1798 = vpack.c.b16 %v1018, %v1016
    %v1799 = vpack.c.b16 %v1021, %v1019
    %v1800 = vpack.c.b16 %v1022, %v1020
    %v1801 = vpack.c.b16 %v1025, %v1023
    %v1802 = vpack.c.b16 %v1026, %v1024
    %v1803 = vpack.c.b16 %v1029, %v1027
    %v1804 = vpack.c.b16 %v1030, %v1028
    %v1805 = vpack.c.b16 %v1033, %v1031
    %v1806 = vpack.c.b16 %v1034, %v1032
    %v1807 = vpack.c.b16 %v1037, %v1035
    %v1808 = vpack.c.b16 %v1038, %v1036
    %v1809 = vpack.c.b16 %v1041, %v1039
    %v1810 = vpack.c.b16 %v1042, %v1040
    %v1811 = vpack.c.b16 %v1045, %v1043
    %v1812 = vpack.c.b16 %v1046, %v1044
    %v1813 = vpack.c.b16 %v1049, %v1047
    %v1814 = vpack.c.b16 %v1050, %v1048
    %v1815 = vpack.c.b16 %v1053, %v1051
    %v1816 = vpack.c.b16 %v1054, %v1052
    %v1817 = vpack.c.b16 %v1057, %v1055
    %v1818 = vpack.c.b16 %v1058, %v1056
    %v1819 = vpack.c.b16 %v1061, %v1059
    %v1820 = vpack.c.b16 %v1062, %v1060
    %v1821 = vpack.c.b16 %v1065, %v1063
    %v1822 = vpack.c.b16 %v1066, %v1064
    %v1823 = vpack.c.b16 %v1069, %v1067
    %v1824 = vpack.c.b16 %v1070, %v1068
    %v1825 = vpack.c.b16 %v1073, %v1071
    %v1826 = vpack.c.b16 %v1074, %v1072
    %v1827 = vpack.c.b16 %v1077, %v1075
    %v1828 = vpack.c.b16 %v1078, %v1076
    %v1829 = vpack.c.b16 %v1081, %v1079
    %v1830 = vpack.c.b16 %v1082, %v1080
    %v1831 = vpack.c.b16 %v1085, %v1083
    %v1832 = vpack.c.b16 %v1086, %v1084
    %v1833 = vpack.c.b16 %v1089, %v1087
    %v1834 = vpack.c.b16 %v1090, %v1088
    %v1835 = vpack.c.b16 %v1093, %v1091
    %v1836 = vpack.c.b16 %v1094, %v1092
    %v1837 = vpack.c.b16 %v1097, %v1095
    %v1838 = vpack.c.b16 %v1098, %v1096
    %v1839 = vpack.c.b16 %v1101, %v1099
    %v1840 = vpack.c.b16 %v1102, %v1100
    %v1841 = vpack.c.b16 %v1105, %v1103
    %v1842 = vpack.c.b16 %v1106, %v1104
    %v1843 = vpack.c.b16 %v1109, %v1107
    %v1844 = vpack.c.b16 %v1110, %v1108
    %v1845 = vpack.c.b16 %v1113, %v1111
    %v1846 = vpack.c.b16 %v1114, %v1112
    %v1847 = vpack.c.b16 %v1117, %v1115
    %v1848 = vpack.c.b16 %v1118, %v1116
    %v1849 = vpack.c.b16 %v1121, %v1119
    %v1850 = vpack.c.b16 %v1122, %v1120
    %v1851 = vpack.c.b16 %v1125, %v1123
    %v1852 = vpack.c.b16 %v1126, %v1124
    %v1853 = vpack.c.b16 %v1129, %v1127
    %v1854 = vpack.c.b16 %v1130, %v1128
    %v1855 = vpack.c.b16 %v1133, %v1131
    %v1856 = vpack.c.b16 %v1134, %v1132
    %v1857 = vpack.c.b16 %v1137, %v1135
    %v1858 = vpack.c.b16 %v1138, %v1136
    %v1859 = vpack.c.b16 %v1141, %v1139
    %v1860 = vpack.c.b16 %v1142, %v1140
    %v1861 = vpack.c.b16 %v1145, %v1143
    %v1862 = vpack.c.b16 %v1146, %v1144
    %v1863 = vpack.c.b16 %v1149, %v1147
    %v1864 = vpack.c.b16 %v1150, %v1148
    %v1865 = vpack.c.b16 %v1153, %v1151
    %v1866 = vpack.c.b16 %v1154, %v1152
    %v1867 = vpack.c.b16 %v1157, %v1155
    %v1868 = vpack.c.b16 %v1158, %v1156
    %v1869 = vpack.c.b16 %v1161, %v1159
    %v1870 = vpack.c.b16 %v1162, %v1160
    %v1871 = vpack.c.b16 %v1165, %v1163
    %v1872 = vpack.c.b16 %v1166, %v1164
    %v1873 = vpack.c.b16 %v1169, %v1167
    %v1874 = vpack.c.b16 %v1170, %v1168
    %v1875 = vpack.c.b16 %v1173, %v1171
    %v1876 = vpack.c.b16 %v1174, %v1172
    %v1877 = vpack.c.b16 %v1177, %v1175
    %v1878 = vpack.c.b16 %v1178, %v1176
    %v1879 = vpack.c.b16 %v1181, %v1179
    %v1880 = vpack.c.b16 %v1182, %v1180
    %v1881 = vpack.c.b16 %v1185, %v1183
    %v1882 = vpack.c.b16 %v1186, %v1184
    %v1883 = vpack.c.b16 %v1189, %v1187
    %v1884 = vpack.c.b16 %v1190, %v1188
    %v1885 = vpack.c.b16 %v1193, %v1191
    %v1886 = vpack.c.b16 %v1194, %v1192
    %v1887 = vpack.c.b16 %v1197, %v1195
    %v1888 = vpack.c.b16 %v1198, %v1196
    %v1889 = vpack.c.b16 %v1201, %v1199
    %v1890 = vpack.c.b16 %v1202, %v1200
    %v1891 = vpack.c.b16 %v1205, %v1203
    %v1892 = vpack.c.b16 %v1206, %v1204
    %v1893 = vpack.c.b16 %v1209, %v1207
    %v1894 = vpack.c.b16 %v1210, %v1208
    %v1895 = vpack.c.b16 %v1213, %v1211
    %v1896 = vpack.c.b16 %v1214, %v1212
    %v1897 = vpack.c.b16 %v1217, %v1215
    %v1898 = vpack.c.b16 %v1218, %v1216
    %v1899 = vpack.c.b16 %v1221, %v1219
    %v1900 = vpack.c.b16 %v1222, %v1220
    %v1901 = vpack.c.b16 %v1225, %v1223
    %v1902 = vpack.c.b16 %v1226, %v1224
    %v1903 = vpack.c.b16 %v1229, %v1227
    %v1904 = vpack.c.b16 %v1230, %v1228
    %v1905 = vpack.c.b16 %v1233, %v1231
    %v1906 = vpack.c.b16 %v1234, %v1232
    %v1907 = vpack.c.b16 %v1237, %v1235
    %v1908 = vpack.c.b16 %v1238, %v1236
    %v1909 = vpack.c.b16 %v1241, %v1239
    %v1910 = vpack.c.b16 %v1242, %v1240
    %v1911 = vpack.c.b16 %v1245, %v1243
    %v1912 = vpack.c.b16 %v1246, %v1244
    %v1913 = vpack.c.b16 %v1249, %v1247
    %v1914 = vpack.c.b16 %v1250, %v1248
    %v1915 = vpack.c.b16 %v1253, %v1251
    %v1916 = vpack.c.b16 %v1254, %v1252
    %v1917 = vpack.c.b16 %v1257, %v1255
    %v1918 = vpack.c.b16 %v1258, %v1256
    %v1919 = vpack.c.b16 %v1261, %v1259
    %v1920 = vpack.c.b16 %v1262, %v1260
    %v1921 = vpack.c.b16 %v1265, %v1263
    %v1922 = vpack.c.b16 %v1266, %v1264
    %v1923 = vpack.c.b16 %v1269, %v1267
    %v1924 = vpack.c.b16 %v1270, %v1268
    %v1925 = vpack.c.b16 %v1273, %v1271
    %v1926 = vpack.c.b16 %v1274, %v1272
    %v1927 = vpack.c.b16 %v1277, %v1275
    %v1928 = vpack.c.b16 %v1278, %v1276
    %v1929 = vpack.c.b16 %v1281, %v1279
    %v1930 = vpack.c.b16 %v1282, %v1280
    %v1931 = vpack.c.b16 %v1285, %v1283
    %v1932 = vpack.c.b16 %v1286, %v1284
    %v1933 = vpack.c.b16 %v1289, %v1287
    %v1934 = vpack.c.b16 %v1290, %v1288
    %v1935 = vpack.c.b16 %v1293, %v1291
    %v1936 = vpack.c.b16 %v1294, %v1292
    %v1937 = vpack.c.b16 %v1297, %v1295
    %v1938 = vpack.c.b16 %v1298, %v1296
    %v1939 = vpack.c.b16 %v1301, %v1299
    %v1940 = vpack.c.b16 %v1302, %v1300
    %v1941 = vpack.c.b16 %v1305, %v1303
    %v1942 = vpack.c.b16 %v1306, %v1304
    %v1943 = vpack.c.b16 %v1309, %v1307
    %v1944 = vpack.c.b16 %v1310, %v1308
    %v1945 = vpack.c.b16 %v1313, %v1311
    %v1946 = vpack.c.b16 %v1314, %v1312
    %v1947 = vpack.c.b16 %v1317, %v1315
    %v1948 = vpack.c.b16 %v1318, %v1316
    %v1949 = vpack.c.b16 %v1321, %v1319
    %v1950 = vpack.c.b16 %v1322, %v1320
    %v1951 = vpack.c.b16 %v1325, %v1323
    %v1952 = vpack.c.b16 %v1326, %v1324
    %v1953 = vpack.c.b16 %v1329, %v1327
    %v1954 = vpack.c.b16 %v1330, %v1328
    %v1955 = vpack.c.b16 %v1333, %v1331
    %v1956 = vpack.c.b16 %v1334, %v1332
    %v1957 = vpack.c.b16 %v1337, %v1335
    %v1958 = vpack.c.b16 %v1338, %v1336
    %v1959 = vpack.c.b16 %v1341, %v1339
    %v1960 = vpack.c.b16 %v1342, %v1340
    %v1961 = vpack.c.b16 %v1345, %v1343
    %v1962 = vpack.c.b16 %v1346, %v1344
    %v1963 = vpack.c.b16 %v1349, %v1347
    %v1964 = vpack.c.b16 %v1350, %v1348
    %v1965 = vpack.c.b16 %v1353, %v1351
    %v1966 = vpack.c.b16 %v1354, %v1352
    %v1967 = vpack.c.b16 %v1357, %v1355
    %v1968 = vpack.c.b16 %v1358, %v1356
    %v1969 = vpack.c.b16 %v1361, %v1359
    %v1970 = vpack.c.b16 %v1362, %v1360
    %v1971 = vpack.c.b16 %v1365, %v1363
    %v1972 = vpack.c.b16 %v1366, %v1364
    %v1973 = vpack.c.b16 %v1369, %v1367
    %v1974 = vpack.c.b16 %v1370, %v1368
    %v1975 = vpack.c.b16 %v1373, %v1371
    %v1976 = vpack.c.b16 %v1374, %v1372
    %v1977 = vpack.c.b16 %v1377, %v1375
    %v1978 = vpack.c.b16 %v1378, %v1376
    %v1979 = vpack.c.b16 %v1381, %v1379
    %v1980 = vpack.c.b16 %v1382, %v1380
    %v1981 = vpack.c.b16 %v1385, %v1383
    %v1982 = vpack.c.b16 %v1386, %v1384
    %v1983 = vpack.c.b16 %v1389, %v1387
    %v1984 = vpack.c.b16 %v1390, %v1388
    %v1985 = vpack.c.b16 %v1393, %v1391
    %v1986 = vpack.c.b16 %v1394, %v1392
    %v1987 = vpack.c.b16 %v1397, %v1395
    %v1988 = vpack.c.b16 %v1398, %v1396
    %v1989 = vpack.c.b16 %v1401, %v1399
    %v1990 = vpack.c.b16 %v1402, %v1400
    %v1991 = vpack.c.b16 %v1405, %v1403
    %v1992 = vpack.c.b16 %v1406, %v1404
    %v1993 = vpack.c.b16 %v1409, %v1407
    %v1994 = vpack.c.b16 %v1410, %v1408
    %v1995 = vpack.c.b16 %v1413, %v1411
    %v1996 = vpack.c.b16 %v1414, %v1412
    %v1997 = vpack.c.b16 %v1417, %v1415
    %v1998 = vpack.c.b16 %v1418, %v1416
    %v1999 = vpack.c.b16 %v1421, %v1419
    %v2000 = vpack.c.b16 %v1422, %v1420
    %v2001 = vpack.c.b16 %v1425, %v1423
    %v2002 = vpack.c.b16 %v1426, %v1424
    %v2003 = vpack.c.b16 %v1429, %v1427
    %v2004 = vpack.c.b16 %v1430, %v1428
    %v2005 = vpack.c.b16 %v1433, %v1431
    %v2006 = vpack.c.b16 %v1434, %v1432
    %v2007 = vpack.c.b16 %v1437, %v1435
    %v2008 = vpack.c.b16 %v1438, %v1436
    %v2009 = vpack.c.b16 %v1441, %v1439
    %v2010 = vpack.c.b16 %v1442, %v1440
    %v2011 = vpack.c.b16 %v1445, %v1443
    %v2012 = vpack.c.b16 %v1446, %v1444
    %v2013 = vpack.c.b16 %v1449, %v1447
    %v2014 = vpack.c.b16 %v1450, %v1448
    %v2015 = vpack.c.b16 %v1453, %v1451
    %v2016 = vpack.c.b16 %v1454, %v1452
    %v2017 = vpack.c.b16 %v1457, %v1455
    %v2018 = vpack.c.b16 %v1458, %v1456
    %v2019 = vpack.c.b16 %v1461, %v1459
    %v2020 = vpack.c.b16 %v1462, %v1460
    %v2021 = vpack.c.b16 %v1465, %v1463
    %v2022 = vpack.c.b16 %v1466, %v1464
    %v2023 = vpack.c.b16 %v1469, %v1467
    %v2024 = vpack.c.b16 %v1470, %v1468
    %v2025 = vpack.c.b16 %v1473, %v1471
    %v2026 = vpack.c.b16 %v1474, %v1472
    %v2027 = vpack.c.b16 %v1477, %v1475
    %v2028 = vpack.c.b16 %v1478, %v1476
    %v2029 = vpack.c.b16 %v1481, %v1479
    %v2030 = vpack.c.b16 %v1482, %v1480
    %v2031 = vpack.c.b16 %v1485, %v1483
    %v2032 = vpack.c.b16 %v1486, %v1484
    %v2033 = vpack.c.b16 %v1489, %v1487
    %v2034 = vpack.c.b16 %v1490, %v1488
    %v2035 = vpack.c.b16 %v1493, %v1491
    %v2036 = vpack.c.b16 %v1494, %v1492
    %v2037 = vpack.c.b16 %v1497, %v1495
    %v2038 = vpack.c.b16 %v1498, %v1496
    %v2039 = vpack.c.b16 %v1501, %v1499
    %v2040 = vpack.c.b16 %v1502, %v1500
    %v2041 = vpack.c.b16 %v1505, %v1503
    %v2042 = vpack.c.b16 %v1506, %v1504
    %v2043 = vpack.c.b16 %v1509, %v1507
    %v2044 = vpack.c.b16 %v1510, %v1508
    %v2045 = vpack.c.b16 %v1513, %v1511
    %v2046 = vpack.c.b16 %v1514, %v1512
    %v2047 = vpack.c.b16 %v1517, %v1515
    %v2048 = vpack.c.b16 %v1518, %v1516
    %v2049 = vpack.c.b16 %v1521, %v1519
    %v2050 = vpack.c.b16 %v1522, %v1520
    %v2051 = vpack.c.b16 %v1525, %v1523
    %v2052 = vpack.c.b16 %v1526, %v1524
    %v2053 = vpack.c.b16 %v1529, %v1527
    %v2054 = vpack.c.b16 %v1530, %v1528
    %v2055 = vpack.c.b16 %v1533, %v1531
    %v2056 = vpack.c.b16 %v1534, %v1532
    %v2057 = vpack.c.b16 %v1537, %v1535
    %v2058 = vpack.c.b16 %v1538, %v1536
    %v2059 = vpack.c.b16 %v1541, %v1539
    %v2060 = vpack.c.b16 %v1542, %v1540
    %v2061 = vpack.c.b16 %v1545, %v1543
    %v2062 = vpack.c.b16 %v1546, %v1544
    %v2063 = vpack.c.b16 %v1549, %v1547
    %v2064 = vpack.c.b16 %v1550, %v1548
    %v2065 = vpack.c.b16 %v1553, %v1551
    %v2066 = vpack.c.b16 %v1554, %v1552
    %v2067 = vpack.c.b16 %v1557, %v1555
    %v2068 = vpack.c.b16 %v1558, %v1556
    %v2069 = vpack.c.b16 %v1561, %v1559
    %v2070 = vpack.c.b16 %v1562, %v1560
    %v2071 = vpack.c.b16 %v1565, %v1563
    %v2072 = vpack.c.b16 %v1566, %v1564
    %v2073 = vpack.c.b16 %v1569, %v1567
    %v2074 = vpack.c.b16 %v1570, %v1568
    %v2075 = vpack.c.b16 %v1573, %v1571
    %v2076 = vpack.c.b16 %v1574, %v1572
    %v2077 = vpack.c.b16 %v1577, %v1575
    %v2078 = vpack.c.b16 %v1578, %v1576
    %v2079 = vpack.c.b16 %v1581, %v1579
    %v2080 = vpack.c.b16 %v1582, %v1580
    %v2081 = vpack.c.b16 %v1585, %v1583
    %v2082 = vpack.c.b16 %v1586, %v1584
    %v2083 = vpack.c.b16 %v1589, %v1587
    %v2084 = vpack.c.b16 %v1590, %v1588
    %v2085 = vpack.c.b16 %v1593, %v1591
    %v2086 = vpack.c.b16 %v1594, %v1592
    %v2087 = vpack.c.b16 %v1597, %v1595
    %v2088 = vpack.c.b16 %v1598, %v1596
    %v2089 = vpack.c.b16 %v1601, %v1599
    %v2090 = vpack.c.b16 %v1602, %v1600
    %v2091 = vpack.c.b16 %v1605, %v1603
    %v2092 = vpack.c.b16 %v1606, %v1604
    %v2093 = vpack.c.b16 %v1609, %v1607
    %v2094 = vpack.c.b16 %v1610, %v1608
    %v2095 = vpack.c.b16 %v1613, %v1611
    %v2096 = vpack.c.b16 %v1614, %v1612
    %v2097 = vpack.c.b16 %v1617, %v1615
    %v2098 = vpack.c.b16 %v1618, %v1616
    %v2099 = vpack.c.b16 %v1621, %v1619
    %v2100 = vpack.c.b16 %v1622, %v1620
    %v2101 = vpack.c.b16 %v1625, %v1623
    %v2102 = vpack.c.b16 %v1626, %v1624
    %v2103 = vpack.c.b16 %v1629, %v1627
    %v2104 = vpack.c.b16 %v1630, %v1628
    %v2105 = vpack.c.b16 %v1633, %v1631
    %v2106 = vpack.c.b16 %v1634, %v1632
    %v2107 = vpack.c.b16 %v1637, %v1635
    %v2108 = vpack.c.b16 %v1638, %v1636
    %v2109 = vpack.c.b16 %v1641, %v1639
    %v2110 = vpack.c.b16 %v1642, %v1640
    %v2111 = vpack.c.b16 %v1645, %v1643
    %v2112 = vpack.c.b16 %v1646, %v1644
    %v2113 = vpack.c.b16 %v1649, %v1647
    %v2114 = vpack.c.b16 %v1650, %v1648
    %v2115 = vpack.c.b16 %v1653, %v1651
    %v2116 = vpack.c.b16 %v1654, %v1652
    %v2117 = vpack.c.b16 %v1657, %v1655
    %v2118 = vpack.c.b16 %v1658, %v1656
    %v2119 = vpack.c.b16 %v1661, %v1659
    %v2120 = vpack.c.b16 %v1662, %v1660
    %v2121 = vpack.c.b16 %v1665, %v1663
    %v2122 = vpack.c.b16 %v1666, %v1664
    %v2123 = vpack.c.b16 %v1669, %v1667
    %v2124 = vpack.c.b16 %v1670, %v1668
    %v2125 = vpack.c.b16 %v1673, %v1671
    %v2126 = vpack.c.b16 %v1674, %v1672
    %v2127 = vpack.c.b16 %v1677, %v1675
    %v2128 = vpack.c.b16 %v1678, %v1676
    %v2129 = vpack.c.b16 %v1681, %v1679
    %v2130 = vpack.c.b16 %v1682, %v1680
    %v2131 = vpack.c.b16 %v1685, %v1683
    %v2132 = vpack.c.b16 %v1686, %v1684
    %v2133 = vpack.c.b16 %v1689, %v1687
    %v2134 = vpack.c.b16 %v1690, %v1688
    %v2135 = vpack.c.b16 %v1693, %v1691
    %v2136 = vpack.c.b16 %v1694, %v1692
    %v2137 = vpack.c.b16 %v1697, %v1695
    %v2138 = vpack.c.b16 %v1698, %v1696
    %v2139 = vpack.c.b16 %v1701, %v1699
    %v2140 = vpack.c.b16 %v1702, %v1700
    %v2141 = vpack.c.b16 %v1705, %v1703
    %v2142 = vpack.c.b16 %v1706, %v1704
    %v2143 = vpack.c.b16 %v1709, %v1707
    %v2144 = vpack.c.b16 %v1710, %v1708
    %v2145 = vpack.c.b16 %v1713, %v1711
    %v2146 = vpack.c.b16 %v1714, %v1712
    %v2147 = vpack.c.b16 %v1717, %v1715
    %v2148 = vpack.c.b16 %v1718, %v1716
    %v2149 = vpack.c.b16 %v1721, %v1719
    %v2150 = vpack.c.b16 %v1722, %v1720
    %v2151 = vpack.c.b16 %v1725, %v1723
    %v2152 = vpack.c.b16 %v1726, %v1724
    %v2153 = vpack.c.b16 %v1729, %v1727
    %v2154 = vpack.c.b16 %v1730, %v1728
    %v2155 = vpack.c.b16 %v1733, %v1731
    %v2156 = vpack.c.b16 %v1734, %v1732
    %v2157 = vpack.c.b16 %v1737, %v1735
    %v2158 = vpack.c.b16 %v1738, %v1736
    %v2159 = vpack.c.b16 %v1741, %v1739
    %v2160 = vpack.c.b16 %v1742, %v1740
    %v2161 = vpack.c.b16 %v1745, %v1743
    %v2162 = vpack.c.b16 %v1746, %v1744
    %v2163 = vpack.c.b16 %v1749, %v1747
    %v2164 = vpack.c.b16 %v1750, %v1748
    %v2165 = vpack.c.b16 %v1753, %v1751
    %v2166 = vpack.c.b16 %v1754, %v1752
    %v2167 = vpack.c.b16 %v1757, %v1755
    %v2168 = vpack.c.b16 %v1758, %v1756
    %v2169 = vpack.c.b16 %v1761, %v1759
    %v2170 = vpack.c.b16 %v1762, %v1760
    %v2171 = vpack.c.b16 %v1765, %v1763
    %v2172 = vpack.c.b16 %v1766, %v1764
    %v2173 = vpack.c.b16 %v1769, %v1767
    %v2174 = vpack.c.b16 %v1770, %v1768
    %v2175 = vpack.c.b16 %v1773, %v1771
    %v2176 = vpack.c.b16 %v1774, %v1772
    %v2177 = vpack.c.b16 %v1777, %v1775
    %v2178 = vpack.c.b16 %v1778, %v1776
    %v2179 = vpack.c.b16 %v1781, %v1779
    %v2180 = vpack.c.b16 %v1782, %v1780
    %v2181 = vpack.c.b16 %v1785, %v1783
    %v2182 = vpack.c.b16 %v1786, %v1784
    %v2183 = vpack.c.b16 %v1789, %v1787
    %v2184 = vpack.c.b16 %v1790, %v1788
    %v2185 = vpack.c.b16 %v1793, %v1791
    %v2186 = vpack.c.b16 %v1794, %v1792
    %vm2579 = vcmask 523264
    %v2581 = vsel %vm2579, %v594, 0
    %2583 = vmatprep.subr.bf16.mxu0 %v1796
    %2584 = vmatpush1.bf16.msra.mxu0 %v1795
    %2585 = vmatprep.subr.bf16.mxu0 %v1798
    %2586 = vmatpush1.bf16.msra.mxu0 %v1797
    %2587 = vmatprep.subr.bf16.mxu0 %v1800
    %2588 = vmatpush1.bf16.msra.mxu0 %v1799
    %2589 = vmatprep.subr.bf16.mxu0 %v1802
    %2590 = vmatpush1.bf16.msra.mxu0 %v1801
    %2591 = vmatprep.subr.bf16.mxu0 %v1804
    %2592 = vmatpush1.bf16.msra.mxu0 %v1803
    %2593 = vmatprep.subr.bf16.mxu0 %v1806
    %2594 = vmatpush1.bf16.msra.mxu0 %v1805
    %2595 = vmatprep.subr.bf16.mxu0 %v1808
    %2596 = vmatpush1.bf16.msra.mxu0 %v1807
    %2597 = vmatprep.subr.bf16.mxu0 %v1810
    %2598 = vmatpush1.bf16.msra.mxu0 %v1809
    %2599 = vmatprep.subr.bf16.mxu0 %v1812
    %2600 = vmatpush1.bf16.msra.mxu0 %v1811
    %2601 = vmatprep.subr.bf16.mxu0 %v1814
    %2602 = vmatpush1.bf16.msra.mxu0 %v1813
    %2603 = vmatprep.subr.bf16.mxu0 %v1816
    %2604 = vmatpush1.bf16.msra.mxu0 %v1815
    %2605 = vmatprep.subr.bf16.mxu0 %v1818
    %2606 = vmatpush1.bf16.msra.mxu0 %v1817
    %2607 = vmatprep.subr.bf16.mxu0 %v1820
    %2608 = vmatpush1.bf16.msra.mxu0 %v1819
    %2609 = vmatprep.subr.bf16.mxu0 %v1822
    %2610 = vmatpush1.bf16.msra.mxu0 %v1821
    %2611 = vmatprep.subr.bf16.mxu0 %v1824
    %2612 = vmatpush1.bf16.msra.mxu0 %v1823
    %2613 = vmatprep.subr.bf16.mxu0 %v1826
    %2614 = vmatpush1.bf16.msra.mxu0 %v1825
    %2615 = vmatprep.mubr.bf16.mxu0 %v471
    %2616 = vmatmul.mubr.bf16.gmra.mrb[0].mxu0 %v457
    %v2617 = vpop.f32.mrb[0].mxu0
    %v2618 = vadd.f32 %v423, %v2617
    %v2619 = vpop.f32.mrb[0].mxu0
    %v2620 = vadd.f32 %v427, %v2619
    %v2621 = vpop.f32.mrb[0].mxu0
    %v2622 = vpop.f32.mrb[0].mxu0
    %2623 = vdwg.mxu0
    %2624 = vmatprep.subr.bf16.mxu0 %v1828
    %2625 = vmatpush1.bf16.msra.mxu0 %v1827
    %2626 = vmatprep.subr.bf16.mxu0 %v1830
    %2627 = vmatpush1.bf16.msra.mxu0 %v1829
    %2628 = vmatprep.subr.bf16.mxu0 %v1832
    %2629 = vmatpush1.bf16.msra.mxu0 %v1831
    %2630 = vmatprep.subr.bf16.mxu0 %v1834
    %2631 = vmatpush1.bf16.msra.mxu0 %v1833
    %2632 = vmatprep.subr.bf16.mxu0 %v1836
    %2633 = vmatpush1.bf16.msra.mxu0 %v1835
    %2634 = vmatprep.subr.bf16.mxu0 %v1838
    %2635 = vmatpush1.bf16.msra.mxu0 %v1837
    %2636 = vmatprep.subr.bf16.mxu0 %v1840
    %2637 = vmatpush1.bf16.msra.mxu0 %v1839
    %2638 = vmatprep.subr.bf16.mxu0 %v1842
    %2639 = vmatpush1.bf16.msra.mxu0 %v1841
    %2640 = vmatprep.subr.bf16.mxu0 %v1844
    %2641 = vmatpush1.bf16.msra.mxu0 %v1843
    %2642 = vmatprep.subr.bf16.mxu0 %v1846
    %2643 = vmatpush1.bf16.msra.mxu0 %v1845
    %2644 = vmatprep.subr.bf16.mxu0 %v1848
    %2645 = vmatpush1.bf16.msra.mxu0 %v1847
    %2646 = vmatprep.subr.bf16.mxu0 %v1850
    %2647 = vmatpush1.bf16.msra.mxu0 %v1849
    %2648 = vmatprep.subr.bf16.mxu0 %v1852
    %2649 = vmatpush1.bf16.msra.mxu0 %v1851
    %2650 = vmatprep.subr.bf16.mxu0 %v1854
    %2651 = vmatpush1.bf16.msra.mxu0 %v1853
    %2652 = vmatprep.subr.bf16.mxu0 %v1856
    %2653 = vmatpush1.bf16.msra.mxu0 %v1855
    %2654 = vmatprep.subr.bf16.mxu0 %v1858
    %2655 = vmatpush1.bf16.msra.mxu0 %v1857
    %2656 = vmatprep.mubr.bf16.mxu0 %v481
    %2657 = vmatmul.mubr.bf16.gmra.mrb[0].mxu0 %v479
    %v2658 = vpop.f32.mrb[0].mxu0
    %v2659 = vadd.f32 %v2618, %v2658
    %v2660 = vpop.f32.mrb[0].mxu0
    %v2661 = vadd.f32 %v2620, %v2660
    %v2662 = vpop.f32.mrb[0].mxu0
    %v2663 = vpop.f32.mrb[0].mxu0
    %2664 = vdwg.mxu0
    %2665 = vmatprep.subr.bf16.mxu0 %v1860
    %2666 = vmatpush1.bf16.msra.mxu0 %v1859
    %2667 = vmatprep.subr.bf16.mxu0 %v1862
    %2668 = vmatpush1.bf16.msra.mxu0 %v1861
    %2669 = vmatprep.subr.bf16.mxu0 %v1864
    %2670 = vmatpush1.bf16.msra.mxu0 %v1863
    %2671 = vmatprep.subr.bf16.mxu0 %v1866
    %2672 = vmatpush1.bf16.msra.mxu0 %v1865
    %2673 = vmatprep.subr.bf16.mxu0 %v1868
    %2674 = vmatpush1.bf16.msra.mxu0 %v1867
    %2675 = vmatprep.subr.bf16.mxu0 %v1870
    %2676 = vmatpush1.bf16.msra.mxu0 %v1869
    %2677 = vmatprep.subr.bf16.mxu0 %v1872
    %2678 = vmatpush1.bf16.msra.mxu0 %v1871
    %2679 = vmatprep.subr.bf16.mxu0 %v1874
    %2680 = vmatpush1.bf16.msra.mxu0 %v1873
    %2681 = vmatprep.subr.bf16.mxu0 %v1876
    %2682 = vmatpush1.bf16.msra.mxu0 %v1875
    %2683 = vmatprep.subr.bf16.mxu0 %v1878
    %2684 = vmatpush1.bf16.msra.mxu0 %v1877
    %2685 = vmatprep.subr.bf16.mxu0 %v1880
    %2686 = vmatpush1.bf16.msra.mxu0 %v1879
    %2687 = vmatprep.subr.bf16.mxu0 %v1882
    %2688 = vmatpush1.bf16.msra.mxu0 %v1881
    %2689 = vmatprep.subr.bf16.mxu0 %v1884
    %2690 = vmatpush1.bf16.msra.mxu0 %v1883
    %2691 = vmatprep.subr.bf16.mxu0 %v1886
    %2692 = vmatpush1.bf16.msra.mxu0 %v1885
    %2693 = vmatprep.subr.bf16.mxu0 %v1888
    %2694 = vmatpush1.bf16.msra.mxu0 %v1887
    %2695 = vmatprep.subr.bf16.mxu0 %v1890
    %2696 = vmatpush1.bf16.msra.mxu0 %v1889
    %2697 = vmatprep.mubr.bf16.mxu0 %v478
    %2698 = vmatmul.mubr.bf16.gmra.mrb[0].mxu0 %v464
    %v2699 = vpop.f32.mrb[0].mxu0
    %v2700 = vadd.f32 %v2659, %v2699
    %v2701 = vpop.f32.mrb[0].mxu0
    %v2702 = vadd.f32 %v2661, %v2701
    %v2703 = vpop.f32.mrb[0].mxu0
    %v2704 = vpop.f32.mrb[0].mxu0
    %2705 = vdwg.mxu0
    %2706 = vmatprep.subr.bf16.mxu0 %v1892
    %2707 = vmatpush1.bf16.msra.mxu0 %v1891
    %2708 = vmatprep.subr.bf16.mxu0 %v1894
    %2709 = vmatpush1.bf16.msra.mxu0 %v1893
    %2710 = vmatprep.subr.bf16.mxu0 %v1896
    %2711 = vmatpush1.bf16.msra.mxu0 %v1895
    %2712 = vmatprep.subr.bf16.mxu0 %v1898
    %2713 = vmatpush1.bf16.msra.mxu0 %v1897
    %2714 = vmatprep.subr.bf16.mxu0 %v1900
    %2715 = vmatpush1.bf16.msra.mxu0 %v1899
    %2716 = vmatprep.subr.bf16.mxu0 %v1902
    %2717 = vmatpush1.bf16.msra.mxu0 %v1901
    %2718 = vmatprep.subr.bf16.mxu0 %v1904
    %2719 = vmatpush1.bf16.msra.mxu0 %v1903
    %2720 = vmatprep.subr.bf16.mxu0 %v1906
    %2721 = vmatpush1.bf16.msra.mxu0 %v1905
    %2722 = vmatprep.subr.bf16.mxu0 %v1908
    %2723 = vmatpush1.bf16.msra.mxu0 %v1907
    %2724 = vmatprep.subr.bf16.mxu0 %v1910
    %2725 = vmatpush1.bf16.msra.mxu0 %v1909
    %2726 = vmatprep.subr.bf16.mxu0 %v1912
    %2727 = vmatpush1.bf16.msra.mxu0 %v1911
    %2728 = vmatprep.subr.bf16.mxu0 %v1914
    %2729 = vmatpush1.bf16.msra.mxu0 %v1913
    %2730 = vmatprep.subr.bf16.mxu0 %v1916
    %2731 = vmatpush1.bf16.msra.mxu0 %v1915
    %2732 = vmatprep.subr.bf16.mxu0 %v1918
    %2733 = vmatpush1.bf16.msra.mxu0 %v1917
    %2734 = vmatprep.subr.bf16.mxu0 %v1920
    %2735 = vmatpush1.bf16.msra.mxu0 %v1919
    %2736 = vmatprep.subr.bf16.mxu0 %v1922
    %2737 = vmatpush1.bf16.msra.mxu0 %v1921
    %2738 = vmatprep.mubr.bf16.mxu0 %v482
    %2739 = vmatmul.mubr.bf16.gmra.mrb[0].mxu0 %v480
    %v2740 = vpop.f32.mrb[0].mxu0
    %v2741 = vadd.f32 %v2700, %v2740
    %v2742 = vpop.f32.mrb[0].mxu0
    %v2743 = vadd.f32 %v2702, %v2742
    %v2744 = vpop.f32.mrb[0].mxu0
    %v2745 = vpop.f32.mrb[0].mxu0
    %2746 = vdwg.mxu0
    %2747 = vmatprep.subr.bf16.mxu0 %v1924
    %2748 = vmatpush1.bf16.msra.mxu0 %v1923
    %2749 = vmatprep.subr.bf16.mxu0 %v1926
    %2750 = vmatpush1.bf16.msra.mxu0 %v1925
    %2751 = vmatprep.subr.bf16.mxu0 %v1928
    %2752 = vmatpush1.bf16.msra.mxu0 %v1927
    %2753 = vmatprep.subr.bf16.mxu0 %v1930
    %2754 = vmatpush1.bf16.msra.mxu0 %v1929
    %2755 = vmatprep.subr.bf16.mxu0 %v1932
    %2756 = vmatpush1.bf16.msra.mxu0 %v1931
    %2757 = vmatprep.subr.bf16.mxu0 %v1934
    %2758 = vmatpush1.bf16.msra.mxu0 %v1933
    %2759 = vmatprep.subr.bf16.mxu0 %v1936
    %2760 = vmatpush1.bf16.msra.mxu0 %v1935
    %2761 = vmatprep.subr.bf16.mxu0 %v1938
    %2762 = vmatpush1.bf16.msra.mxu0 %v1937
    %2763 = vmatprep.subr.bf16.mxu0 %v1940
    %2764 = vmatpush1.bf16.msra.mxu0 %v1939
    %2765 = vmatprep.subr.bf16.mxu0 %v1942
    %2766 = vmatpush1.bf16.msra.mxu0 %v1941
    %2767 = vmatprep.subr.bf16.mxu0 %v1944
    %2768 = vmatpush1.bf16.msra.mxu0 %v1943
    %2769 = vmatprep.subr.bf16.mxu0 %v1946
    %2770 = vmatpush1.bf16.msra.mxu0 %v1945
    %2771 = vmatprep.subr.bf16.mxu0 %v1948
    %2772 = vmatpush1.bf16.msra.mxu0 %v1947
    %2773 = vmatprep.subr.bf16.mxu0 %v1950
    %2774 = vmatpush1.bf16.msra.mxu0 %v1949
    %2775 = vmatprep.subr.bf16.mxu0 %v1952
    %2776 = vmatpush1.bf16.msra.mxu0 %v1951
    %2777 = vmatprep.subr.bf16.mxu0 %v1954
    %2778 = vmatpush1.bf16.msra.mxu0 %v1953
    %2779 = vmatprep.mubr.bf16.mxu0 %v520
    %2780 = vmatmul.mubr.bf16.gmra.mrb[0].mxu0 %v506
    %v2781 = vpop.f32.mrb[0].mxu0
    %v2782 = vadd.f32 %v2741, %v2781
    %v2783 = vpop.f32.mrb[0].mxu0
    %v2784 = vadd.f32 %v2743, %v2783
    %v2785 = vpop.f32.mrb[0].mxu0
    %v2786 = vpop.f32.mrb[0].mxu0
    %2787 = vdwg.mxu0
    %2788 = vmatprep.subr.bf16.mxu0 %v1956
    %2789 = vmatpush1.bf16.msra.mxu0 %v1955
    %2790 = vmatprep.subr.bf16.mxu0 %v1958
    %2791 = vmatpush1.bf16.msra.mxu0 %v1957
    %2792 = vmatprep.subr.bf16.mxu0 %v1960
    %2793 = vmatpush1.bf16.msra.mxu0 %v1959
    %2794 = vmatprep.subr.bf16.mxu0 %v1962
    %2795 = vmatpush1.bf16.msra.mxu0 %v1961
    %2796 = vmatprep.subr.bf16.mxu0 %v1964
    %2797 = vmatpush1.bf16.msra.mxu0 %v1963
    %2798 = vmatprep.subr.bf16.mxu0 %v1966
    %2799 = vmatpush1.bf16.msra.mxu0 %v1965
    %2800 = vmatprep.subr.bf16.mxu0 %v1968
    %2801 = vmatpush1.bf16.msra.mxu0 %v1967
    %2802 = vmatprep.subr.bf16.mxu0 %v1970
    %2803 = vmatpush1.bf16.msra.mxu0 %v1969
    %2804 = vmatprep.subr.bf16.mxu0 %v1972
    %2805 = vmatpush1.bf16.msra.mxu0 %v1971
    %2806 = vmatprep.subr.bf16.mxu0 %v1974
    %2807 = vmatpush1.bf16.msra.mxu0 %v1973
    %2808 = vmatprep.subr.bf16.mxu0 %v1976
    %2809 = vmatpush1.bf16.msra.mxu0 %v1975
    %2810 = vmatprep.subr.bf16.mxu0 %v1978
    %2811 = vmatpush1.bf16.msra.mxu0 %v1977
    %2812 = vmatprep.subr.bf16.mxu0 %v1980
    %2813 = vmatpush1.bf16.msra.mxu0 %v1979
    %2814 = vmatprep.subr.bf16.mxu0 %v1982
    %2815 = vmatpush1.bf16.msra.mxu0 %v1981
    %2816 = vmatprep.subr.bf16.mxu0 %v1984
    %2817 = vmatpush1.bf16.msra.mxu0 %v1983
    %2818 = vmatprep.subr.bf16.mxu0 %v1986
    %2819 = vmatpush1.bf16.msra.mxu0 %v1985
    %2820 = vmatprep.mubr.bf16.mxu0 %v530
    %2821 = vmatmul.mubr.bf16.gmra.mrb[0].mxu0 %v528
    %v2822 = vpop.f32.mrb[0].mxu0
    %v2823 = vadd.f32 %v2782, %v2822
    %v2824 = vpop.f32.mrb[0].mxu0
    %v2825 = vadd.f32 %v2784, %v2824
    %v2826 = vpop.f32.mrb[0].mxu0
    %v2827 = vpop.f32.mrb[0].mxu0
    %2828 = vdwg.mxu0
    %2829 = vmatprep.subr.bf16.mxu0 %v1988
    %2830 = vmatpush1.bf16.msra.mxu0 %v1987
    %2831 = vmatprep.subr.bf16.mxu0 %v1990
    %2832 = vmatpush1.bf16.msra.mxu0 %v1989
    %2833 = vmatprep.subr.bf16.mxu0 %v1992
    %2834 = vmatpush1.bf16.msra.mxu0 %v1991
    %2835 = vmatprep.subr.bf16.mxu0 %v1994
    %2836 = vmatpush1.bf16.msra.mxu0 %v1993
    %2837 = vmatprep.subr.bf16.mxu0 %v1996
    %2838 = vmatpush1.bf16.msra.mxu0 %v1995
    %2839 = vmatprep.subr.bf16.mxu0 %v1998
    %2840 = vmatpush1.bf16.msra.mxu0 %v1997
    %2841 = vmatprep.subr.bf16.mxu0 %v2000
    %2842 = vmatpush1.bf16.msra.mxu0 %v1999
    %2843 = vmatprep.subr.bf16.mxu0 %v2002
    %2844 = vmatpush1.bf16.msra.mxu0 %v2001
    %2845 = vmatprep.subr.bf16.mxu0 %v2004
    %2846 = vmatpush1.bf16.msra.mxu0 %v2003
    %2847 = vmatprep.subr.bf16.mxu0 %v2006
    %2848 = vmatpush1.bf16.msra.mxu0 %v2005
    %2849 = vmatprep.subr.bf16.mxu0 %v2008
    %2850 = vmatpush1.bf16.msra.mxu0 %v2007
    %2851 = vmatprep.subr.bf16.mxu0 %v2010
    %2852 = vmatpush1.bf16.msra.mxu0 %v2009
    %2853 = vmatprep.subr.bf16.mxu0 %v2012
    %2854 = vmatpush1.bf16.msra.mxu0 %v2011
    %2855 = vmatprep.subr.bf16.mxu0 %v2014
    %2856 = vmatpush1.bf16.msra.mxu0 %v2013
    %2857 = vmatprep.subr.bf16.mxu0 %v2016
    %2858 = vmatpush1.bf16.msra.mxu0 %v2015
    %2859 = vmatprep.subr.bf16.mxu0 %v2018
    %2860 = vmatpush1.bf16.msra.mxu0 %v2017
    %2861 = vmatprep.mubr.bf16.mxu0 %v527
    %2862 = vmatmul.mubr.bf16.gmra.mrb[0].mxu0 %v513
    %v2863 = vpop.f32.mrb[0].mxu0
    %v2864 = vadd.f32 %v2823, %v2863
    %v2865 = vpop.f32.mrb[0].mxu0
    %v2866 = vadd.f32 %v2825, %v2865
    %v2867 = vpop.f32.mrb[0].mxu0
    %v2868 = vpop.f32.mrb[0].mxu0
    %2869 = vdwg.mxu0
    %2870 = vmatprep.subr.bf16.mxu0 %v2020
    %2871 = vmatpush1.bf16.msra.mxu0 %v2019
    %2872 = vmatprep.subr.bf16.mxu0 %v2022
    %2873 = vmatpush1.bf16.msra.mxu0 %v2021
    %2874 = vmatprep.subr.bf16.mxu0 %v2024
    %2875 = vmatpush1.bf16.msra.mxu0 %v2023
    %2876 = vmatprep.subr.bf16.mxu0 %v2026
    %2877 = vmatpush1.bf16.msra.mxu0 %v2025
    %2878 = vmatprep.subr.bf16.mxu0 %v2028
    %2879 = vmatpush1.bf16.msra.mxu0 %v2027
    %2880 = vmatprep.subr.bf16.mxu0 %v2030
    %2881 = vmatpush1.bf16.msra.mxu0 %v2029
    %2882 = vmatprep.subr.bf16.mxu0 %v2032
    %2883 = vmatpush1.bf16.msra.mxu0 %v2031
    %2884 = vmatprep.subr.bf16.mxu0 %v2034
    %2885 = vmatpush1.bf16.msra.mxu0 %v2033
    %2886 = vmatprep.subr.bf16.mxu0 %v2036
    %2887 = vmatpush1.bf16.msra.mxu0 %v2035
    %2888 = vmatprep.subr.bf16.mxu0 %v2038
    %2889 = vmatpush1.bf16.msra.mxu0 %v2037
    %2890 = vmatprep.subr.bf16.mxu0 %v2040
    %2891 = vmatpush1.bf16.msra.mxu0 %v2039
    %2892 = vmatprep.subr.bf16.mxu0 %v2042
    %2893 = vmatpush1.bf16.msra.mxu0 %v2041
    %2894 = vmatprep.subr.bf16.mxu0 %v2044
    %2895 = vmatpush1.bf16.msra.mxu0 %v2043
    %2896 = vmatprep.subr.bf16.mxu0 %v2046
    %2897 = vmatpush1.bf16.msra.mxu0 %v2045
    %2898 = vmatprep.subr.bf16.mxu0 %v2048
    %2899 = vmatpush1.bf16.msra.mxu0 %v2047
    %2900 = vmatprep.subr.bf16.mxu0 %v2050
    %2901 = vmatpush1.bf16.msra.mxu0 %v2049
    %2902 = vmatprep.mubr.bf16.mxu0 %v531
    %2903 = vmatmul.mubr.bf16.gmra.mrb[0].mxu0 %v529
    %v2904 = vpop.f32.mrb[0].mxu0
    %v2905 = vadd.f32 %v2864, %v2904
    %v2906 = vpop.f32.mrb[0].mxu0
    %v2907 = vadd.f32 %v2866, %v2906
    %v2908 = vpop.f32.mrb[0].mxu0
    %v2909 = vpop.f32.mrb[0].mxu0
    %2910 = vdwg.mxu0
    %2911 = vmatprep.subr.bf16.mxu0 %v2052
    %2912 = vmatpush1.bf16.msra.mxu0 %v2051
    %2913 = vmatprep.subr.bf16.mxu0 %v2054
    %2914 = vmatpush1.bf16.msra.mxu0 %v2053
    %2915 = vmatprep.subr.bf16.mxu0 %v2056
    %2916 = vmatpush1.bf16.msra.mxu0 %v2055
    %2917 = vmatprep.subr.bf16.mxu0 %v2058
    %2918 = vmatpush1.bf16.msra.mxu0 %v2057
    %2919 = vmatprep.subr.bf16.mxu0 %v2060
    %2920 = vmatpush1.bf16.msra.mxu0 %v2059
    %2921 = vmatprep.subr.bf16.mxu0 %v2062
    %2922 = vmatpush1.bf16.msra.mxu0 %v2061
    %2923 = vmatprep.subr.bf16.mxu0 %v2064
    %2924 = vmatpush1.bf16.msra.mxu0 %v2063
    %2925 = vmatprep.subr.bf16.mxu0 %v2066
    %2926 = vmatpush1.bf16.msra.mxu0 %v2065
    %2927 = vmatprep.subr.bf16.mxu0 %v2068
    %2928 = vmatpush1.bf16.msra.mxu0 %v2067
    %2929 = vmatprep.subr.bf16.mxu0 %v2070
    %2930 = vmatpush1.bf16.msra.mxu0 %v2069
    %2931 = vmatprep.subr.bf16.mxu0 %v2072
    %2932 = vmatpush1.bf16.msra.mxu0 %v2071
    %2933 = vmatprep.subr.bf16.mxu0 %v2074
    %2934 = vmatpush1.bf16.msra.mxu0 %v2073
    %2935 = vmatprep.subr.bf16.mxu0 %v2076
    %2936 = vmatpush1.bf16.msra.mxu0 %v2075
    %2937 = vmatprep.subr.bf16.mxu0 %v2078
    %2938 = vmatpush1.bf16.msra.mxu0 %v2077
    %2939 = vmatprep.subr.bf16.mxu0 %v2080
    %2940 = vmatpush1.bf16.msra.mxu0 %v2079
    %2941 = vmatprep.subr.bf16.mxu0 %v2082
    %2942 = vmatpush1.bf16.msra.mxu0 %v2081
    %2943 = vmatprep.mubr.bf16.mxu0 %v569
    %2944 = vmatmul.mubr.bf16.gmra.mrb[0].mxu0 %v555
    %v2945 = vpop.f32.mrb[0].mxu0
    %v2946 = vadd.f32 %v2905, %v2945
    %v2947 = vpop.f32.mrb[0].mxu0
    %v2948 = vadd.f32 %v2907, %v2947
    %v2949 = vpop.f32.mrb[0].mxu0
    %v2950 = vpop.f32.mrb[0].mxu0
    %2951 = vdwg.mxu0
    %2952 = vmatprep.subr.bf16.mxu0 %v2084
    %2953 = vmatpush1.bf16.msra.mxu0 %v2083
    %2954 = vmatprep.subr.bf16.mxu0 %v2086
    %2955 = vmatpush1.bf16.msra.mxu0 %v2085
    %2956 = vmatprep.subr.bf16.mxu0 %v2088
    %2957 = vmatpush1.bf16.msra.mxu0 %v2087
    %2958 = vmatprep.subr.bf16.mxu0 %v2090
    %2959 = vmatpush1.bf16.msra.mxu0 %v2089
    %2960 = vmatprep.subr.bf16.mxu0 %v2092
    %2961 = vmatpush1.bf16.msra.mxu0 %v2091
    %2962 = vmatprep.subr.bf16.mxu0 %v2094
    %2963 = vmatpush1.bf16.msra.mxu0 %v2093
    %2964 = vmatprep.subr.bf16.mxu0 %v2096
    %2965 = vmatpush1.bf16.msra.mxu0 %v2095
    %2966 = vmatprep.subr.bf16.mxu0 %v2098
    %2967 = vmatpush1.bf16.msra.mxu0 %v2097
    %2968 = vmatprep.subr.bf16.mxu0 %v2100
    %2969 = vmatpush1.bf16.msra.mxu0 %v2099
    %2970 = vmatprep.subr.bf16.mxu0 %v2102
    %2971 = vmatpush1.bf16.msra.mxu0 %v2101
    %2972 = vmatprep.subr.bf16.mxu0 %v2104
    %2973 = vmatpush1.bf16.msra.mxu0 %v2103
    %2974 = vmatprep.subr.bf16.mxu0 %v2106
    %2975 = vmatpush1.bf16.msra.mxu0 %v2105
    %2976 = vmatprep.subr.bf16.mxu0 %v2108
    %2977 = vmatpush1.bf16.msra.mxu0 %v2107
    %2978 = vmatprep.subr.bf16.mxu0 %v2110
    %2979 = vmatpush1.bf16.msra.mxu0 %v2109
    %2980 = vmatprep.subr.bf16.mxu0 %v2112
    %2981 = vmatpush1.bf16.msra.mxu0 %v2111
    %2982 = vmatprep.subr.bf16.mxu0 %v2114
    %2983 = vmatpush1.bf16.msra.mxu0 %v2113
    %2984 = vmatprep.mubr.bf16.mxu0 %v579
    %2985 = vmatmul.mubr.bf16.gmra.mrb[0].mxu0 %v577
    %v2986 = vpop.f32.mrb[0].mxu0
    %v2987 = vadd.f32 %v2946, %v2986
    %v2988 = vpop.f32.mrb[0].mxu0
    %v2989 = vadd.f32 %v2948, %v2988
    %v2990 = vpop.f32.mrb[0].mxu0
    %v2991 = vpop.f32.mrb[0].mxu0
    %2992 = vdwg.mxu0
    %2993 = vmatprep.subr.bf16.mxu0 %v2116
    %2994 = vmatpush1.bf16.msra.mxu0 %v2115
    %2995 = vmatprep.subr.bf16.mxu0 %v2118
    %2996 = vmatpush1.bf16.msra.mxu0 %v2117
    %2997 = vmatprep.subr.bf16.mxu0 %v2120
    %2998 = vmatpush1.bf16.msra.mxu0 %v2119
    %2999 = vmatprep.subr.bf16.mxu0 %v2122
    %3000 = vmatpush1.bf16.msra.mxu0 %v2121
    %3001 = vmatprep.subr.bf16.mxu0 %v2124
    %3002 = vmatpush1.bf16.msra.mxu0 %v2123
    %3003 = vmatprep.subr.bf16.mxu0 %v2126
    %3004 = vmatpush1.bf16.msra.mxu0 %v2125
    %3005 = vmatprep.subr.bf16.mxu0 %v2128
    %3006 = vmatpush1.bf16.msra.mxu0 %v2127
    %3007 = vmatprep.subr.bf16.mxu0 %v2130
    %3008 = vmatpush1.bf16.msra.mxu0 %v2129
    %3009 = vmatprep.subr.bf16.mxu0 %v2132
    %3010 = vmatpush1.bf16.msra.mxu0 %v2131
    %3011 = vmatprep.subr.bf16.mxu0 %v2134
    %3012 = vmatpush1.bf16.msra.mxu0 %v2133
    %3013 = vmatprep.subr.bf16.mxu0 %v2136
    %3014 = vmatpush1.bf16.msra.mxu0 %v2135
    %3015 = vmatprep.subr.bf16.mxu0 %v2138
    %3016 = vmatpush1.bf16.msra.mxu0 %v2137
    %3017 = vmatprep.subr.bf16.mxu0 %v2140
    %3018 = vmatpush1.bf16.msra.mxu0 %v2139
    %3019 = vmatprep.subr.bf16.mxu0 %v2142
    %3020 = vmatpush1.bf16.msra.mxu0 %v2141
    %3021 = vmatprep.subr.bf16.mxu0 %v2144
    %3022 = vmatpush1.bf16.msra.mxu0 %v2143
    %3023 = vmatprep.subr.bf16.mxu0 %v2146
    %3024 = vmatpush1.bf16.msra.mxu0 %v2145
    %3025 = vmatprep.mubr.bf16.mxu0 %v576
    %3026 = vmatmul.mubr.bf16.gmra.mrb[0].mxu0 %v562
    %v3027 = vpop.f32.mrb[0].mxu0
    %v3028 = vadd.f32 %v2987, %v3027
    %v3029 = vpop.f32.mrb[0].mxu0
    %v3030 = vadd.f32 %v2989, %v3029
    %v3031 = vpop.f32.mrb[0].mxu0
    %v3032 = vpop.f32.mrb[0].mxu0
    %3033 = vdwg.mxu0
    %3034 = vmatprep.subr.bf16.mxu0 %v2148
    %3035 = vmatpush1.bf16.msra.mxu0 %v2147
    %3036 = vmatprep.subr.bf16.mxu0 %v2150
    %3037 = vmatpush1.bf16.msra.mxu0 %v2149
    %3038 = vmatprep.subr.bf16.mxu0 %v2152
    %3039 = vmatpush1.bf16.msra.mxu0 %v2151
    %3040 = vmatprep.subr.bf16.mxu0 %v2154
    %3041 = vmatpush1.bf16.msra.mxu0 %v2153
    %3042 = vmatprep.subr.bf16.mxu0 %v2156
    %3043 = vmatpush1.bf16.msra.mxu0 %v2155
    %3044 = vmatprep.subr.bf16.mxu0 %v2158
    %3045 = vmatpush1.bf16.msra.mxu0 %v2157
    %3046 = vmatprep.subr.bf16.mxu0 %v2160
    %3047 = vmatpush1.bf16.msra.mxu0 %v2159
    %3048 = vmatprep.subr.bf16.mxu0 %v2162
    %3049 = vmatpush1.bf16.msra.mxu0 %v2161
    %3050 = vmatprep.subr.bf16.mxu0 %v2164
    %3051 = vmatpush1.bf16.msra.mxu0 %v2163
    %3052 = vmatprep.subr.bf16.mxu0 %v2166
    %3053 = vmatpush1.bf16.msra.mxu0 %v2165
    %3054 = vmatprep.subr.bf16.mxu0 %v2168
    %3055 = vmatpush1.bf16.msra.mxu0 %v2167
    %3056 = vmatprep.subr.bf16.mxu0 %v2170
    %3057 = vmatpush1.bf16.msra.mxu0 %v2169
    %3058 = vmatprep.subr.bf16.mxu0 %v2172
    %3059 = vmatpush1.bf16.msra.mxu0 %v2171
    %3060 = vmatprep.subr.bf16.mxu0 %v2174
    %3061 = vmatpush1.bf16.msra.mxu0 %v2173
    %3062 = vmatprep.subr.bf16.mxu0 %v2176
    %3063 = vmatpush1.bf16.msra.mxu0 %v2175
    %3064 = vmatprep.subr.bf16.mxu0 %v2178
    %3065 = vmatpush1.bf16.msra.mxu0 %v2177
    %3066 = vmatprep.mubr.bf16.mxu0 %v580
    %3067 = vmatmul.mubr.bf16.gmra.mrb[0].mxu0 %v578
    %v3068 = vpop.f32.mrb[0].mxu0
    %v3069 = vadd.f32 %v3028, %v3068
    %v3070 = vpop.f32.mrb[0].mxu0
    %v3071 = vadd.f32 %v3030, %v3070
    %v3072 = vpop.f32.mrb[0].mxu0
    %v3073 = vpop.f32.mrb[0].mxu0
    %3074 = vdwg.mxu0
    %3075 = vmatprep.subr.bf16.mxu0 %v2180
    %3076 = vmatpush1.bf16.msra.mxu0 %v2179
    %3077 = vmatprep.subr.bf16.mxu0 %v2182
    %3078 = vmatpush1.bf16.msra.mxu0 %v2181
    %3079 = vmatprep.subr.bf16.mxu0 %v2184
    %3080 = vmatpush1.bf16.msra.mxu0 %v2183
    %3081 = vmatprep.subr.bf16.mxu0 %v2186
    %3082 = vmatpush1.bf16.msra.mxu0 %v2185
    %3083 = vmatprep.subr.bf16.mxu0 0
    %3084 = vmatpush1.bf16.msra.mxu0 0
    %3085 = vmatprep.subr.bf16.mxu0 0
    %3086 = vmatpush1.bf16.msra.mxu0 0
    %3087 = vmatprep.subr.bf16.mxu0 0
    %3088 = vmatpush1.bf16.msra.mxu0 0
    %3089 = vmatprep.subr.bf16.mxu0 0
    %3090 = vmatpush1.bf16.msra.mxu0 0
    %3091 = vmatprep.subr.bf16.mxu0 0
    %3092 = vmatpush1.bf16.msra.mxu0 0
    %3093 = vmatprep.subr.bf16.mxu0 0
    %3094 = vmatpush1.bf16.msra.mxu0 0
    %3095 = vmatprep.subr.bf16.mxu0 0
    %3096 = vmatpush1.bf16.msra.mxu0 0
    %3097 = vmatprep.subr.bf16.mxu0 0
    %3098 = vmatpush1.bf16.msra.mxu0 0
    %3099 = vmatprep.subr.bf16.mxu0 0
    %3100 = vmatpush1.bf16.msra.mxu0 0
    %3101 = vmatprep.subr.bf16.mxu0 0
    %3102 = vmatpush1.bf16.msra.mxu0 0
    %3103 = vmatprep.subr.bf16.mxu0 0
    %3104 = vmatpush1.bf16.msra.mxu0 0
    %3105 = vmatprep.subr.bf16.mxu0 0
    %3106 = vmatpush1.bf16.msra.mxu0 0
    %3107 = vmatprep.mubr.bf16.mxu0 0
    %3108 = vmatmul.mubr.bf16.gmra.mrb[0].mxu0 %v2581
    %v3109 = vpop.f32.mrb[0].mxu0
    %v3110 = vadd.f32 %v3069, %v3109
    %v3111 = vpop.f32.mrb[0].mxu0
    %v3112 = vadd.f32 %v3071, %v3111
    %v3113 = vpop.f32.mrb[0].mxu0
    %v3114 = vpop.f32.mrb[0].mxu0
    %3115 = vdwg.mxu0
    %v3116 = vmax.f32 %v3110, 0.0
    %v3117 = vmax.f32 %v3112, 0.0
    %v3118 = vpack.c.bf16 %v3116, %v3116
    %v3119 = vpack.c.bf16 %v3117, %v3117
    %v3120 = vld [vmem:[%s3] sm:$0xf]
    %v3121 = vld [vmem:[%s3 + $0x4] sm:$0xf]
    %v3122 = vld [vmem:[%s3 + $0x8] sm:$0xf]
    %v3123 = vld [vmem:[%s3 + $0xc] sm:$0xf]
    %v3124 = vld [vmem:[%s3 + $0x10] sm:$0xf]
    %v3125 = vld [vmem:[%s3 + $0x14] sm:$0xf]
    %v3126 = vld [vmem:[%s3 + $0x18] sm:$0xf]
    %v3127 = vld [vmem:[%s3 + $0x1c] sm:$0xf]
    %v3128 = vld [vmem:[%s3 + $0x20] sm:$0xf]
    %v3129 = vld [vmem:[%s3 + $0x24] sm:$0xf]
    %v3130 = vld [vmem:[%s3 + $0x28] sm:$0xf]
    %v3131 = vld [vmem:[%s3 + $0x2c] sm:$0xf]
    %v3132 = vld [vmem:[%s3 + $0x30] sm:$0xf]
    %v3133 = vld [vmem:[%s3 + $0x34] sm:$0xf]
    %v3134 = vld [vmem:[%s3 + $0x38] sm:$0xf]
    %v3135 = vld [vmem:[%s3 + $0x3c] sm:$0xf]
    %v3136 = vld [vmem:[%s3 + $0x40] sm:$0xf]
    %v3137 = vld [vmem:[%s3 + $0x44] sm:$0xf]
    %v3138 = vld [vmem:[%s3 + $0x48] sm:$0xf]
    %v3139 = vld [vmem:[%s3 + $0x4c] sm:$0xf]
    %v3140 = vld [vmem:[%s3 + $0x50] sm:$0xf]
    %v3141 = vld [vmem:[%s3 + $0x54] sm:$0xf]
    %v3142 = vld [vmem:[%s3 + $0x58] sm:$0xf]
    %v3143 = vld [vmem:[%s3 + $0x5c] sm:$0xf]
    %v3144 = vld [vmem:[%s3 + $0x60] sm:$0xf]
    %v3145 = vld [vmem:[%s3 + $0x64] sm:$0xf]
    %v3146 = vld [vmem:[%s3 + $0x68] sm:$0xf]
    %v3147 = vld [vmem:[%s3 + $0x6c] sm:$0xf]
    %v3148 = vld [vmem:[%s3 + $0x70] sm:$0xf]
    %v3149 = vld [vmem:[%s3 + $0x74] sm:$0xf]
    %v3150 = vld [vmem:[%s3 + $0x78] sm:$0xf]
    %v3151 = vld [vmem:[%s3 + $0x7c] sm:$0xf]
    %v3152 = vld [vmem:[%s4] sm:$0x1]
    %v3154 = vlaneseq
    %v3155 = vshrl.u32 %v3154, 7
    %v3156 = vsub.s32 0, %v3155
    %v3157 = vrot.slane %v3152, %v3156
    %v3191 = vunpack.c.l.b16 %v3120
    %v3192 = vunpack.c.l.b16 %v3121
    %v3193 = vunpack.c.l.b16 %v3122
    %v3194 = vunpack.c.l.b16 %v3123
    %v3195 = vunpack.c.l.b16 %v3124
    %v3196 = vunpack.c.l.b16 %v3125
    %v3197 = vunpack.c.l.b16 %v3126
    %v3198 = vunpack.c.l.b16 %v3127
    %v3199 = vunpack.c.l.b16 %v3128
    %v3200 = vunpack.c.l.b16 %v3129
    %v3201 = vunpack.c.l.b16 %v3130
    %v3202 = vunpack.c.l.b16 %v3131
    %v3203 = vunpack.c.l.b16 %v3132
    %v3204 = vunpack.c.l.b16 %v3133
    %v3205 = vunpack.c.l.b16 %v3134
    %v3206 = vunpack.c.l.b16 %v3135
    %v3207 = vunpack.c.l.b16 %v3136
    %v3208 = vunpack.c.l.b16 %v3137
    %v3209 = vunpack.c.l.b16 %v3138
    %v3210 = vunpack.c.l.b16 %v3139
    %v3211 = vunpack.c.l.b16 %v3140
    %v3212 = vunpack.c.l.b16 %v3141
    %v3213 = vunpack.c.l.b16 %v3142
    %v3214 = vunpack.c.l.b16 %v3143
    %v3215 = vunpack.c.l.b16 %v3144
    %v3216 = vunpack.c.l.b16 %v3145
    %v3217 = vunpack.c.l.b16 %v3146
    %v3218 = vunpack.c.l.b16 %v3147
    %v3219 = vunpack.c.l.b16 %v3148
    %v3220 = vunpack.c.l.b16 %v3149
    %v3221 = vunpack.c.l.b16 %v3150
    %v3222 = vunpack.c.l.b16 %v3151
    %v3223 = vpack.c.b16 %v3192, %v3191
    %v3224 = vpack.c.b16 %v3194, %v3193
    %v3225 = vpack.c.b16 %v3196, %v3195
    %v3226 = vpack.c.b16 %v3198, %v3197
    %v3227 = vpack.c.b16 %v3200, %v3199
    %v3228 = vpack.c.b16 %v3202, %v3201
    %v3229 = vpack.c.b16 %v3204, %v3203
    %v3230 = vpack.c.b16 %v3206, %v3205
    %v3231 = vpack.c.b16 %v3208, %v3207
    %v3232 = vpack.c.b16 %v3210, %v3209
    %v3233 = vpack.c.b16 %v3212, %v3211
    %v3234 = vpack.c.b16 %v3214, %v3213
    %v3235 = vpack.c.b16 %v3216, %v3215
    %v3236 = vpack.c.b16 %v3218, %v3217
    %v3237 = vpack.c.b16 %v3220, %v3219
    %v3238 = vpack.c.b16 %v3222, %v3221
    %3255 = vmatprep.subr.bf16.mxu0 0
    %3256 = vmatpush1.bf16.msra.mxu0 %v3223
    %3257 = vmatprep.subr.bf16.mxu0 0
    %3258 = vmatpush1.bf16.msra.mxu0 %v3224
    %3259 = vmatprep.subr.bf16.mxu0 0
    %3260 = vmatpush1.bf16.msra.mxu0 %v3225
    %3261 = vmatprep.subr.bf16.mxu0 0
    %3262 = vmatpush1.bf16.msra.mxu0 %v3226
    %3263 = vmatprep.subr.bf16.mxu0 0
    %3264 = vmatpush1.bf16.msra.mxu0 %v3227
    %3265 = vmatprep.subr.bf16.mxu0 0
    %3266 = vmatpush1.bf16.msra.mxu0 %v3228
    %3267 = vmatprep.subr.bf16.mxu0 0
    %3268 = vmatpush1.bf16.msra.mxu0 %v3229
    %3269 = vmatprep.subr.bf16.mxu0 0
    %3270 = vmatpush1.bf16.msra.mxu0 %v3230
    %3271 = vmatprep.subr.bf16.mxu0 0
    %3272 = vmatpush1.bf16.msra.mxu0 %v3231
    %3273 = vmatprep.subr.bf16.mxu0 0
    %3274 = vmatpush1.bf16.msra.mxu0 %v3232
    %3275 = vmatprep.subr.bf16.mxu0 0
    %3276 = vmatpush1.bf16.msra.mxu0 %v3233
    %3277 = vmatprep.subr.bf16.mxu0 0
    %3278 = vmatpush1.bf16.msra.mxu0 %v3234
    %3279 = vmatprep.subr.bf16.mxu0 0
    %3280 = vmatpush1.bf16.msra.mxu0 %v3235
    %3281 = vmatprep.subr.bf16.mxu0 0
    %3282 = vmatpush1.bf16.msra.mxu0 %v3236
    %3283 = vmatprep.subr.bf16.mxu0 0
    %3284 = vmatpush1.bf16.msra.mxu0 %v3237
    %3285 = vmatprep.subr.bf16.mxu0 0
    %3286 = vmatpush1.bf16.msra.mxu0 %v3238
    %3287 = vmatprep.mubr.bf16.mxu0 %v3119
    %3288 = vmatmul.mubr.bf16.gmra.mrb[0].mxu0 %v3118
    %v3289 = vpop.f32.mrb[0].mxu0
    %v3290 = vadd.f32 %v3157, %v3289
    %v3291 = vpop.f32.mrb[0].mxu0
    %v3292 = vpop.f32.mrb[0].mxu0
    %v3293 = vpop.f32.mrb[0].mxu0
    %3294 = vdwg.mxu0
    %vm3295 = vcmask 17408
    %3296 = vst.msk [vmem:[#allocation2] sm:$0x3] %vm3295, %v3290
    // Predicated region
    $region22: #{ddqn_forward.3} parent=1 // pred_check
      _
    $region23: #{ddqn_forward.3} parent=1 // pred_check_branch
      %3298 = sbr.rel (0) target = $region25
    $region24: #{ddqn_forward.3} parent=1 // pred_region
      %s3300 = ssub.s32 32, 32
      %3301 = vsyncadd [#allocation3], %s3300
      %s3303 = sshll.u32 [#allocation2], 4
      %s3304 = int_to_ptr.vmem [resolvable:$true] %s3303
      %3306 = dma.vmem_to_hbm [thread:$0]  %s3304, 32, %s5, [#allocation3]
    $region25: #{ddqn_forward.3} parent=1 // pred_fallthru
      _
    // Predicated region
    $region26: #{ddqn_forward.3} parent=1 // pred_check
      _
    $region27: #{ddqn_forward.3} parent=1 // pred_check_branch
      %3308 = sbr.rel (0) target = $region29
    $region28: #{ddqn_forward.3} parent=1 // pred_region
      %3309 = dma.done [#allocation3], 32
    $region29: #{ddqn_forward.3} parent=1 // pred_fallthru
      _
    %3310 = vsyncpa [#allocation3], 1

</llo_original>
